<compile_context>
chip_gen: v7x
topology: tpu7x:2x2x1
jax: 0.10.0
libtpu: 0.0.40
codegen_flags: <defaults>
</compile_context>

<pallas_src>
import math

import jax
import jax.numpy as jnp
from jax.experimental import pallas as pl
from jax.experimental.pallas import tpu as pltpu

NEG_SLOPE = 0.01               # nn.LeakyReLU default
OUT_H, OUT_W = 360, 640        # nn.UpsamplingBilinear2d(size=(360, 640))
CHANNELS = [34, 128, 128, 96, 64, 3]
N_CONV = 5

H_IN = W_IN = 16               # input spatial size used in the example
Hf, Wf = H_IN - 2 * N_CONV, W_IN - 2 * N_CONV        # 6, 6 after 5 valid convs
HYC = Hf * 3                   # 18 rows of (y, c)-ordered width-interp input

TAP_OFFSETS = tuple(dy * W_IN + dx for dy in range(3) for dx in range(3))
SHRINK = TAP_OFFSETS[-1]       # 2*W_IN + 2 = 34 flat positions lost per layer


def _tpu_generation():
    try:
        kind = jax.devices()[0].device_kind.lower()
    except Exception:
        return 6
    for g in (7, 6, 5, 4, 3):
        if f"v{g}" in kind:
            return g
    return 6


TPU_GEN = _tpu_generation()
SPLIT_UPSAMPLE = TPU_GEN >= 7          # 2 TCs -> parallel upsample call
PER_TAP_CONV = TPU_GEN <= 5            # v5e: per-tap matmuls for Cin=128 layers
ROW_TILE = 360 if TPU_GEN >= 7 else 216
N_TILES = (3 * OUT_H) // ROW_TILE
VMEM_LIMIT = 16 * 1024 * 1024


def _leaky(x):
    return jnp.where(x >= 0, x, NEG_SLOPE * x)


def _conv3x3_flat(x, w_ref, b_ref, n_out, act):
    """Valid 3x3 conv on a channels-first flattened frame.

    x: (Cin, n_in) bf16, columns are row-major frame positions (width W_IN).
    w_ref: (Cout, 9*Cin) bf16 packed (cout, dy, dx, cin).  b_ref: (Cout, 1) f32.
    Returns (Cout, n_out); only columns p = y*W_IN + x inside the layer's valid
    interior are meaningful (garbage columns are never read downstream).
    """
    cin = x.shape[0]
    if PER_TAP_CONV and cin == 128:
        # v5e: 9 accumulating K=128 matmuls (same vmatmul count as deep-K
        # im2col on the 128-deep MXU, no im2col patches store/reload).
        h = jnp.zeros((w_ref.shape[0], n_out), jnp.float32)
        for t, off in enumerate(TAP_OFFSETS):
            h = h + jnp.dot(w_ref[:, t * cin:(t + 1) * cin],
                            x[:, off:off + n_out],
                            preferred_element_type=jnp.float32)
    else:
        patches = jnp.concatenate(
            [x[:, off:off + n_out] for off in TAP_OFFSETS], axis=0)    # (9Cin, n)
        h = jnp.dot(w_ref[...], patches, preferred_element_type=jnp.float32)
    h = h + b_ref[...]                                                 # (Cout, 1)
    if act:
        return _leaky(h).astype(jnp.bfloat16)
    return h


def _conv_chain_width_interp(x_ref, conv_refs, axT_ref):
    """Full conv chain + width interpolation -> (18, 640) f32."""
    n = x_ref.shape[1]                                   # 256
    h = x_ref[...]                                       # (34, 256) bf16
    for (w, b, act) in conv_refs:
        n -= SHRINK
        h = _conv3x3_flat(h, w, b, n, act)
    # h: (3, 86) f32; h[c, y*W_IN + x] = conv5 output at (y, x, c).
    # Gather the 6x6 valid interior into rows ordered (y, c), lanes = x.
    hyc = jnp.concatenate(
        [h[:, y * W_IN:y * W_IN + Wf] for y in range(Hf)], axis=0)     # (18, 6)
    # Width interpolation for all channels at once -> lane-dense (18, 640),
    # bf16 operands / f32 accumulation.
    return jnp.dot(hyc.astype(jnp.bfloat16), axT_ref[...],
                   preferred_element_type=jnp.float32)


def bgnet_fused_kernel(x_ref,
                       w1, b1, w2, b2, w3, b3, w4, b4, w5, b5,
                       axT_ref, ayb_ref,
                       out_ref, tmp_ref):
    # Conv chain + width interpolation run only once; the grid axis is
    # "arbitrary" (sequential on one TC) so tmp_ref persists across steps.
    @pl.when(pl.program_id(0) == 0)
    def _():
        conv_refs = ((w1, b1, True), (w2, b2, True), (w3, b3, True),
                     (w4, b4, True), (w5, b5, False))
        tmp_ref[...] = _conv_chain_width_interp(
            x_ref, conv_refs, axT_ref).astype(jnp.bfloat16)

    # Height interpolation for this tile of output rows (block-diagonal over
    # channels folds all 3 channels into one K=18, N=640 bf16 matmul).
    out_ref[...] = jnp.dot(ayb_ref[...], tmp_ref[...],
                           preferred_element_type=jnp.float32)


def bgnet_conv_kernel(x_ref,
                      w1, b1, w2, b2, w3, b3, w4, b4, w5, b5,
                      axT_ref, tmp_ref):
    conv_refs = ((w1, b1, True), (w2, b2, True), (w3, b3, True),
                 (w4, b4, True), (w5, b5, False))
    tmp_ref[...] = _conv_chain_width_interp(
        x_ref, conv_refs, axT_ref).astype(jnp.bfloat16)


def bgnet_upsample_kernel(tmp_ref, ayb_ref, out_ref):
    out_ref[...] = jnp.dot(ayb_ref[...], tmp_ref[...],
                           preferred_element_type=jnp.float32)


def interp_matrix(n_out, n_in):
    """Bilinear interpolation matrix (align_corners=True), shape (n_out, n_in)."""
    if n_in == 1:
        return jnp.ones((n_out, 1), jnp.float32)
    src = jnp.arange(n_out, dtype=jnp.float32) * (n_in - 1) / (n_out - 1)
    lo = jnp.clip(jnp.floor(src).astype(jnp.int32), 0, n_in - 2)
    frac = src - lo.astype(jnp.float32)
    m = (jax.nn.one_hot(lo, n_in, dtype=jnp.float32) * (1.0 - frac)[:, None]
         + jax.nn.one_hot(lo + 1, n_in, dtype=jnp.float32) * frac[:, None])
    return m.astype(jnp.float32)


def init_params(key):
    """Deterministic Conv2d params (PyTorch-style uniform init), HWIO layout."""
    params = []
    for i in range(N_CONV):
        cin, cout = CHANNELS[i], CHANNELS[i + 1]
        key, kw, kb = jax.random.split(key, 3)
        bound = 1.0 / math.sqrt(cin * 9)
        w = jax.random.uniform(kw, (3, 3, cin, cout), jnp.float32, -bound, bound)
        b = jax.random.uniform(kb, (cout,), jnp.float32, -bound, bound)
        params.append((w, b))
    return params


def _pack_params(params):
    """HWIO (3,3,Cin,Cout) -> bf16 (Cout, 9*Cin) packed (cout, dy, dx, cin)."""
    packed = []
    for w, b in params:
        cout = w.shape[-1]
        wt = jnp.transpose(w, (3, 0, 1, 2)).reshape(cout, -1).astype(jnp.bfloat16)
        bt = b.reshape(cout, 1).astype(jnp.float32)
        packed.append((wt, bt))
    return packed


def _full_spec(a):
    return pl.BlockSpec(a.shape, lambda i: (0,) * a.ndim)


@jax.jit
def bgnet_forward(x_nchw, params, axT, ay_blk):
    """x_nchw: (1, 34, 16, 16) f32 -> (1, 3, 360, 640) f32."""
    c0 = x_nchw.shape[1]
    x_flat = x_nchw[0].reshape(c0, H_IN * W_IN).astype(jnp.bfloat16)   # (34, 256)

    conv_args = [x_flat]
    for wt, bt in _pack_params(params):
        conv_args += [wt, bt]
    axT_bf = axT.astype(jnp.bfloat16)            # (6, 640)
    ayb_bf = ay_blk.astype(jnp.bfloat16)         # (1080, 18)

    if SPLIT_UPSAMPLE:
        # v7x: call 1 — conv chain + width interp (single step, one core).
        tmp = pl.pallas_call(
            bgnet_conv_kernel,
            grid=(1,),
            out_shape=jax.ShapeDtypeStruct((HYC, OUT_W), jnp.bfloat16),
            in_specs=[_full_spec(a) for a in conv_args + [axT_bf]],
            out_specs=pl.BlockSpec((HYC, OUT_W), lambda i: (0, 0)),
            compiler_params=pltpu.CompilerParams(
                dimension_semantics=("arbitrary",),
                vmem_limit_bytes=VMEM_LIMIT),
        )(*conv_args, axT_bf)

        # Call 2 — height interp + writeback, parallel across both TCs.
        out = pl.pallas_call(
            bgnet_upsample_kernel,
            grid=(N_TILES,),
            out_shape=jax.ShapeDtypeStruct((3 * OUT_H, OUT_W), jnp.float32),
            in_specs=[pl.BlockSpec((HYC, OUT_W), lambda i: (0, 0)),
                      pl.BlockSpec((ROW_TILE, HYC), lambda i: (i, 0))],
            out_specs=pl.BlockSpec((ROW_TILE, OUT_W), lambda i: (i, 0)),
            compiler_params=pltpu.CompilerParams(
                dimension_semantics=("parallel",),
                vmem_limit_bytes=VMEM_LIMIT),
        )(tmp, ayb_bf)
    else:
        # v5e / v6e: fused single call, sequential grid, persistent scratch.
        args = conv_args + [axT_bf, ayb_bf]
        in_specs = [_full_spec(a) for a in args[:-1]]
        in_specs.append(pl.BlockSpec((ROW_TILE, HYC), lambda i: (i, 0)))   # ay_blk
        out = pl.pallas_call(
            bgnet_fused_kernel,
            grid=(N_TILES,),
            out_shape=jax.ShapeDtypeStruct((3 * OUT_H, OUT_W), jnp.float32),
            in_specs=in_specs,
            out_specs=pl.BlockSpec((ROW_TILE, OUT_W), lambda i: (i, 0)),
            scratch_shapes=[pltpu.VMEM((HYC, OUT_W), jnp.bfloat16)],
            compiler_params=pltpu.CompilerParams(
                dimension_semantics=("arbitrary",),
                vmem_limit_bytes=VMEM_LIMIT),
        )(*args)

    return out.reshape(3, OUT_H, OUT_W)[None]                           # NCHW


def reference_forward(x_nchw, params, ay, axT):
    """Plain-JAX f32 reference (lax conv + matrix bilinear resize), NCHW in/out."""
    h = jnp.transpose(x_nchw, (0, 2, 3, 1)).astype(jnp.float32)         # NHWC
    for i, (w, b) in enumerate(params):
        h = jax.lax.conv_general_dilated(
            h, w, window_strides=(1, 1), padding="VALID",
            dimension_numbers=("NHWC", "HWIO", "NHWC"))
        h = h + b.reshape(1, 1, 1, -1)
        if i < N_CONV - 1:
            h = jnp.where(h >= 0, h, NEG_SLOPE * h)
    hc = jnp.transpose(h[0], (2, 0, 1))                                 # (3, Hf, Wf)
    up = jnp.einsum("oh,chw,wx->cox", ay, hc, axT)
    return up[None]


if __name__ == "__main__":
    key = jax.random.PRNGKey(0)
    kx, kp = jax.random.split(key)

    x = jax.random.normal(kx, (1, CHANNELS[0], H_IN, W_IN), jnp.float32)
    params = init_params(kp)

    ay = interp_matrix(OUT_H, Hf)            # (360, 6)
    ax = interp_matrix(OUT_W, Wf)            # (640, 6)
    axT = ax.T                               # (6, 640)
    # Block-diagonal height-interp matrix matching the kernel's (y, c)-ordered
    # intermediate rows:  ay_blk[c*360 + oy, y*3 + c] = ay[oy, y].
    ay_blk = jnp.einsum("oh,cd->cohd", ay, jnp.eye(3, dtype=jnp.float32))
    ay_blk = ay_blk.reshape(3 * OUT_H, Hf * 3)   # (1080, 18)

    out = bgnet_forward(x, params, axT, ay_blk)
    out = jax.block_until_ready(out)
    assert out.shape == (1, 3, OUT_H, OUT_W), out.shape

    ref = reference_forward(x, params, ay, axT)
    max_err = float(jnp.max(jnp.abs(out - ref)))
    assert jnp.allclose(out, ref, atol=1e-2, rtol=1e-2), max_err

    print("KERNEL_OK")
</pallas_src>

<mosaic_0001>
module attributes {stable_mosaic.version = 11 : i64} {
  func.func @bgnet_fused_kernel(%arg0: i32, %arg1: memref<34x256xbf16, #tpu.memory_space<vmem>>, %arg2: memref<128x306xbf16, #tpu.memory_space<vmem>>, %arg3: memref<128x1xf32, #tpu.memory_space<vmem>>, %arg4: memref<128x1152xbf16, #tpu.memory_space<vmem>>, %arg5: memref<128x1xf32, #tpu.memory_space<vmem>>, %arg6: memref<96x1152xbf16, #tpu.memory_space<vmem>>, %arg7: memref<96x1xf32, #tpu.memory_space<vmem>>, %arg8: memref<64x864xbf16, #tpu.memory_space<vmem>>, %arg9: memref<64x1xf32, #tpu.memory_space<vmem>>, %arg10: memref<3x576xbf16, #tpu.memory_space<vmem>>, %arg11: memref<3x1xf32, #tpu.memory_space<vmem>>, %arg12: memref<6x640xbf16, #tpu.memory_space<vmem>>, %arg13: memref<216x18xbf16, #tpu.memory_space<vmem>>, %arg14: memref<216x640xf32, #tpu.memory_space<vmem>>, %arg15: memref<18x640xbf16, #tpu.memory_space<vmem>>) attributes {dimension_semantics = [#tpu.dimension_semantics<arbitrary>], iteration_bounds = array<i64: 5>, scalar_prefetch = 0 : i64, scratch_operands = 1 : i64, tpu.core_type = #tpu.core_type<tc>, window_params = [{pipeline_mode = #tpu.pipeline_mode<synchronous>, transform_indices = @transform_0, window_bounds = array<i64: 34, 256>}, {pipeline_mode = #tpu.pipeline_mode<synchronous>, transform_indices = @transform_1, window_bounds = array<i64: 128, 306>}, {pipeline_mode = #tpu.pipeline_mode<synchronous>, transform_indices = @transform_2, window_bounds = array<i64: 128, 1>}, {pipeline_mode = #tpu.pipeline_mode<synchronous>, transform_indices = @transform_3, window_bounds = array<i64: 128, 1152>}, {pipeline_mode = #tpu.pipeline_mode<synchronous>, transform_indices = @transform_4, window_bounds = array<i64: 128, 1>}, {pipeline_mode = #tpu.pipeline_mode<synchronous>, transform_indices = @transform_5, window_bounds = array<i64: 96, 1152>}, {pipeline_mode = #tpu.pipeline_mode<synchronous>, transform_indices = @transform_6, window_bounds = array<i64: 96, 1>}, {pipeline_mode = #tpu.pipeline_mode<synchronous>, transform_indices = @transform_7, window_bounds = array<i64: 64, 864>}, {pipeline_mode = #tpu.pipeline_mode<synchronous>, transform_indices = @transform_8, window_bounds = array<i64: 64, 1>}, {pipeline_mode = #tpu.pipeline_mode<synchronous>, transform_indices = @transform_9, window_bounds = array<i64: 3, 576>}, {pipeline_mode = #tpu.pipeline_mode<synchronous>, transform_indices = @transform_10, window_bounds = array<i64: 3, 1>}, {pipeline_mode = #tpu.pipeline_mode<synchronous>, transform_indices = @transform_11, window_bounds = array<i64: 6, 640>}, {transform_indices = @transform_12, window_bounds = array<i64: 216, 18>}, {transform_indices = @transform_13, window_bounds = array<i64: 216, 640>}]} {
    %c0_i32 = arith.constant 0 : i32
    %0 = arith.cmpi eq, %arg0, %c0_i32 : i32
    %1 = arith.extui %0 : i1 to i32
    %c0_i32_0 = arith.constant 0 : i32
    %2 = arith.cmpi ne, %1, %c0_i32_0 : i32
    scf.if %2 {
      %c0_6 = arith.constant 0 : index
      %c0_7 = arith.constant 0 : index
      %7 = vector.load %arg1[%c0_6, %c0_7] : memref<34x256xbf16, #tpu.memory_space<vmem>>, vector<34x256xbf16>
      %8 = vector.extract_strided_slice %7 {offsets = [0, 0], sizes = [34, 222], strides = [1, 1]} : vector<34x256xbf16> to vector<34x222xbf16>
      %9 = vector.extract_strided_slice %7 {offsets = [0, 1], sizes = [34, 222], strides = [1, 1]} : vector<34x256xbf16> to vector<34x222xbf16>
      %10 = vector.extract_strided_slice %7 {offsets = [0, 2], sizes = [34, 222], strides = [1, 1]} : vector<34x256xbf16> to vector<34x222xbf16>
      %11 = vector.extract_strided_slice %7 {offsets = [0, 16], sizes = [34, 222], strides = [1, 1]} : vector<34x256xbf16> to vector<34x222xbf16>
      %12 = vector.extract_strided_slice %7 {offsets = [0, 17], sizes = [34, 222], strides = [1, 1]} : vector<34x256xbf16> to vector<34x222xbf16>
      %13 = vector.extract_strided_slice %7 {offsets = [0, 18], sizes = [34, 222], strides = [1, 1]} : vector<34x256xbf16> to vector<34x222xbf16>
      %14 = vector.extract_strided_slice %7 {offsets = [0, 32], sizes = [34, 222], strides = [1, 1]} : vector<34x256xbf16> to vector<34x222xbf16>
      %15 = vector.extract_strided_slice %7 {offsets = [0, 33], sizes = [34, 222], strides = [1, 1]} : vector<34x256xbf16> to vector<34x222xbf16>
      %16 = vector.extract_strided_slice %7 {offsets = [0, 34], sizes = [34, 222], strides = [1, 1]} : vector<34x256xbf16> to vector<34x222xbf16>
      %17 = tpu.concatenate %8, %9, %10, %11, %12, %13, %14, %15, %16 in 0 : vector<34x222xbf16>, vector<34x222xbf16>, vector<34x222xbf16>, vector<34x222xbf16>, vector<34x222xbf16>, vector<34x222xbf16>, vector<34x222xbf16>, vector<34x222xbf16>, vector<34x222xbf16> -> vector<306x222xbf16>
      %c0_8 = arith.constant 0 : index
      %c0_9 = arith.constant 0 : index
      %18 = vector.load %arg2[%c0_8, %c0_9] : memref<128x306xbf16, #tpu.memory_space<vmem>>, vector<128x306xbf16>
      %cst_10 = arith.constant dense<0.000000e+00> : vector<128x222xf32>
      %19 = tpu.matmul %18, %17, %cst_10 {dimension_numbers = #tpu.dot_dimension_numbers<[1], [0], [0], [1], [0, 0, 1, 1], [], []>} : vector<128x306xbf16>, vector<306x222xbf16>, vector<128x222xf32> -> vector<128x222xf32>
      %c0_11 = arith.constant 0 : index
      %c0_12 = arith.constant 0 : index
      %20 = vector.load %arg3[%c0_11, %c0_12] : memref<128x1xf32, #tpu.memory_space<vmem>>, vector<128x1xf32>
      %21 = vector.broadcast %20 : vector<128x1xf32> to vector<128x222xf32>
      %22 = arith.addf %19, %21 : vector<128x222xf32>
      %cst_13 = arith.constant 0.000000e+00 : f32
      %23 = vector.broadcast %cst_13 : f32 to vector<128x222xf32>
      %24 = arith.cmpf oge, %22, %23 : vector<128x222xf32>
      %cst_14 = arith.constant 0.00999999977 : f32
      %25 = vector.broadcast %cst_14 : f32 to vector<128x222xf32>
      %26 = arith.mulf %25, %22 : vector<128x222xf32>
      %27 = arith.select %24, %22, %26 : vector<128x222xi1>, vector<128x222xf32>
      %28 = arith.truncf %27 : vector<128x222xf32> to vector<128x222xbf16>
      %29 = vector.extract_strided_slice %28 {offsets = [0, 0], sizes = [128, 188], strides = [1, 1]} : vector<128x222xbf16> to vector<128x188xbf16>
      %30 = vector.extract_strided_slice %28 {offsets = [0, 1], sizes = [128, 188], strides = [1, 1]} : vector<128x222xbf16> to vector<128x188xbf16>
      %31 = vector.extract_strided_slice %28 {offsets = [0, 2], sizes = [128, 188], strides = [1, 1]} : vector<128x222xbf16> to vector<128x188xbf16>
      %32 = vector.extract_strided_slice %28 {offsets = [0, 16], sizes = [128, 188], strides = [1, 1]} : vector<128x222xbf16> to vector<128x188xbf16>
      %33 = vector.extract_strided_slice %28 {offsets = [0, 17], sizes = [128, 188], strides = [1, 1]} : vector<128x222xbf16> to vector<128x188xbf16>
      %34 = vector.extract_strided_slice %28 {offsets = [0, 18], sizes = [128, 188], strides = [1, 1]} : vector<128x222xbf16> to vector<128x188xbf16>
      %35 = vector.extract_strided_slice %28 {offsets = [0, 32], sizes = [128, 188], strides = [1, 1]} : vector<128x222xbf16> to vector<128x188xbf16>
      %36 = vector.extract_strided_slice %28 {offsets = [0, 33], sizes = [128, 188], strides = [1, 1]} : vector<128x222xbf16> to vector<128x188xbf16>
      %37 = vector.extract_strided_slice %28 {offsets = [0, 34], sizes = [128, 188], strides = [1, 1]} : vector<128x222xbf16> to vector<128x188xbf16>
      %38 = tpu.concatenate %29, %30, %31, %32, %33, %34, %35, %36, %37 in 0 : vector<128x188xbf16>, vector<128x188xbf16>, vector<128x188xbf16>, vector<128x188xbf16>, vector<128x188xbf16>, vector<128x188xbf16>, vector<128x188xbf16>, vector<128x188xbf16>, vector<128x188xbf16> -> vector<1152x188xbf16>
      %c0_15 = arith.constant 0 : index
      %c0_16 = arith.constant 0 : index
      %39 = vector.load %arg4[%c0_15, %c0_16] : memref<128x1152xbf16, #tpu.memory_space<vmem>>, vector<128x1152xbf16>
      %cst_17 = arith.constant dense<0.000000e+00> : vector<128x188xf32>
      %40 = tpu.matmul %39, %38, %cst_17 {dimension_numbers = #tpu.dot_dimension_numbers<[1], [0], [0], [1], [0, 0, 1, 1], [], []>} : vector<128x1152xbf16>, vector<1152x188xbf16>, vector<128x188xf32> -> vector<128x188xf32>
      %c0_18 = arith.constant 0 : index
      %c0_19 = arith.constant 0 : index
      %41 = vector.load %arg5[%c0_18, %c0_19] : memref<128x1xf32, #tpu.memory_space<vmem>>, vector<128x1xf32>
      %42 = vector.broadcast %41 : vector<128x1xf32> to vector<128x188xf32>
      %43 = arith.addf %40, %42 : vector<128x188xf32>
      %cst_20 = arith.constant 0.000000e+00 : f32
      %44 = vector.broadcast %cst_20 : f32 to vector<128x188xf32>
      %45 = arith.cmpf oge, %43, %44 : vector<128x188xf32>
      %cst_21 = arith.constant 0.00999999977 : f32
      %46 = vector.broadcast %cst_21 : f32 to vector<128x188xf32>
      %47 = arith.mulf %46, %43 : vector<128x188xf32>
      %48 = arith.select %45, %43, %47 : vector<128x188xi1>, vector<128x188xf32>
      %49 = arith.truncf %48 : vector<128x188xf32> to vector<128x188xbf16>
      %50 = vector.extract_strided_slice %49 {offsets = [0, 0], sizes = [128, 154], strides = [1, 1]} : vector<128x188xbf16> to vector<128x154xbf16>
      %51 = vector.extract_strided_slice %49 {offsets = [0, 1], sizes = [128, 154], strides = [1, 1]} : vector<128x188xbf16> to vector<128x154xbf16>
      %52 = vector.extract_strided_slice %49 {offsets = [0, 2], sizes = [128, 154], strides = [1, 1]} : vector<128x188xbf16> to vector<128x154xbf16>
      %53 = vector.extract_strided_slice %49 {offsets = [0, 16], sizes = [128, 154], strides = [1, 1]} : vector<128x188xbf16> to vector<128x154xbf16>
      %54 = vector.extract_strided_slice %49 {offsets = [0, 17], sizes = [128, 154], strides = [1, 1]} : vector<128x188xbf16> to vector<128x154xbf16>
      %55 = vector.extract_strided_slice %49 {offsets = [0, 18], sizes = [128, 154], strides = [1, 1]} : vector<128x188xbf16> to vector<128x154xbf16>
      %56 = vector.extract_strided_slice %49 {offsets = [0, 32], sizes = [128, 154], strides = [1, 1]} : vector<128x188xbf16> to vector<128x154xbf16>
      %57 = vector.extract_strided_slice %49 {offsets = [0, 33], sizes = [128, 154], strides = [1, 1]} : vector<128x188xbf16> to vector<128x154xbf16>
      %58 = vector.extract_strided_slice %49 {offsets = [0, 34], sizes = [128, 154], strides = [1, 1]} : vector<128x188xbf16> to vector<128x154xbf16>
      %59 = tpu.concatenate %50, %51, %52, %53, %54, %55, %56, %57, %58 in 0 : vector<128x154xbf16>, vector<128x154xbf16>, vector<128x154xbf16>, vector<128x154xbf16>, vector<128x154xbf16>, vector<128x154xbf16>, vector<128x154xbf16>, vector<128x154xbf16>, vector<128x154xbf16> -> vector<1152x154xbf16>
      %c0_22 = arith.constant 0 : index
      %c0_23 = arith.constant 0 : index
      %60 = vector.load %arg6[%c0_22, %c0_23] : memref<96x1152xbf16, #tpu.memory_space<vmem>>, vector<96x1152xbf16>
      %cst_24 = arith.constant dense<0.000000e+00> : vector<96x154xf32>
      %61 = tpu.matmul %60, %59, %cst_24 {dimension_numbers = #tpu.dot_dimension_numbers<[1], [0], [0], [1], [0, 0, 1, 1], [], []>} : vector<96x1152xbf16>, vector<1152x154xbf16>, vector<96x154xf32> -> vector<96x154xf32>
      %c0_25 = arith.constant 0 : index
      %c0_26 = arith.constant 0 : index
      %62 = vector.load %arg7[%c0_25, %c0_26] : memref<96x1xf32, #tpu.memory_space<vmem>>, vector<96x1xf32>
      %63 = vector.broadcast %62 : vector<96x1xf32> to vector<96x154xf32>
      %64 = arith.addf %61, %63 : vector<96x154xf32>
      %cst_27 = arith.constant 0.000000e+00 : f32
      %65 = vector.broadcast %cst_27 : f32 to vector<96x154xf32>
      %66 = arith.cmpf oge, %64, %65 : vector<96x154xf32>
      %cst_28 = arith.constant 0.00999999977 : f32
      %67 = vector.broadcast %cst_28 : f32 to vector<96x154xf32>
      %68 = arith.mulf %67, %64 : vector<96x154xf32>
      %69 = arith.select %66, %64, %68 : vector<96x154xi1>, vector<96x154xf32>
      %70 = arith.truncf %69 : vector<96x154xf32> to vector<96x154xbf16>
      %71 = vector.extract_strided_slice %70 {offsets = [0, 0], sizes = [96, 120], strides = [1, 1]} : vector<96x154xbf16> to vector<96x120xbf16>
      %72 = vector.extract_strided_slice %70 {offsets = [0, 1], sizes = [96, 120], strides = [1, 1]} : vector<96x154xbf16> to vector<96x120xbf16>
      %73 = vector.extract_strided_slice %70 {offsets = [0, 2], sizes = [96, 120], strides = [1, 1]} : vector<96x154xbf16> to vector<96x120xbf16>
      %74 = vector.extract_strided_slice %70 {offsets = [0, 16], sizes = [96, 120], strides = [1, 1]} : vector<96x154xbf16> to vector<96x120xbf16>
      %75 = vector.extract_strided_slice %70 {offsets = [0, 17], sizes = [96, 120], strides = [1, 1]} : vector<96x154xbf16> to vector<96x120xbf16>
      %76 = vector.extract_strided_slice %70 {offsets = [0, 18], sizes = [96, 120], strides = [1, 1]} : vector<96x154xbf16> to vector<96x120xbf16>
      %77 = vector.extract_strided_slice %70 {offsets = [0, 32], sizes = [96, 120], strides = [1, 1]} : vector<96x154xbf16> to vector<96x120xbf16>
      %78 = vector.extract_strided_slice %70 {offsets = [0, 33], sizes = [96, 120], strides = [1, 1]} : vector<96x154xbf16> to vector<96x120xbf16>
      %79 = vector.extract_strided_slice %70 {offsets = [0, 34], sizes = [96, 120], strides = [1, 1]} : vector<96x154xbf16> to vector<96x120xbf16>
      %80 = tpu.concatenate %71, %72, %73, %74, %75, %76, %77, %78, %79 in 0 : vector<96x120xbf16>, vector<96x120xbf16>, vector<96x120xbf16>, vector<96x120xbf16>, vector<96x120xbf16>, vector<96x120xbf16>, vector<96x120xbf16>, vector<96x120xbf16>, vector<96x120xbf16> -> vector<864x120xbf16>
      %c0_29 = arith.constant 0 : index
      %c0_30 = arith.constant 0 : index
      %81 = vector.load %arg8[%c0_29, %c0_30] : memref<64x864xbf16, #tpu.memory_space<vmem>>, vector<64x864xbf16>
      %cst_31 = arith.constant dense<0.000000e+00> : vector<64x120xf32>
      %82 = tpu.matmul %81, %80, %cst_31 {dimension_numbers = #tpu.dot_dimension_numbers<[1], [0], [0], [1], [0, 0, 1, 1], [], []>} : vector<64x864xbf16>, vector<864x120xbf16>, vector<64x120xf32> -> vector<64x120xf32>
      %c0_32 = arith.constant 0 : index
      %c0_33 = arith.constant 0 : index
      %83 = vector.load %arg9[%c0_32, %c0_33] : memref<64x1xf32, #tpu.memory_space<vmem>>, vector<64x1xf32>
      %84 = vector.broadcast %83 : vector<64x1xf32> to vector<64x120xf32>
      %85 = arith.addf %82, %84 : vector<64x120xf32>
      %cst_34 = arith.constant 0.000000e+00 : f32
      %86 = vector.broadcast %cst_34 : f32 to vector<64x120xf32>
      %87 = arith.cmpf oge, %85, %86 : vector<64x120xf32>
      %cst_35 = arith.constant 0.00999999977 : f32
      %88 = vector.broadcast %cst_35 : f32 to vector<64x120xf32>
      %89 = arith.mulf %88, %85 : vector<64x120xf32>
      %90 = arith.select %87, %85, %89 : vector<64x120xi1>, vector<64x120xf32>
      %91 = arith.truncf %90 : vector<64x120xf32> to vector<64x120xbf16>
      %92 = vector.extract_strided_slice %91 {offsets = [0, 0], sizes = [64, 86], strides = [1, 1]} : vector<64x120xbf16> to vector<64x86xbf16>
      %93 = vector.extract_strided_slice %91 {offsets = [0, 1], sizes = [64, 86], strides = [1, 1]} : vector<64x120xbf16> to vector<64x86xbf16>
      %94 = vector.extract_strided_slice %91 {offsets = [0, 2], sizes = [64, 86], strides = [1, 1]} : vector<64x120xbf16> to vector<64x86xbf16>
      %95 = vector.extract_strided_slice %91 {offsets = [0, 16], sizes = [64, 86], strides = [1, 1]} : vector<64x120xbf16> to vector<64x86xbf16>
      %96 = vector.extract_strided_slice %91 {offsets = [0, 17], sizes = [64, 86], strides = [1, 1]} : vector<64x120xbf16> to vector<64x86xbf16>
      %97 = vector.extract_strided_slice %91 {offsets = [0, 18], sizes = [64, 86], strides = [1, 1]} : vector<64x120xbf16> to vector<64x86xbf16>
      %98 = vector.extract_strided_slice %91 {offsets = [0, 32], sizes = [64, 86], strides = [1, 1]} : vector<64x120xbf16> to vector<64x86xbf16>
      %99 = vector.extract_strided_slice %91 {offsets = [0, 33], sizes = [64, 86], strides = [1, 1]} : vector<64x120xbf16> to vector<64x86xbf16>
      %100 = vector.extract_strided_slice %91 {offsets = [0, 34], sizes = [64, 86], strides = [1, 1]} : vector<64x120xbf16> to vector<64x86xbf16>
      %101 = tpu.concatenate %92, %93, %94, %95, %96, %97, %98, %99, %100 in 0 : vector<64x86xbf16>, vector<64x86xbf16>, vector<64x86xbf16>, vector<64x86xbf16>, vector<64x86xbf16>, vector<64x86xbf16>, vector<64x86xbf16>, vector<64x86xbf16>, vector<64x86xbf16> -> vector<576x86xbf16>
      %c0_36 = arith.constant 0 : index
      %c0_37 = arith.constant 0 : index
      %102 = vector.load %arg10[%c0_36, %c0_37] : memref<3x576xbf16, #tpu.memory_space<vmem>>, vector<3x576xbf16>
      %cst_38 = arith.constant dense<0.000000e+00> : vector<3x86xf32>
      %103 = tpu.matmul %102, %101, %cst_38 {dimension_numbers = #tpu.dot_dimension_numbers<[1], [0], [0], [1], [0, 0, 1, 1], [], []>} : vector<3x576xbf16>, vector<576x86xbf16>, vector<3x86xf32> -> vector<3x86xf32>
      %c0_39 = arith.constant 0 : index
      %c0_40 = arith.constant 0 : index
      %104 = vector.load %arg11[%c0_39, %c0_40] : memref<3x1xf32, #tpu.memory_space<vmem>>, vector<3x1xf32>
      %105 = vector.broadcast %104 : vector<3x1xf32> to vector<3x86xf32>
      %106 = arith.addf %103, %105 : vector<3x86xf32>
      %107 = vector.extract_strided_slice %106 {offsets = [0, 0], sizes = [3, 6], strides = [1, 1]} : vector<3x86xf32> to vector<3x6xf32>
      %108 = vector.extract_strided_slice %106 {offsets = [0, 16], sizes = [3, 6], strides = [1, 1]} : vector<3x86xf32> to vector<3x6xf32>
      %109 = vector.extract_strided_slice %106 {offsets = [0, 32], sizes = [3, 6], strides = [1, 1]} : vector<3x86xf32> to vector<3x6xf32>
      %110 = vector.extract_strided_slice %106 {offsets = [0, 48], sizes = [3, 6], strides = [1, 1]} : vector<3x86xf32> to vector<3x6xf32>
      %111 = vector.extract_strided_slice %106 {offsets = [0, 64], sizes = [3, 6], strides = [1, 1]} : vector<3x86xf32> to vector<3x6xf32>
      %112 = vector.extract_strided_slice %106 {offsets = [0, 80], sizes = [3, 6], strides = [1, 1]} : vector<3x86xf32> to vector<3x6xf32>
      %113 = tpu.concatenate %107, %108, %109, %110, %111, %112 in 0 : vector<3x6xf32>, vector<3x6xf32>, vector<3x6xf32>, vector<3x6xf32>, vector<3x6xf32>, vector<3x6xf32> -> vector<18x6xf32>
      %114 = arith.truncf %113 : vector<18x6xf32> to vector<18x6xbf16>
      %c0_41 = arith.constant 0 : index
      %c0_42 = arith.constant 0 : index
      %115 = vector.load %arg12[%c0_41, %c0_42] : memref<6x640xbf16, #tpu.memory_space<vmem>>, vector<6x640xbf16>
      %cst_43 = arith.constant dense<0.000000e+00> : vector<18x640xf32>
      %116 = tpu.matmul %114, %115, %cst_43 {dimension_numbers = #tpu.dot_dimension_numbers<[1], [0], [0], [1], [0, 0, 1, 1], [], []>} : vector<18x6xbf16>, vector<6x640xbf16>, vector<18x640xf32> -> vector<18x640xf32>
      %117 = arith.truncf %116 : vector<18x640xf32> to vector<18x640xbf16>
      %c0_44 = arith.constant 0 : index
      %c0_45 = arith.constant 0 : index
      %118 = vector.load %arg15[%c0_44, %c0_45] : memref<18x640xbf16, #tpu.memory_space<vmem>>, vector<18x640xbf16>
      tpu.vector_store %arg15[%c0_44, %c0_45], %117 {strides = array<i32>} : memref<18x640xbf16, #tpu.memory_space<vmem>>, vector<18x640xbf16>,
    } else {
    }
    %c0 = arith.constant 0 : index
    %c0_1 = arith.constant 0 : index
    %3 = vector.load %arg13[%c0, %c0_1] : memref<216x18xbf16, #tpu.memory_space<vmem>>, vector<216x18xbf16>
    %c0_2 = arith.constant 0 : index
    %c0_3 = arith.constant 0 : index
    %4 = vector.load %arg15[%c0_2, %c0_3] : memref<18x640xbf16, #tpu.memory_space<vmem>>, vector<18x640xbf16>
    %cst = arith.constant dense<0.000000e+00> : vector<216x640xf32>
    %5 = tpu.matmul %3, %4, %cst {dimension_numbers = #tpu.dot_dimension_numbers<[1], [0], [0], [1], [0, 0, 1, 1], [], []>} : vector<216x18xbf16>, vector<18x640xbf16>, vector<216x640xf32> -> vector<216x640xf32>
    %c0_4 = arith.constant 0 : index
    %c0_5 = arith.constant 0 : index
    %6 = vector.load %arg14[%c0_4, %c0_5] : memref<216x640xf32, #tpu.memory_space<vmem>>, vector<216x640xf32>
    tpu.vector_store %arg14[%c0_4, %c0_5], %5 {strides = array<i32>} : memref<216x640xf32, #tpu.memory_space<vmem>>, vector<216x640xf32>,
    return
  }
  func.func @transform_0(%arg0: i32) -> (i32, i32) {
    %c0_i32 = arith.constant 0 : i32
    %c0_i32_0 = arith.constant 0 : i32
    %c0_i32_1 = arith.constant 0 : i32
    return %c0_i32, %c0_i32_0 : i32, i32
  }
  func.func @transform_1(%arg0: i32) -> (i32, i32) {
    %c0_i32 = arith.constant 0 : i32
    %c0_i32_0 = arith.constant 0 : i32
    %c0_i32_1 = arith.constant 0 : i32
    return %c0_i32, %c0_i32_0 : i32, i32
  }
  func.func @transform_2(%arg0: i32) -> (i32, i32) {
    %c0_i32 = arith.constant 0 : i32
    %c0_i32_0 = arith.constant 0 : i32
    %c0_i32_1 = arith.constant 0 : i32
    return %c0_i32, %c0_i32_0 : i32, i32
  }
  func.func @transform_3(%arg0: i32) -> (i32, i32) {
    %c0_i32 = arith.constant 0 : i32
    %c0_i32_0 = arith.constant 0 : i32
    %c0_i32_1 = arith.constant 0 : i32
    return %c0_i32, %c0_i32_0 : i32, i32
  }
  func.func @transform_4(%arg0: i32) -> (i32, i32) {
    %c0_i32 = arith.constant 0 : i32
    %c0_i32_0 = arith.constant 0 : i32
    %c0_i32_1 = arith.constant 0 : i32
    return %c0_i32, %c0_i32_0 : i32, i32
  }
  func.func @transform_5(%arg0: i32) -> (i32, i32) {
    %c0_i32 = arith.constant 0 : i32
    %c0_i32_0 = arith.constant 0 : i32
    %c0_i32_1 = arith.constant 0 : i32
    return %c0_i32, %c0_i32_0 : i32, i32
  }
  func.func @transform_6(%arg0: i32) -> (i32, i32) {
    %c0_i32 = arith.constant 0 : i32
    %c0_i32_0 = arith.constant 0 : i32
    %c0_i32_1 = arith.constant 0 : i32
    return %c0_i32, %c0_i32_0 : i32, i32
  }
  func.func @transform_7(%arg0: i32) -> (i32, i32) {
    %c0_i32 = arith.constant 0 : i32
    %c0_i32_0 = arith.constant 0 : i32
    %c0_i32_1 = arith.constant 0 : i32
    return %c0_i32, %c0_i32_0 : i32, i32
  }
  func.func @transform_8(%arg0: i32) -> (i32, i32) {
    %c0_i32 = arith.constant 0 : i32
    %c0_i32_0 = arith.constant 0 : i32
    %c0_i32_1 = arith.constant 0 : i32
    return %c0_i32, %c0_i32_0 : i32, i32
  }
  func.func @transform_9(%arg0: i32) -> (i32, i32) {
    %c0_i32 = arith.constant 0 : i32
    %c0_i32_0 = arith.constant 0 : i32
    %c0_i32_1 = arith.constant 0 : i32
    return %c0_i32, %c0_i32_0 : i32, i32
  }
  func.func @transform_10(%arg0: i32) -> (i32, i32) {
    %c0_i32 = arith.constant 0 : i32
    %c0_i32_0 = arith.constant 0 : i32
    %c0_i32_1 = arith.constant 0 : i32
    return %c0_i32, %c0_i32_0 : i32, i32
  }
  func.func @transform_11(%arg0: i32) -> (i32, i32) {
    %c0_i32 = arith.constant 0 : i32
    %c0_i32_0 = arith.constant 0 : i32
    %c0_i32_1 = arith.constant 0 : i32
    return %c0_i32, %c0_i32_0 : i32, i32
  }
  func.func @transform_12(%arg0: i32) -> (i32, i32) {
    %c0_i32 = arith.constant 0 : i32
    %c0_i32_0 = arith.constant 0 : i32
    return %arg0, %c0_i32 : i32, i32
  }
  func.func @transform_13(%arg0: i32) -> (i32, i32) {
    %c0_i32 = arith.constant 0 : i32
    %c0_i32_0 = arith.constant 0 : i32
    return %arg0, %c0_i32 : i32, i32
  }
}

</mosaic_0001>

<llo_original>
// kernel: bgnet_forward.1
$region0: #{bgnet_forward.1}
  #allocation0 [shape = 'u32[]', space=smem, size = 0x4, offset = 0x4, fixed_abs, tag = 'smem constant byte address 0x4 - core index']
  #allocation1 [shape = 'u32[144,128]{1,0:T(1,128)}', space=vmem, size = 0x12000, scoped, tag = 'internal scratch']
  #allocation2 [shape = 'bf16[18,640]{1,0:T(8,128)(2,1)}', space=vmem, size = 0x7800, scoped, tag = 'scratch operand']
  %s0 = inlined_call_operand.vmem [shape: bf16[34,256], index: 0, kind: input, shape index: {}]
  %s1 = inlined_call_operand.vmem [shape: bf16[128,306], index: 1, kind: input, shape index: {}]
  %s2 = inlined_call_operand.vmem [shape: f32[128,1], index: 2, kind: input, shape index: {}]
  %s3 = inlined_call_operand.vmem [shape: bf16[128,1152], index: 3, kind: input, shape index: {}]
  %s4 = inlined_call_operand.vmem [shape: f32[128,1], index: 4, kind: input, shape index: {}]
  %s5 = inlined_call_operand.vmem [shape: bf16[96,1152], index: 5, kind: input, shape index: {}]
  %s6 = inlined_call_operand.vmem [shape: f32[96,1], index: 6, kind: input, shape index: {}]
  %s7 = inlined_call_operand.vmem [shape: bf16[64,864], index: 7, kind: input, shape index: {}]
  %s8 = inlined_call_operand.vmem [shape: f32[64,1], index: 8, kind: input, shape index: {}]
  %s9 = inlined_call_operand.vmem [shape: bf16[3,576], index: 9, kind: input, shape index: {}]
  %s10 = inlined_call_operand.vmem [shape: f32[3,1], index: 10, kind: input, shape index: {}]
  %s11 = inlined_call_operand.vmem [shape: bf16[6,640], index: 11, kind: input, shape index: {}]
  %s12 = inlined_call_operand.vmem [shape: bf16[1080,18], index: 12, kind: input, shape index: {}]
  %s13 = inlined_call_operand.hbm [shape: f32[1080,640], index: 13, kind: output, shape index: {}]
  %s14 = sld [smem:[#allocation0]]
  $region89: #{bgnet_forward.1} parent=0
    _
  %s16 = ssub.s32 1, %s14
  %s17 = scalar_select 0, %s16, %s14
  $region1: #{bgnet_forward.1} parent=0
    #allocation3 [shape = 'u8[1105920]{0}', space=vmem, size = 0x10e000, scoped, tag = 'output window, operand 0']
    #allocation4 [shape = 's32[2]{0}', space=sflag, size = 0x8, scoped, tag = 'scoped memory for bgnet_forward.1']
    %18 = vsyncpa [#allocation4], 0
    %s19 = scalar_lea.sflag [#allocation4], 1
    %20 = vsyncpa %s19, 0
    loop: start=0, step=1, limit=7
    $region2: #{bgnet_forward.1} parent=1 // loop_pre_header
      _
    $region3: #{bgnet_forward.1} parent=1 // loop_header
      %s22 = sphi 0, %s26
      %p23 = scmp.ge.s32.totalorder %s22, 7
      %s30 = sphi 0, %s30
      %s32 = sphi 0, %s30
      %s33 = sphi 0, %s32
      %s47 = sphi 0, %s33
      %s51 = sphi 0, %s51
      %s53 = sphi 0, %s51
      %s54 = sphi 0, %s53
      %s68 = sphi 0, %s54
      %s72 = sphi 0, %s72
      %s74 = sphi 0, %s72
      %s75 = sphi 0, %s74
      %s89 = sphi 0, %s75
      %s93 = sphi 0, %s93
      %s95 = sphi 0, %s93
      %s96 = sphi 0, %s95
      %s110 = sphi 0, %s96
      %s114 = sphi 0, %s114
      %s116 = sphi 0, %s114
      %s117 = sphi 0, %s116
      %s131 = sphi 0, %s117
      %s135 = sphi 0, %s135
      %s137 = sphi 0, %s135
      %s138 = sphi 0, %s137
      %s152 = sphi 0, %s138
      %s156 = sphi 0, %s156
      %s158 = sphi 0, %s156
      %s159 = sphi 0, %s158
      %s173 = sphi 0, %s159
      %s177 = sphi 0, %s177
      %s179 = sphi 0, %s177
      %s180 = sphi 0, %s179
      %s194 = sphi 0, %s180
      %s198 = sphi 0, %s198
      %s200 = sphi 0, %s198
      %s201 = sphi 0, %s200
      %s215 = sphi 0, %s201
      %s219 = sphi 0, %s219
      %s221 = sphi 0, %s219
      %s222 = sphi 0, %s221
      %s236 = sphi 0, %s222
      %s240 = sphi 0, %s240
      %s242 = sphi 0, %s240
      %s243 = sphi 0, %s242
      %s257 = sphi 0, %s243
      %s261 = sphi 0, %s261
      %s263 = sphi 0, %s261
      %s264 = sphi 0, %s263
      %s278 = sphi 0, %s264
      %s284 = sphi 0, %s286
      %s287 = sphi 0, %s284
      %s288 = sphi 0, %s287
      %s304 = sphi 0, %s288
      %s310 = sphi 0, %s312
      %s313 = sphi 0, %s310
      %s314 = sphi 0, %s313
      %s330 = sphi 0, %s314
    $region4: #{bgnet_forward.1} parent=1 // loop_header_branch
      %25 = sbr.rel (%p23) target = $region8
    $region5: #{bgnet_forward.1} parent=1 // loop_body
      %s27 = ssub.s32 %s22, 1
      %s28 = ssub.s32 %s22, 2
      %s29 = sadd.s32 %s22, 1
      %s31 = sadd.s32 %s30, 1
      %p34 = scmp.eq.s32.totalorder %s22, 4
      %p35 = scmp.ne.s32.totalorder %s30, %s32
      %p36 = scmp.eq.s32.totalorder %s22, 0
      %p37 = por %p35, %p36
      %p38 = scmp.ne.s32.totalorder %s30, %s32
      %p39 = scmp.eq.s32.totalorder %s27, 4
      %p40 = por %p38, %p39
      %p41 = scmp.ne.s32.totalorder %s32, %s33
      %p42 = scmp.eq.s32.totalorder %s27, 0
      %p43 = por %p41, %p42
      %p44 = scmp.ne.s32.totalorder %s32, %s33
      %p45 = scmp.eq.s32.totalorder %s28, 4
      %p46 = por %p44, %p45
      %p48 = scmp.ne.s32.totalorder %s33, %s47
      %p49 = scmp.eq.s32.totalorder %s28, 0
      %p50 = por %p48, %p49
      %s52 = sadd.s32 %s51, 1
      %p55 = scmp.eq.s32.totalorder %s22, 4
      %p56 = scmp.ne.s32.totalorder %s51, %s53
      %p57 = scmp.eq.s32.totalorder %s22, 0
      %p58 = por %p56, %p57
      %p59 = scmp.ne.s32.totalorder %s51, %s53
      %p60 = scmp.eq.s32.totalorder %s27, 4
      %p61 = por %p59, %p60
      %p62 = scmp.ne.s32.totalorder %s53, %s54
      %p63 = scmp.eq.s32.totalorder %s27, 0
      %p64 = por %p62, %p63
      %p65 = scmp.ne.s32.totalorder %s53, %s54
      %p66 = scmp.eq.s32.totalorder %s28, 4
      %p67 = por %p65, %p66
      %p69 = scmp.ne.s32.totalorder %s54, %s68
      %p70 = scmp.eq.s32.totalorder %s28, 0
      %p71 = por %p69, %p70
      %s73 = sadd.s32 %s72, 1
      %p76 = scmp.eq.s32.totalorder %s22, 4
      %p77 = scmp.ne.s32.totalorder %s72, %s74
      %p78 = scmp.eq.s32.totalorder %s22, 0
      %p79 = por %p77, %p78
      %p80 = scmp.ne.s32.totalorder %s72, %s74
      %p81 = scmp.eq.s32.totalorder %s27, 4
      %p82 = por %p80, %p81
      %p83 = scmp.ne.s32.totalorder %s74, %s75
      %p84 = scmp.eq.s32.totalorder %s27, 0
      %p85 = por %p83, %p84
      %p86 = scmp.ne.s32.totalorder %s74, %s75
      %p87 = scmp.eq.s32.totalorder %s28, 4
      %p88 = por %p86, %p87
      %p90 = scmp.ne.s32.totalorder %s75, %s89
      %p91 = scmp.eq.s32.totalorder %s28, 0
      %p92 = por %p90, %p91
      %s94 = sadd.s32 %s93, 1
      %p97 = scmp.eq.s32.totalorder %s22, 4
      %p98 = scmp.ne.s32.totalorder %s93, %s95
      %p99 = scmp.eq.s32.totalorder %s22, 0
      %p100 = por %p98, %p99
      %p101 = scmp.ne.s32.totalorder %s93, %s95
      %p102 = scmp.eq.s32.totalorder %s27, 4
      %p103 = por %p101, %p102
      %p104 = scmp.ne.s32.totalorder %s95, %s96
      %p105 = scmp.eq.s32.totalorder %s27, 0
      %p106 = por %p104, %p105
      %p107 = scmp.ne.s32.totalorder %s95, %s96
      %p108 = scmp.eq.s32.totalorder %s28, 4
      %p109 = por %p107, %p108
      %p111 = scmp.ne.s32.totalorder %s96, %s110
      %p112 = scmp.eq.s32.totalorder %s28, 0
      %p113 = por %p111, %p112
      %s115 = sadd.s32 %s114, 1
      %p118 = scmp.eq.s32.totalorder %s22, 4
      %p119 = scmp.ne.s32.totalorder %s114, %s116
      %p120 = scmp.eq.s32.totalorder %s22, 0
      %p121 = por %p119, %p120
      %p122 = scmp.ne.s32.totalorder %s114, %s116
      %p123 = scmp.eq.s32.totalorder %s27, 4
      %p124 = por %p122, %p123
      %p125 = scmp.ne.s32.totalorder %s116, %s117
      %p126 = scmp.eq.s32.totalorder %s27, 0
      %p127 = por %p125, %p126
      %p128 = scmp.ne.s32.totalorder %s116, %s117
      %p129 = scmp.eq.s32.totalorder %s28, 4
      %p130 = por %p128, %p129
      %p132 = scmp.ne.s32.totalorder %s117, %s131
      %p133 = scmp.eq.s32.totalorder %s28, 0
      %p134 = por %p132, %p133
      %s136 = sadd.s32 %s135, 1
      %p139 = scmp.eq.s32.totalorder %s22, 4
      %p140 = scmp.ne.s32.totalorder %s135, %s137
      %p141 = scmp.eq.s32.totalorder %s22, 0
      %p142 = por %p140, %p141
      %p143 = scmp.ne.s32.totalorder %s135, %s137
      %p144 = scmp.eq.s32.totalorder %s27, 4
      %p145 = por %p143, %p144
      %p146 = scmp.ne.s32.totalorder %s137, %s138
      %p147 = scmp.eq.s32.totalorder %s27, 0
      %p148 = por %p146, %p147
      %p149 = scmp.ne.s32.totalorder %s137, %s138
      %p150 = scmp.eq.s32.totalorder %s28, 4
      %p151 = por %p149, %p150
      %p153 = scmp.ne.s32.totalorder %s138, %s152
      %p154 = scmp.eq.s32.totalorder %s28, 0
      %p155 = por %p153, %p154
      %s157 = sadd.s32 %s156, 1
      %p160 = scmp.eq.s32.totalorder %s22, 4
      %p161 = scmp.ne.s32.totalorder %s156, %s158
      %p162 = scmp.eq.s32.totalorder %s22, 0
      %p163 = por %p161, %p162
      %p164 = scmp.ne.s32.totalorder %s156, %s158
      %p165 = scmp.eq.s32.totalorder %s27, 4
      %p166 = por %p164, %p165
      %p167 = scmp.ne.s32.totalorder %s158, %s159
      %p168 = scmp.eq.s32.totalorder %s27, 0
      %p169 = por %p167, %p168
      %p170 = scmp.ne.s32.totalorder %s158, %s159
      %p171 = scmp.eq.s32.totalorder %s28, 4
      %p172 = por %p170, %p171
      %p174 = scmp.ne.s32.totalorder %s159, %s173
      %p175 = scmp.eq.s32.totalorder %s28, 0
      %p176 = por %p174, %p175
      %s178 = sadd.s32 %s177, 1
      %p181 = scmp.eq.s32.totalorder %s22, 4
      %p182 = scmp.ne.s32.totalorder %s177, %s179
      %p183 = scmp.eq.s32.totalorder %s22, 0
      %p184 = por %p182, %p183
      %p185 = scmp.ne.s32.totalorder %s177, %s179
      %p186 = scmp.eq.s32.totalorder %s27, 4
      %p187 = por %p185, %p186
      %p188 = scmp.ne.s32.totalorder %s179, %s180
      %p189 = scmp.eq.s32.totalorder %s27, 0
      %p190 = por %p188, %p189
      %p191 = scmp.ne.s32.totalorder %s179, %s180
      %p192 = scmp.eq.s32.totalorder %s28, 4
      %p193 = por %p191, %p192
      %p195 = scmp.ne.s32.totalorder %s180, %s194
      %p196 = scmp.eq.s32.totalorder %s28, 0
      %p197 = por %p195, %p196
      %s199 = sadd.s32 %s198, 1
      %p202 = scmp.eq.s32.totalorder %s22, 4
      %p203 = scmp.ne.s32.totalorder %s198, %s200
      %p204 = scmp.eq.s32.totalorder %s22, 0
      %p205 = por %p203, %p204
      %p206 = scmp.ne.s32.totalorder %s198, %s200
      %p207 = scmp.eq.s32.totalorder %s27, 4
      %p208 = por %p206, %p207
      %p209 = scmp.ne.s32.totalorder %s200, %s201
      %p210 = scmp.eq.s32.totalorder %s27, 0
      %p211 = por %p209, %p210
      %p212 = scmp.ne.s32.totalorder %s200, %s201
      %p213 = scmp.eq.s32.totalorder %s28, 4
      %p214 = por %p212, %p213
      %p216 = scmp.ne.s32.totalorder %s201, %s215
      %p217 = scmp.eq.s32.totalorder %s28, 0
      %p218 = por %p216, %p217
      %s220 = sadd.s32 %s219, 1
      %p223 = scmp.eq.s32.totalorder %s22, 4
      %p224 = scmp.ne.s32.totalorder %s219, %s221
      %p225 = scmp.eq.s32.totalorder %s22, 0
      %p226 = por %p224, %p225
      %p227 = scmp.ne.s32.totalorder %s219, %s221
      %p228 = scmp.eq.s32.totalorder %s27, 4
      %p229 = por %p227, %p228
      %p230 = scmp.ne.s32.totalorder %s221, %s222
      %p231 = scmp.eq.s32.totalorder %s27, 0
      %p232 = por %p230, %p231
      %p233 = scmp.ne.s32.totalorder %s221, %s222
      %p234 = scmp.eq.s32.totalorder %s28, 4
      %p235 = por %p233, %p234
      %p237 = scmp.ne.s32.totalorder %s222, %s236
      %p238 = scmp.eq.s32.totalorder %s28, 0
      %p239 = por %p237, %p238
      %s241 = sadd.s32 %s240, 1
      %p244 = scmp.eq.s32.totalorder %s22, 4
      %p245 = scmp.ne.s32.totalorder %s240, %s242
      %p246 = scmp.eq.s32.totalorder %s22, 0
      %p247 = por %p245, %p246
      %p248 = scmp.ne.s32.totalorder %s240, %s242
      %p249 = scmp.eq.s32.totalorder %s27, 4
      %p250 = por %p248, %p249
      %p251 = scmp.ne.s32.totalorder %s242, %s243
      %p252 = scmp.eq.s32.totalorder %s27, 0
      %p253 = por %p251, %p252
      %p254 = scmp.ne.s32.totalorder %s242, %s243
      %p255 = scmp.eq.s32.totalorder %s28, 4
      %p256 = por %p254, %p255
      %p258 = scmp.ne.s32.totalorder %s243, %s257
      %p259 = scmp.eq.s32.totalorder %s28, 0
      %p260 = por %p258, %p259
      %s262 = sadd.s32 %s261, 1
      %p265 = scmp.eq.s32.totalorder %s22, 4
      %p266 = scmp.ne.s32.totalorder %s261, %s263
      %p267 = scmp.eq.s32.totalorder %s22, 0
      %p268 = por %p266, %p267
      %p269 = scmp.ne.s32.totalorder %s261, %s263
      %p270 = scmp.eq.s32.totalorder %s27, 4
      %p271 = por %p269, %p270
      %p272 = scmp.ne.s32.totalorder %s263, %s264
      %p273 = scmp.eq.s32.totalorder %s27, 0
      %p274 = por %p272, %p273
      %p275 = scmp.ne.s32.totalorder %s263, %s264
      %p276 = scmp.eq.s32.totalorder %s28, 4
      %p277 = por %p275, %p276
      %p279 = scmp.ne.s32.totalorder %s264, %s278
      %p280 = scmp.eq.s32.totalorder %s28, 0
      %p281 = por %p279, %p280
      %s282 = ssub.s32 %s22, %s29
      %p283 = scmp.eq.s32.totalorder %s282, 0
      %s285 = sadd.s32 %s284, 1
      %s286 = scalar_select %p283, %s284, %s285
      %p289 = pneg %p283
      %p290 = scmp.eq.s32.totalorder %s22, 4
      %p291 = por %p289, %p290
      %p292 = scmp.ne.s32.totalorder %s284, %s287
      %p293 = scmp.eq.s32.totalorder %s22, 0
      %p294 = por %p292, %p293
      %p295 = scmp.ne.s32.totalorder %s284, %s287
      %p296 = scmp.eq.s32.totalorder %s27, 4
      %p297 = por %p295, %p296
      %p298 = scmp.ne.s32.totalorder %s287, %s288
      %p299 = scmp.eq.s32.totalorder %s27, 0
      %p300 = por %p298, %p299
      %p301 = scmp.ne.s32.totalorder %s287, %s288
      %p302 = scmp.eq.s32.totalorder %s28, 4
      %p303 = por %p301, %p302
      %p305 = scmp.ne.s32.totalorder %s288, %s304
      %p306 = scmp.eq.s32.totalorder %s28, 0
      %p307 = por %p305, %p306
      %s308 = ssub.s32 %s22, %s29
      %p309 = scmp.eq.s32.totalorder %s308, 0
      %s311 = sadd.s32 %s310, 1
      %s312 = scalar_select %p309, %s310, %s311
      %p315 = pneg %p309
      %p316 = scmp.eq.s32.totalorder %s22, 4
      %p317 = por %p315, %p316
      %p318 = scmp.ne.s32.totalorder %s310, %s313
      %p319 = scmp.eq.s32.totalorder %s22, 0
      %p320 = por %p318, %p319
      %p321 = scmp.ne.s32.totalorder %s310, %s313
      %p322 = scmp.eq.s32.totalorder %s27, 4
      %p323 = por %p321, %p322
      %p324 = scmp.ne.s32.totalorder %s313, %s314
      %p325 = scmp.eq.s32.totalorder %s27, 0
      %p326 = por %p324, %p325
      %p327 = scmp.ne.s32.totalorder %s313, %s314
      %p328 = scmp.eq.s32.totalorder %s28, 4
      %p329 = por %p327, %p328
      %p331 = scmp.ne.s32.totalorder %s314, %s330
      %p332 = scmp.eq.s32.totalorder %s28, 0
      %p333 = por %p331, %p332
      %p334 = scmp.le.s32.totalorder 1, %s22
      %p335 = scmp.lt.s32.totalorder %s22, 6
      %p336 = pnand %p334, %p335
      %p337 = pneg %p336
      // Predicated region
      $region9: #{bgnet_forward.1} parent=5 // pred_check
        _
      $region10: #{bgnet_forward.1} parent=5 // pred_check_branch
        %339 = sbr.rel (%p336) target = $region12
      $region11: #{bgnet_forward.1} parent=5 // pred_region
        %s340 = ssub.s32 %s22, 1
        // Predicated region
        $region13: #{bgnet_forward.1} parent=11 // pred_check
          %p341 = pneg %p43
        $region14: #{bgnet_forward.1} parent=11 // pred_check_branch
          %343 = sbr.rel (%p341) target = $region16
        $region15: #{bgnet_forward.1} parent=11 // pred_region
          _
        $region16: #{bgnet_forward.1} parent=11 // pred_fallthru
          _
        // Predicated region
        $region17: #{bgnet_forward.1} parent=11 // pred_check
          %p344 = pneg %p64
        $region18: #{bgnet_forward.1} parent=11 // pred_check_branch
          %346 = sbr.rel (%p344) target = $region20
        $region19: #{bgnet_forward.1} parent=11 // pred_region
          _
        $region20: #{bgnet_forward.1} parent=11 // pred_fallthru
          _
        // Predicated region
        $region21: #{bgnet_forward.1} parent=11 // pred_check
          %p347 = pneg %p85
        $region22: #{bgnet_forward.1} parent=11 // pred_check_branch
          %349 = sbr.rel (%p347) target = $region24
        $region23: #{bgnet_forward.1} parent=11 // pred_region
          _
        $region24: #{bgnet_forward.1} parent=11 // pred_fallthru
          _
        // Predicated region
        $region25: #{bgnet_forward.1} parent=11 // pred_check
          %p350 = pneg %p106
        $region26: #{bgnet_forward.1} parent=11 // pred_check_branch
          %352 = sbr.rel (%p350) target = $region28
        $region27: #{bgnet_forward.1} parent=11 // pred_region
          _
        $region28: #{bgnet_forward.1} parent=11 // pred_fallthru
          _
        // Predicated region
        $region29: #{bgnet_forward.1} parent=11 // pred_check
          %p353 = pneg %p127
        $region30: #{bgnet_forward.1} parent=11 // pred_check_branch
          %355 = sbr.rel (%p353) target = $region32
        $region31: #{bgnet_forward.1} parent=11 // pred_region
          _
        $region32: #{bgnet_forward.1} parent=11 // pred_fallthru
          _
        // Predicated region
        $region33: #{bgnet_forward.1} parent=11 // pred_check
          %p356 = pneg %p148
        $region34: #{bgnet_forward.1} parent=11 // pred_check_branch
          %358 = sbr.rel (%p356) target = $region36
        $region35: #{bgnet_forward.1} parent=11 // pred_region
          _
        $region36: #{bgnet_forward.1} parent=11 // pred_fallthru
          _
        // Predicated region
        $region37: #{bgnet_forward.1} parent=11 // pred_check
          %p359 = pneg %p169
        $region38: #{bgnet_forward.1} parent=11 // pred_check_branch
          %361 = sbr.rel (%p359) target = $region40
        $region39: #{bgnet_forward.1} parent=11 // pred_region
          _
        $region40: #{bgnet_forward.1} parent=11 // pred_fallthru
          _
        // Predicated region
        $region41: #{bgnet_forward.1} parent=11 // pred_check
          %p362 = pneg %p190
        $region42: #{bgnet_forward.1} parent=11 // pred_check_branch
          %364 = sbr.rel (%p362) target = $region44
        $region43: #{bgnet_forward.1} parent=11 // pred_region
          _
        $region44: #{bgnet_forward.1} parent=11 // pred_fallthru
          _
        // Predicated region
        $region45: #{bgnet_forward.1} parent=11 // pred_check
          %p365 = pneg %p211
        $region46: #{bgnet_forward.1} parent=11 // pred_check_branch
          %367 = sbr.rel (%p365) target = $region48
        $region47: #{bgnet_forward.1} parent=11 // pred_region
          _
        $region48: #{bgnet_forward.1} parent=11 // pred_fallthru
          _
        // Predicated region
        $region49: #{bgnet_forward.1} parent=11 // pred_check
          %p368 = pneg %p232
        $region50: #{bgnet_forward.1} parent=11 // pred_check_branch
          %370 = sbr.rel (%p368) target = $region52
        $region51: #{bgnet_forward.1} parent=11 // pred_region
          _
        $region52: #{bgnet_forward.1} parent=11 // pred_fallthru
          _
        // Predicated region
        $region53: #{bgnet_forward.1} parent=11 // pred_check
          %p371 = pneg %p253
        $region54: #{bgnet_forward.1} parent=11 // pred_check_branch
          %373 = sbr.rel (%p371) target = $region56
        $region55: #{bgnet_forward.1} parent=11 // pred_region
          _
        $region56: #{bgnet_forward.1} parent=11 // pred_fallthru
          _
        // Predicated region
        $region57: #{bgnet_forward.1} parent=11 // pred_check
          %p374 = pneg %p274
        $region58: #{bgnet_forward.1} parent=11 // pred_check_branch
          %376 = sbr.rel (%p374) target = $region60
        $region59: #{bgnet_forward.1} parent=11 // pred_region
          _
        $region60: #{bgnet_forward.1} parent=11 // pred_fallthru
          _
      $region12: #{bgnet_forward.1} parent=5 // pred_fallthru
        _
      %p377 = scmp.lt.s32.totalorder %s22, 5
      // Predicated region
      $region61: #{bgnet_forward.1} parent=5 // pred_check
        %p378 = pneg %p377
      $region62: #{bgnet_forward.1} parent=5 // pred_check_branch
        %380 = sbr.rel (%p378) target = $region64
      $region63: #{bgnet_forward.1} parent=5 // pred_region
        // Predicated region
        $region65: #{bgnet_forward.1} parent=63 // pred_check
          %p381 = pneg %p294
        $region66: #{bgnet_forward.1} parent=63 // pred_check_branch
          %383 = sbr.rel (%p381) target = $region68
        $region67: #{bgnet_forward.1} parent=63 // pred_region
          %s384 = smul.u32 27, %s22
          %p385 = scmp.lt.s32.totalorder %s384, 134
          %s386 = scalar_select %p385, %s384, 134
          %s387 = smul.addr %s386, 4
          %s388 = scalar_lea.vmem %s12, %s387
          %s389 = smul.u32 27, %s22
        $region68: #{bgnet_forward.1} parent=63 // pred_fallthru
          _
      $region64: #{bgnet_forward.1} parent=5 // pred_fallthru
        _
      %p390 = scmp.le.s32.totalorder 1, %s22
      %p391 = scmp.lt.s32.totalorder %s22, 6
      %p392 = pnand %p390, %p391
      %p393 = pneg %p392
      // Predicated region
      $region69: #{bgnet_forward.1} parent=5 // pred_check
        _
      $region70: #{bgnet_forward.1} parent=5 // pred_check_branch
        %395 = sbr.rel (%p392) target = $region72
      $region71: #{bgnet_forward.1} parent=5 // pred_region
        %s396 = ssub.s32 %s22, 1
        %p397 = pneg %p43
        %p398 = pneg %p40
        %p399 = pneg %p64
        %p400 = pneg %p61
        %p401 = pneg %p85
        %p402 = pneg %p82
        %p403 = pneg %p106
        %p404 = pneg %p103
        %p405 = pneg %p127
        %p406 = pneg %p124
        %p407 = pneg %p148
        %p408 = pneg %p145
        %p409 = pneg %p169
        %p410 = pneg %p166
        %p411 = pneg %p190
        %p412 = pneg %p187
        %p413 = pneg %p211
        %p414 = pneg %p208
        %p415 = pneg %p232
        %p416 = pneg %p229
        %p417 = pneg %p253
        %p418 = pneg %p250
        %p419 = pneg %p274
        %p420 = pneg %p271
        %s421 = smul.u32 27, %s27
        %p422 = scmp.lt.s32.totalorder %s421, 134
        %s423 = scalar_select %p422, %s421, 134
        %s424 = smul.addr %s423, 4
        %s425 = scalar_lea.vmem %s12, %s424
        %p426 = pneg %p300
        %p427 = pneg %p297
        %p428 = pneg %p326
        %p429 = pneg %p323
        %s430 = sand.u32 %s313, 1
        %s431 = scalar_lea.sflag [#allocation4], %s430
        %s432 = sand.u32 %s313, 1
        %s433 = smul.addr %s432, 1080
        %s434 = scalar_lea.vmem [#allocation3], %s433
        %s435 = smul.u32 27, %s27
        %p436 = scmp.lt.s32.totalorder %s435, 134
        %s437 = scalar_select %p436, %s435, 134
        %s438 = smul.addr %s437, 4
        %s439 = scalar_lea.vmem %s12, %s438
        %s440 = smul.u32 27, %s27
        %s441 = smul.u32 27, %s27
        %p443 = scmp.eq.s32.totalorder %s27, 0
        // Predicated region
        $region73: #{bgnet_forward.1} parent=71 // pred_check
          %p444 = pneg %p443
        $region74: #{bgnet_forward.1} parent=71 // pred_check_branch
          %446 = sbr.rel (%p444) target = $region76
        $region75: #{bgnet_forward.1} parent=71 // pred_region
          %v447 = vld [vmem:[%s0] sm:$0xff]
          %v448 = vld [vmem:[%s0 + $0x8] sm:$0xff]
          %v449 = vld [vmem:[%s0 + $0x10] sm:$0xff]
          %v450 = vld [vmem:[%s0 + $0x18] sm:$0xff]
          %v451 = vld [vmem:[%s0 + $0x20] sm:$0x11]
          %v457 = vunpack.c.l.b16 %v447
          %v458 = vunpack.c.h.b16 %v447
          %v459 = vunpack.c.l.b16 %v448
          %v460 = vunpack.c.h.b16 %v448
          %v461 = vunpack.c.l.b16 %v449
          %v462 = vunpack.c.h.b16 %v449
          %v463 = vunpack.c.l.b16 %v450
          %v464 = vunpack.c.h.b16 %v450
          %v465 = vunpack.c.l.b16 %v451
          %v466 = vunpack.c.h.b16 %v451
          %v467 = vpack.c.b16 %v459, %v457
          %v468 = vpack.c.b16 %v460, %v458
          %v469 = vpack.c.b16 %v463, %v461
          %v470 = vpack.c.b16 %v464, %v462
          %v471 = vpack.c.b16 %v465, %v465
          %v472 = vpack.c.b16 %v466, %v466
          %vm477 = vcmask 1040384
          %v478 = vrot.slane %v467, 7
          %v479 = vrot.slane %v468, 7
          %v480 = vrot.slane %v469, 7
          %v481 = vsel %vm477, %v478, %v480
          %v482 = vrot.slane %v470, 7
          %v483 = vsel %vm477, %v479, %v482
          %v484 = vrot.slane %v471, 7
          %v485 = vsel %vm477, %v480, %v484
          %v486 = vrot.slane %v472, 7
          %v487 = vsel %vm477, %v482, %v486
          %488 = vrot.lane.b32.xlu0 %v478, 127
          %v489 = vpop.permute.xlu0 %488
          %490 = vrot.lane.b32.xlu0 %v479, 127
          %v491 = vpop.permute.xlu0 %490
          %492 = vrot.lane.b32.xlu0 %v481, 127
          %v493 = vpop.permute.xlu0 %492
          %494 = vrot.lane.b32.xlu0 %v483, 127
          %v495 = vpop.permute.xlu0 %494
          %496 = vrot.lane.b32.xlu0 %v485, 127
          %v497 = vpop.permute.xlu0 %496
          %498 = vrot.lane.b32.xlu0 %v487, 127
          %v499 = vpop.permute.xlu0 %498
          %vm500 = vcmask 1039360
          %v501 = vsel %vm500, %v489, %v491
          %v502 = vsel %vm500, %v493, %v495
          %v503 = vsel %vm500, %v497, %v499
          %vm506 = vcmask 1041408
          %v507 = vrot.slane %v467, 6
          %v508 = vrot.slane %v468, 6
          %v509 = vrot.slane %v469, 6
          %v510 = vsel %vm506, %v507, %v509
          %v511 = vrot.slane %v470, 6
          %v512 = vsel %vm506, %v508, %v511
          %v513 = vrot.slane %v471, 6
          %v514 = vsel %vm506, %v509, %v513
          %v515 = vrot.slane %v472, 6
          %v516 = vsel %vm506, %v511, %v515
          %517 = vrot.lane.b32.xlu0 %v507, 126
          %v518 = vpop.permute.xlu0 %517
          %519 = vrot.lane.b32.xlu0 %v508, 126
          %v520 = vpop.permute.xlu0 %519
          %521 = vrot.lane.b32.xlu0 %v510, 126
          %v522 = vpop.permute.xlu0 %521
          %523 = vrot.lane.b32.xlu0 %v512, 126
          %v524 = vpop.permute.xlu0 %523
          %525 = vrot.lane.b32.xlu0 %v514, 126
          %v526 = vpop.permute.xlu0 %525
          %527 = vrot.lane.b32.xlu0 %v516, 126
          %v528 = vpop.permute.xlu0 %527
          %vm529 = vcmask 1031168
          %v530 = vsel %vm529, %v518, %v520
          %v531 = vsel %vm529, %v522, %v524
          %v532 = vsel %vm529, %v526, %v528
          %vm535 = vcmask 1042432
          %v536 = vrot.slane %v467, 5
          %v537 = vrot.slane %v468, 5
          %v538 = vrot.slane %v469, 5
          %v539 = vsel %vm535, %v536, %v538
          %v540 = vrot.slane %v470, 5
          %v541 = vsel %vm535, %v537, %v540
          %v542 = vrot.slane %v471, 5
          %v543 = vsel %vm535, %v538, %v542
          %v544 = vrot.slane %v472, 5
          %v545 = vsel %vm535, %v540, %v544
          %546 = vrot.lane.b32.xlu0 %v536, 112
          %v547 = vpop.permute.xlu0 %546
          %548 = vrot.lane.b32.xlu0 %v537, 112
          %v549 = vpop.permute.xlu0 %548
          %550 = vrot.lane.b32.xlu0 %v539, 112
          %v551 = vpop.permute.xlu0 %550
          %552 = vrot.lane.b32.xlu0 %v541, 112
          %v553 = vpop.permute.xlu0 %552
          %554 = vrot.lane.b32.xlu0 %v543, 112
          %v555 = vpop.permute.xlu0 %554
          %556 = vrot.lane.b32.xlu0 %v545, 112
          %v557 = vpop.permute.xlu0 %556
          %vm558 = vcmask 916480
          %v559 = vsel %vm558, %v547, %v549
          %v560 = vsel %vm558, %v551, %v553
          %v561 = vsel %vm558, %v555, %v557
          %v564 = vpack.c.b16 %v457, %v457
          %v565 = vpack.c.b16 %v458, %v458
          %v566 = vpack.c.b16 %v461, %v459
          %v567 = vpack.c.b16 %v462, %v460
          %v568 = vpack.c.b16 %v465, %v463
          %v569 = vpack.c.b16 %v466, %v464
          %570 = vrot.lane.b32.xlu0 %v564, 111
          %v571 = vpop.permute.xlu0 %570
          %572 = vrot.lane.b32.xlu0 %v565, 111
          %v573 = vpop.permute.xlu0 %572
          %574 = vrot.lane.b32.xlu0 %v566, 111
          %v575 = vpop.permute.xlu0 %574
          %576 = vrot.lane.b32.xlu0 %v567, 111
          %v577 = vpop.permute.xlu0 %576
          %578 = vrot.lane.b32.xlu0 %v568, 111
          %v579 = vpop.permute.xlu0 %578
          %580 = vrot.lane.b32.xlu0 %v569, 111
          %v581 = vpop.permute.xlu0 %580
          %vm582 = vcmask 908288
          %v583 = vsel %vm582, %v571, %v573
          %v584 = vsel %vm582, %v575, %v577
          %v585 = vsel %vm582, %v579, %v581
          %vm588 = vcmask 1044480
          %v589 = vrot.slane %v467, 3
          %v590 = vrot.slane %v468, 3
          %v591 = vrot.slane %v469, 3
          %v592 = vsel %vm588, %v589, %v591
          %v593 = vrot.slane %v470, 3
          %v594 = vsel %vm588, %v590, %v593
          %v595 = vrot.slane %v471, 3
          %v596 = vsel %vm588, %v591, %v595
          %v597 = vrot.slane %v472, 3
          %v598 = vsel %vm588, %v593, %v597
          %599 = vrot.lane.b32.xlu0 %v589, 110
          %v600 = vpop.permute.xlu0 %599
          %601 = vrot.lane.b32.xlu0 %v590, 110
          %v602 = vpop.permute.xlu0 %601
          %603 = vrot.lane.b32.xlu0 %v592, 110
          %v604 = vpop.permute.xlu0 %603
          %605 = vrot.lane.b32.xlu0 %v594, 110
          %v606 = vpop.permute.xlu0 %605
          %607 = vrot.lane.b32.xlu0 %v596, 110
          %v608 = vpop.permute.xlu0 %607
          %609 = vrot.lane.b32.xlu0 %v598, 110
          %v610 = vpop.permute.xlu0 %609
          %vm611 = vcmask 900096
          %v612 = vsel %vm611, %v600, %v602
          %v613 = vsel %vm611, %v604, %v606
          %v614 = vsel %vm611, %v608, %v610
          %vm617 = vcmask 1045504
          %v618 = vrot.slane %v467, 2
          %v619 = vrot.slane %v468, 2
          %v620 = vrot.slane %v469, 2
          %v621 = vsel %vm617, %v618, %v620
          %v622 = vrot.slane %v470, 2
          %v623 = vsel %vm617, %v619, %v622
          %v624 = vrot.slane %v471, 2
          %v625 = vsel %vm617, %v620, %v624
          %v626 = vrot.slane %v472, 2
          %v627 = vsel %vm617, %v622, %v626
          %628 = vrot.lane.b32.xlu0 %v618, 96
          %v629 = vpop.permute.xlu0 %628
          %630 = vrot.lane.b32.xlu0 %v619, 96
          %v631 = vpop.permute.xlu0 %630
          %632 = vrot.lane.b32.xlu0 %v621, 96
          %v633 = vpop.permute.xlu0 %632
          %634 = vrot.lane.b32.xlu0 %v623, 96
          %v635 = vpop.permute.xlu0 %634
          %636 = vrot.lane.b32.xlu0 %v625, 96
          %v637 = vpop.permute.xlu0 %636
          %638 = vrot.lane.b32.xlu0 %v627, 96
          %v639 = vpop.permute.xlu0 %638
          %vm640 = vcmask 785408
          %v641 = vsel %vm640, %v629, %v631
          %v642 = vsel %vm640, %v633, %v635
          %v643 = vsel %vm640, %v637, %v639
          %vm646 = vcmask 1046528
          %v647 = vrot.slane %v467, 1
          %v648 = vrot.slane %v468, 1
          %v649 = vrot.slane %v469, 1
          %v650 = vsel %vm646, %v647, %v649
          %v651 = vrot.slane %v470, 1
          %v652 = vsel %vm646, %v648, %v651
          %v653 = vrot.slane %v471, 1
          %v654 = vsel %vm646, %v649, %v653
          %v655 = vrot.slane %v472, 1
          %v656 = vsel %vm646, %v651, %v655
          %657 = vrot.lane.b32.xlu0 %v647, 95
          %v658 = vpop.permute.xlu0 %657
          %659 = vrot.lane.b32.xlu0 %v648, 95
          %v660 = vpop.permute.xlu0 %659
          %661 = vrot.lane.b32.xlu0 %v650, 95
          %v662 = vpop.permute.xlu0 %661
          %663 = vrot.lane.b32.xlu0 %v652, 95
          %v664 = vpop.permute.xlu0 %663
          %665 = vrot.lane.b32.xlu0 %v654, 95
          %v666 = vpop.permute.xlu0 %665
          %667 = vrot.lane.b32.xlu0 %v656, 95
          %v668 = vpop.permute.xlu0 %667
          %vm669 = vcmask 777216
          %v670 = vsel %vm669, %v658, %v660
          %v671 = vsel %vm669, %v662, %v664
          %v672 = vsel %vm669, %v666, %v668
          %677 = vrot.lane.b32.xlu0 %v467, 94
          %v678 = vpop.permute.xlu0 %677
          %679 = vrot.lane.b32.xlu0 %v468, 94
          %v680 = vpop.permute.xlu0 %679
          %681 = vrot.lane.b32.xlu0 %v469, 94
          %v682 = vpop.permute.xlu0 %681
          %683 = vrot.lane.b32.xlu0 %v470, 94
          %v684 = vpop.permute.xlu0 %683
          %685 = vrot.lane.b32.xlu0 %v471, 94
          %v686 = vpop.permute.xlu0 %685
          %687 = vrot.lane.b32.xlu0 %v472, 94
          %v688 = vpop.permute.xlu0 %687
          %vm689 = vcmask 769024
          %v690 = vsel %vm689, %v678, %v680
          %v691 = vsel %vm689, %v682, %v684
          %v692 = vsel %vm689, %v686, %v688
          %vm697 = vcmask 1040384
          %v700 = vsel %vm697, %v471, %v501
          %v704 = vsel %vm697, %v472, %v491
          %vm706 = vcmask 1041408
          %v709 = vsel %vm706, %v503, %v530
          %v713 = vsel %vm706, %v499, %v520
          %vm715 = vcmask 1042432
          %v718 = vsel %vm715, %v532, %v559
          %v722 = vsel %vm715, %v528, %v549
          %vm724 = vcmask 1043456
          %v727 = vsel %vm724, %v561, %v583
          %v731 = vsel %vm724, %v557, %v573
          %vm733 = vcmask 1044480
          %v736 = vsel %vm733, %v585, %v612
          %v740 = vsel %vm733, %v581, %v602
          %vm742 = vcmask 1045504
          %v745 = vsel %vm742, %v614, %v641
          %v749 = vsel %vm742, %v610, %v631
          %vm751 = vcmask 1046528
          %v754 = vsel %vm751, %v643, %v670
          %v758 = vsel %vm751, %v639, %v660
          %v760 = vld [vmem:[%s1] sm:$0xff]
          %v761 = vld [vmem:[%s1 + $0x8] sm:$0xf]
          %v762 = vld [vmem:[%s1 + $0xc] sm:$0xff]
          %v763 = vld [vmem:[%s1 + $0x14] sm:$0xf]
          %v764 = vld [vmem:[%s1 + $0x18] sm:$0xff]
          %v765 = vld [vmem:[%s1 + $0x20] sm:$0xf]
          %v766 = vld [vmem:[%s1 + $0x24] sm:$0xff]
          %v767 = vld [vmem:[%s1 + $0x2c] sm:$0xf]
          %v768 = vld [vmem:[%s1 + $0x30] sm:$0xff]
          %v769 = vld [vmem:[%s1 + $0x38] sm:$0xf]
          %v770 = vld [vmem:[%s1 + $0x3c] sm:$0xff]
          %v771 = vld [vmem:[%s1 + $0x44] sm:$0xf]
          %v772 = vld [vmem:[%s1 + $0x48] sm:$0xff]
          %v773 = vld [vmem:[%s1 + $0x50] sm:$0xf]
          %v774 = vld [vmem:[%s1 + $0x54] sm:$0xff]
          %v775 = vld [vmem:[%s1 + $0x5c] sm:$0xf]
          %v776 = vld [vmem:[%s1 + $0x60] sm:$0xff]
          %v777 = vld [vmem:[%s1 + $0x68] sm:$0xf]
          %v778 = vld [vmem:[%s1 + $0x6c] sm:$0xff]
          %v779 = vld [vmem:[%s1 + $0x74] sm:$0xf]
          %v780 = vld [vmem:[%s1 + $0x78] sm:$0xff]
          %v781 = vld [vmem:[%s1 + $0x80] sm:$0xf]
          %v782 = vld [vmem:[%s1 + $0x84] sm:$0xff]
          %v783 = vld [vmem:[%s1 + $0x8c] sm:$0xf]
          %v784 = vld [vmem:[%s1 + $0x90] sm:$0xff]
          %v785 = vld [vmem:[%s1 + $0x98] sm:$0xf]
          %v786 = vld [vmem:[%s1 + $0x9c] sm:$0xff]
          %v787 = vld [vmem:[%s1 + $0xa4] sm:$0xf]
          %v788 = vld [vmem:[%s1 + $0xa8] sm:$0xff]
          %v789 = vld [vmem:[%s1 + $0xb0] sm:$0xf]
          %v790 = vld [vmem:[%s1 + $0xb4] sm:$0xff]
          %v791 = vld [vmem:[%s1 + $0xbc] sm:$0xf]
          %v792 = vld [vmem:[%s2] sm:$0xff]
          %v793 = vld [vmem:[%s2 + $0x8] sm:$0xff]
          %v794 = vld [vmem:[%s2 + $0x10] sm:$0xff]
          %v795 = vld [vmem:[%s2 + $0x18] sm:$0xff]
          %v796 = vld [vmem:[%s2 + $0x20] sm:$0xff]
          %v797 = vld [vmem:[%s2 + $0x28] sm:$0xff]
          %v798 = vld [vmem:[%s2 + $0x30] sm:$0xff]
          %v799 = vld [vmem:[%s2 + $0x38] sm:$0xff]
          %v800 = vld [vmem:[%s2 + $0x40] sm:$0xff]
          %v801 = vld [vmem:[%s2 + $0x48] sm:$0xff]
          %v802 = vld [vmem:[%s2 + $0x50] sm:$0xff]
          %v803 = vld [vmem:[%s2 + $0x58] sm:$0xff]
          %v804 = vld [vmem:[%s2 + $0x60] sm:$0xff]
          %v805 = vld [vmem:[%s2 + $0x68] sm:$0xff]
          %v806 = vld [vmem:[%s2 + $0x70] sm:$0xff]
          %v807 = vld [vmem:[%s2 + $0x78] sm:$0xff]
          %809 = vset.pattern.permute.xlu0 0
          %810 = vperm.xlu0 %809, %v792
          %v811 = vpop.permute.xlu0 %810
          %814 = vset.pattern.permute.xlu0 0
          %815 = vperm.xlu0 %814, %v793
          %v816 = vpop.permute.xlu0 %815
          %819 = vset.pattern.permute.xlu0 0
          %820 = vperm.xlu0 %819, %v794
          %v821 = vpop.permute.xlu0 %820
          %824 = vset.pattern.permute.xlu0 0
          %825 = vperm.xlu0 %824, %v795
          %v826 = vpop.permute.xlu0 %825
          %829 = vset.pattern.permute.xlu0 0
          %830 = vperm.xlu0 %829, %v796
          %v831 = vpop.permute.xlu0 %830
          %834 = vset.pattern.permute.xlu0 0
          %835 = vperm.xlu0 %834, %v797
          %v836 = vpop.permute.xlu0 %835
          %839 = vset.pattern.permute.xlu0 0
          %840 = vperm.xlu0 %839, %v798
          %v841 = vpop.permute.xlu0 %840
          %844 = vset.pattern.permute.xlu0 0
          %845 = vperm.xlu0 %844, %v799
          %v846 = vpop.permute.xlu0 %845
          %849 = vset.pattern.permute.xlu0 0
          %850 = vperm.xlu0 %849, %v800
          %v851 = vpop.permute.xlu0 %850
          %854 = vset.pattern.permute.xlu0 0
          %855 = vperm.xlu0 %854, %v801
          %v856 = vpop.permute.xlu0 %855
          %859 = vset.pattern.permute.xlu0 0
          %860 = vperm.xlu0 %859, %v802
          %v861 = vpop.permute.xlu0 %860
          %864 = vset.pattern.permute.xlu0 0
          %865 = vperm.xlu0 %864, %v803
          %v866 = vpop.permute.xlu0 %865
          %869 = vset.pattern.permute.xlu0 0
          %870 = vperm.xlu0 %869, %v804
          %v871 = vpop.permute.xlu0 %870
          %874 = vset.pattern.permute.xlu0 0
          %875 = vperm.xlu0 %874, %v805
          %v876 = vpop.permute.xlu0 %875
          %879 = vset.pattern.permute.xlu0 0
          %880 = vperm.xlu0 %879, %v806
          %v881 = vpop.permute.xlu0 %880
          %884 = vset.pattern.permute.xlu0 0
          %885 = vperm.xlu0 %884, %v807
          %v886 = vpop.permute.xlu0 %885
          %v920 = vunpack.c.l.b16 %v760
          %v921 = vunpack.c.h.b16 %v760
          %v922 = vunpack.c.l.b16 %v761
          %v923 = vunpack.c.l.b16 %v762
          %v924 = vunpack.c.h.b16 %v762
          %v925 = vunpack.c.l.b16 %v763
          %v926 = vunpack.c.l.b16 %v764
          %v927 = vunpack.c.h.b16 %v764
          %v928 = vunpack.c.l.b16 %v765
          %v929 = vunpack.c.l.b16 %v766
          %v930 = vunpack.c.h.b16 %v766
          %v931 = vunpack.c.l.b16 %v767
          %v932 = vunpack.c.l.b16 %v768
          %v933 = vunpack.c.h.b16 %v768
          %v934 = vunpack.c.l.b16 %v769
          %v935 = vunpack.c.l.b16 %v770
          %v936 = vunpack.c.h.b16 %v770
          %v937 = vunpack.c.l.b16 %v771
          %v938 = vunpack.c.l.b16 %v772
          %v939 = vunpack.c.h.b16 %v772
          %v940 = vunpack.c.l.b16 %v773
          %v941 = vunpack.c.l.b16 %v774
          %v942 = vunpack.c.h.b16 %v774
          %v943 = vunpack.c.l.b16 %v775
          %v944 = vunpack.c.l.b16 %v776
          %v945 = vunpack.c.h.b16 %v776
          %v946 = vunpack.c.l.b16 %v777
          %v947 = vunpack.c.l.b16 %v778
          %v948 = vunpack.c.h.b16 %v778
          %v949 = vunpack.c.l.b16 %v779
          %v950 = vunpack.c.l.b16 %v780
          %v951 = vunpack.c.h.b16 %v780
          %v952 = vunpack.c.l.b16 %v781
          %v953 = vunpack.c.l.b16 %v782
          %v954 = vunpack.c.h.b16 %v782
          %v955 = vunpack.c.l.b16 %v783
          %v956 = vunpack.c.l.b16 %v784
          %v957 = vunpack.c.h.b16 %v784
          %v958 = vunpack.c.l.b16 %v785
          %v959 = vunpack.c.l.b16 %v786
          %v960 = vunpack.c.h.b16 %v786
          %v961 = vunpack.c.l.b16 %v787
          %v962 = vunpack.c.l.b16 %v788
          %v963 = vunpack.c.h.b16 %v788
          %v964 = vunpack.c.l.b16 %v789
          %v965 = vunpack.c.l.b16 %v790
          %v966 = vunpack.c.h.b16 %v790
          %v967 = vunpack.c.l.b16 %v791
          %v968 = vpack.c.b16 %v923, %v920
          %v969 = vpack.c.b16 %v924, %v921
          %v970 = vpack.c.b16 %v925, %v922
          %v971 = vpack.c.b16 %v929, %v926
          %v972 = vpack.c.b16 %v930, %v927
          %v973 = vpack.c.b16 %v931, %v928
          %v974 = vpack.c.b16 %v935, %v932
          %v975 = vpack.c.b16 %v936, %v933
          %v976 = vpack.c.b16 %v937, %v934
          %v977 = vpack.c.b16 %v941, %v938
          %v978 = vpack.c.b16 %v942, %v939
          %v979 = vpack.c.b16 %v943, %v940
          %v980 = vpack.c.b16 %v947, %v944
          %v981 = vpack.c.b16 %v948, %v945
          %v982 = vpack.c.b16 %v949, %v946
          %v983 = vpack.c.b16 %v953, %v950
          %v984 = vpack.c.b16 %v954, %v951
          %v985 = vpack.c.b16 %v955, %v952
          %v986 = vpack.c.b16 %v959, %v956
          %v987 = vpack.c.b16 %v960, %v957
          %v988 = vpack.c.b16 %v961, %v958
          %v989 = vpack.c.b16 %v965, %v962
          %v990 = vpack.c.b16 %v966, %v963
          %v991 = vpack.c.b16 %v967, %v964
          %vm1008 = vcmask 408576
          %v1010 = vsel %vm1008, %v970, 0
          %v1013 = vsel %vm1008, %v973, 0
          %v1016 = vsel %vm1008, %v976, 0
          %v1019 = vsel %vm1008, %v979, 0
          %v1022 = vsel %vm1008, %v982, 0
          %v1025 = vsel %vm1008, %v985, 0
          %v1028 = vsel %vm1008, %v988, 0
          %v1031 = vsel %vm1008, %v991, 0
          %v1034 = vsel %vm697, %v692, 0
          %v1037 = vsel %vm697, %v688, 0
          %1039 = vmatprep.subr.bf16.mxu0 %v468
          %1040 = vmatpush1.bf16.msra.mxu0 %v467
          %1041 = vmatprep.subr.bf16.mxu0 %v470
          %1042 = vmatpush1.bf16.msra.mxu0 %v469
          %1043 = vmatprep.subr.bf16.mxu0 %v704
          %1044 = vmatpush1.bf16.msra.mxu0 %v700
          %1045 = vmatprep.subr.bf16.mxu0 %v495
          %1046 = vmatpush1.bf16.msra.mxu0 %v502
          %1047 = vmatprep.subr.bf16.mxu0 %v713
          %1048 = vmatpush1.bf16.msra.mxu0 %v709
          %1049 = vmatprep.subr.bf16.mxu0 %v524
          %1050 = vmatpush1.bf16.msra.mxu0 %v531
          %1051 = vmatprep.subr.bf16.mxu0 %v722
          %1052 = vmatpush1.bf16.msra.mxu0 %v718
          %1053 = vmatprep.subr.bf16.mxu0 %v553
          %1054 = vmatpush1.bf16.msra.mxu0 %v560
          %1055 = vmatprep.subr.bf16.mxu0 %v731
          %1056 = vmatpush1.bf16.msra.mxu0 %v727
          %1057 = vmatprep.subr.bf16.mxu0 %v577
          %1058 = vmatpush1.bf16.msra.mxu0 %v584
          %1059 = vmatprep.subr.bf16.mxu0 %v740
          %1060 = vmatpush1.bf16.msra.mxu0 %v736
          %1061 = vmatprep.subr.bf16.mxu0 %v606
          %1062 = vmatpush1.bf16.msra.mxu0 %v613
          %1063 = vmatprep.subr.bf16.mxu0 %v749
          %1064 = vmatpush1.bf16.msra.mxu0 %v745
          %1065 = vmatprep.subr.bf16.mxu0 %v635
          %1066 = vmatpush1.bf16.msra.mxu0 %v642
          %1067 = vmatprep.subr.bf16.mxu0 %v758
          %1068 = vmatpush1.bf16.msra.mxu0 %v754
          %1069 = vmatprep.subr.bf16.mxu0 %v664
          %1070 = vmatpush1.bf16.msra.mxu0 %v671
          %1071 = vmatprep.mubr.bf16.mxu0 %v969
          %1072 = vmatmul.mubr.bf16.gmra.mrb[0].mxu0 %v968
          %v1073 = vpop.f32.mrb[0].mxu0
          %v1074 = vadd.f32 %v811, %v1073
          %v1075 = vpop.f32.mrb[0].mxu0
          %v1076 = vadd.f32 %v811, %v1075
          %v1077 = vpop.f32.mrb[0].mxu0
          %v1078 = vadd.f32 %v816, %v1077
          %v1079 = vpop.f32.mrb[0].mxu0
          %v1080 = vadd.f32 %v816, %v1079
          %1081 = vmatprep.mubr.bf16.mxu0 %v972
          %1082 = vmatmul.mubr.bf16.gmra.mrb[0].mxu0 %v971
          %v1083 = vpop.f32.mrb[0].mxu0
          %v1084 = vadd.f32 %v821, %v1083
          %v1085 = vpop.f32.mrb[0].mxu0
          %v1086 = vadd.f32 %v821, %v1085
          %v1087 = vpop.f32.mrb[0].mxu0
          %v1088 = vadd.f32 %v826, %v1087
          %v1089 = vpop.f32.mrb[0].mxu0
          %v1090 = vadd.f32 %v826, %v1089
          %1091 = vmatprep.mubr.bf16.mxu0 %v975
          %1092 = vmatmul.mubr.bf16.gmra.mrb[0].mxu0 %v974
          %v1093 = vpop.f32.mrb[0].mxu0
          %v1094 = vadd.f32 %v831, %v1093
          %v1095 = vpop.f32.mrb[0].mxu0
          %v1096 = vadd.f32 %v831, %v1095
          %v1097 = vpop.f32.mrb[0].mxu0
          %v1098 = vadd.f32 %v836, %v1097
          %v1099 = vpop.f32.mrb[0].mxu0
          %v1100 = vadd.f32 %v836, %v1099
          %1101 = vmatprep.mubr.bf16.mxu0 %v978
          %1102 = vmatmul.mubr.bf16.gmra.mrb[0].mxu0 %v977
          %v1103 = vpop.f32.mrb[0].mxu0
          %v1104 = vadd.f32 %v841, %v1103
          %v1105 = vpop.f32.mrb[0].mxu0
          %v1106 = vadd.f32 %v841, %v1105
          %v1107 = vpop.f32.mrb[0].mxu0
          %v1108 = vadd.f32 %v846, %v1107
          %v1109 = vpop.f32.mrb[0].mxu0
          %v1110 = vadd.f32 %v846, %v1109
          %1111 = vmatprep.mubr.bf16.mxu0 %v981
          %1112 = vmatmul.mubr.bf16.gmra.mrb[0].mxu0 %v980
          %v1113 = vpop.f32.mrb[0].mxu0
          %v1114 = vadd.f32 %v851, %v1113
          %v1115 = vpop.f32.mrb[0].mxu0
          %v1116 = vadd.f32 %v851, %v1115
          %v1117 = vpop.f32.mrb[0].mxu0
          %v1118 = vadd.f32 %v856, %v1117
          %v1119 = vpop.f32.mrb[0].mxu0
          %v1120 = vadd.f32 %v856, %v1119
          %1121 = vmatprep.mubr.bf16.mxu0 %v984
          %1122 = vmatmul.mubr.bf16.gmra.mrb[0].mxu0 %v983
          %v1123 = vpop.f32.mrb[0].mxu0
          %v1124 = vadd.f32 %v861, %v1123
          %v1125 = vpop.f32.mrb[0].mxu0
          %v1126 = vadd.f32 %v861, %v1125
          %v1127 = vpop.f32.mrb[0].mxu0
          %v1128 = vadd.f32 %v866, %v1127
          %v1129 = vpop.f32.mrb[0].mxu0
          %v1130 = vadd.f32 %v866, %v1129
          %1131 = vmatprep.mubr.bf16.mxu0 %v987
          %1132 = vmatmul.mubr.bf16.gmra.mrb[0].mxu0 %v986
          %v1133 = vpop.f32.mrb[0].mxu0
          %v1134 = vadd.f32 %v871, %v1133
          %v1135 = vpop.f32.mrb[0].mxu0
          %v1136 = vadd.f32 %v871, %v1135
          %v1137 = vpop.f32.mrb[0].mxu0
          %v1138 = vadd.f32 %v876, %v1137
          %v1139 = vpop.f32.mrb[0].mxu0
          %v1140 = vadd.f32 %v876, %v1139
          %1141 = vmatprep.mubr.bf16.mxu0 %v990
          %1142 = vmatmul.mubr.bf16.gmra.mrb[0].mxu0 %v989
          %v1143 = vpop.f32.mrb[0].mxu0
          %v1144 = vadd.f32 %v881, %v1143
          %v1145 = vpop.f32.mrb[0].mxu0
          %v1146 = vadd.f32 %v881, %v1145
          %v1147 = vpop.f32.mrb[0].mxu0
          %v1148 = vadd.f32 %v886, %v1147
          %v1149 = vpop.f32.mrb[0].mxu0
          %v1150 = vadd.f32 %v886, %v1149
          %1151 = vdwg.mxu0
          %1152 = vmatprep.subr.bf16.mxu0 %v668
          %1153 = vmatpush1.bf16.msra.mxu0 %v672
          %1154 = vmatprep.subr.bf16.mxu0 %v680
          %1155 = vmatpush1.bf16.msra.mxu0 %v690
          %1156 = vmatprep.subr.bf16.mxu0 %v684
          %1157 = vmatpush1.bf16.msra.mxu0 %v691
          %1158 = vmatprep.subr.bf16.mxu0 %v1037
          %1159 = vmatpush1.bf16.msra.mxu0 %v1034
          %1160 = vmatprep.subr.bf16.mxu0 0
          %1161 = vmatpush1.bf16.msra.mxu0 0
          %1162 = vmatprep.subr.bf16.mxu0 0
          %1163 = vmatpush1.bf16.msra.mxu0 0
          %1164 = vmatprep.subr.bf16.mxu0 0
          %1165 = vmatpush1.bf16.msra.mxu0 0
          %1166 = vmatprep.subr.bf16.mxu0 0
          %1167 = vmatpush1.bf16.msra.mxu0 0
          %1168 = vmatprep.subr.bf16.mxu0 0
          %1169 = vmatpush1.bf16.msra.mxu0 0
          %1170 = vmatprep.subr.bf16.mxu0 0
          %1171 = vmatpush1.bf16.msra.mxu0 0
          %1172 = vmatprep.subr.bf16.mxu0 0
          %1173 = vmatpush1.bf16.msra.mxu0 0
          %1174 = vmatprep.subr.bf16.mxu0 0
          %1175 = vmatpush1.bf16.msra.mxu0 0
          %1176 = vmatprep.subr.bf16.mxu0 0
          %1177 = vmatpush1.bf16.msra.mxu0 0
          %1178 = vmatprep.subr.bf16.mxu0 0
          %1179 = vmatpush1.bf16.msra.mxu0 0
          %1180 = vmatprep.subr.bf16.mxu0 0
          %1181 = vmatpush1.bf16.msra.mxu0 0
          %1182 = vmatprep.subr.bf16.mxu0 0
          %1183 = vmatpush1.bf16.msra.mxu0 0
          %1184 = vmatprep.mubr.bf16.mxu0 0
          %1185 = vmatmul.mubr.bf16.gmra.mrb[0].mxu0 %v1010
          %v1186 = vpop.f32.mrb[0].mxu0
          %v1187 = vadd.f32 %v1074, %v1186
          %v1188 = vpop.f32.mrb[0].mxu0
          %v1189 = vadd.f32 %v1076, %v1188
          %v1190 = vpop.f32.mrb[0].mxu0
          %v1191 = vadd.f32 %v1078, %v1190
          %v1192 = vpop.f32.mrb[0].mxu0
          %v1193 = vadd.f32 %v1080, %v1192
          %1194 = vmatprep.mubr.bf16.mxu0 0
          %1195 = vmatmul.mubr.bf16.gmra.mrb[0].mxu0 %v1013
          %v1196 = vpop.f32.mrb[0].mxu0
          %v1197 = vadd.f32 %v1084, %v1196
          %v1198 = vpop.f32.mrb[0].mxu0
          %v1199 = vadd.f32 %v1086, %v1198
          %v1200 = vpop.f32.mrb[0].mxu0
          %v1201 = vadd.f32 %v1088, %v1200
          %v1202 = vpop.f32.mrb[0].mxu0
          %v1203 = vadd.f32 %v1090, %v1202
          %1204 = vmatprep.mubr.bf16.mxu0 0
          %1205 = vmatmul.mubr.bf16.gmra.mrb[0].mxu0 %v1016
          %v1206 = vpop.f32.mrb[0].mxu0
          %v1207 = vadd.f32 %v1094, %v1206
          %v1208 = vpop.f32.mrb[0].mxu0
          %v1209 = vadd.f32 %v1096, %v1208
          %v1210 = vpop.f32.mrb[0].mxu0
          %v1211 = vadd.f32 %v1098, %v1210
          %v1212 = vpop.f32.mrb[0].mxu0
          %v1213 = vadd.f32 %v1100, %v1212
          %1214 = vmatprep.mubr.bf16.mxu0 0
          %1215 = vmatmul.mubr.bf16.gmra.mrb[0].mxu0 %v1019
          %v1216 = vpop.f32.mrb[0].mxu0
          %v1217 = vadd.f32 %v1104, %v1216
          %v1218 = vpop.f32.mrb[0].mxu0
          %v1219 = vadd.f32 %v1106, %v1218
          %v1220 = vpop.f32.mrb[0].mxu0
          %v1221 = vadd.f32 %v1108, %v1220
          %v1222 = vpop.f32.mrb[0].mxu0
          %v1223 = vadd.f32 %v1110, %v1222
          %1224 = vmatprep.mubr.bf16.mxu0 0
          %1225 = vmatmul.mubr.bf16.gmra.mrb[0].mxu0 %v1022
          %v1226 = vpop.f32.mrb[0].mxu0
          %v1227 = vadd.f32 %v1114, %v1226
          %v1228 = vpop.f32.mrb[0].mxu0
          %v1229 = vadd.f32 %v1116, %v1228
          %v1230 = vpop.f32.mrb[0].mxu0
          %v1231 = vadd.f32 %v1118, %v1230
          %v1232 = vpop.f32.mrb[0].mxu0
          %v1233 = vadd.f32 %v1120, %v1232
          %1234 = vmatprep.mubr.bf16.mxu0 0
          %1235 = vmatmul.mubr.bf16.gmra.mrb[0].mxu0 %v1025
          %v1236 = vpop.f32.mrb[0].mxu0
          %v1237 = vadd.f32 %v1124, %v1236
          %v1238 = vpop.f32.mrb[0].mxu0
          %v1239 = vadd.f32 %v1126, %v1238
          %v1240 = vpop.f32.mrb[0].mxu0
          %v1241 = vadd.f32 %v1128, %v1240
          %v1242 = vpop.f32.mrb[0].mxu0
          %v1243 = vadd.f32 %v1130, %v1242
          %1244 = vmatprep.mubr.bf16.mxu0 0
          %1245 = vmatmul.mubr.bf16.gmra.mrb[0].mxu0 %v1028
          %v1246 = vpop.f32.mrb[0].mxu0
          %v1247 = vadd.f32 %v1134, %v1246
          %v1248 = vpop.f32.mrb[0].mxu0
          %v1249 = vadd.f32 %v1136, %v1248
          %v1250 = vpop.f32.mrb[0].mxu0
          %v1251 = vadd.f32 %v1138, %v1250
          %v1252 = vpop.f32.mrb[0].mxu0
          %v1253 = vadd.f32 %v1140, %v1252
          %1254 = vmatprep.mubr.bf16.mxu0 0
          %1255 = vmatmul.mubr.bf16.gmra.mrb[0].mxu0 %v1031
          %v1256 = vpop.f32.mrb[0].mxu0
          %v1257 = vadd.f32 %v1144, %v1256
          %v1258 = vpop.f32.mrb[0].mxu0
          %v1259 = vadd.f32 %v1146, %v1258
          %v1260 = vpop.f32.mrb[0].mxu0
          %v1261 = vadd.f32 %v1148, %v1260
          %v1262 = vpop.f32.mrb[0].mxu0
          %v1263 = vadd.f32 %v1150, %v1262
          %1264 = vdwg.mxu0
          %vm1265 = vcmp.ge.f32.partialorder %v1187, 0.0
          %vm1266 = vcmp.ge.f32.partialorder %v1189, 0.0
          %vm1267 = vcmp.ge.f32.partialorder %v1191, 0.0
          %vm1268 = vcmp.ge.f32.partialorder %v1193, 0.0
          %vm1269 = vcmp.ge.f32.partialorder %v1197, 0.0
          %vm1270 = vcmp.ge.f32.partialorder %v1199, 0.0
          %vm1271 = vcmp.ge.f32.partialorder %v1201, 0.0
          %vm1272 = vcmp.ge.f32.partialorder %v1203, 0.0
          %vm1273 = vcmp.ge.f32.partialorder %v1207, 0.0
          %vm1274 = vcmp.ge.f32.partialorder %v1209, 0.0
          %vm1275 = vcmp.ge.f32.partialorder %v1211, 0.0
          %vm1276 = vcmp.ge.f32.partialorder %v1213, 0.0
          %vm1277 = vcmp.ge.f32.partialorder %v1217, 0.0
          %vm1278 = vcmp.ge.f32.partialorder %v1219, 0.0
          %vm1279 = vcmp.ge.f32.partialorder %v1221, 0.0
          %vm1280 = vcmp.ge.f32.partialorder %v1223, 0.0
          %vm1281 = vcmp.ge.f32.partialorder %v1227, 0.0
          %vm1282 = vcmp.ge.f32.partialorder %v1229, 0.0
          %vm1283 = vcmp.ge.f32.partialorder %v1231, 0.0
          %vm1284 = vcmp.ge.f32.partialorder %v1233, 0.0
          %vm1285 = vcmp.ge.f32.partialorder %v1237, 0.0
          %vm1286 = vcmp.ge.f32.partialorder %v1239, 0.0
          %vm1287 = vcmp.ge.f32.partialorder %v1241, 0.0
          %vm1288 = vcmp.ge.f32.partialorder %v1243, 0.0
          %vm1289 = vcmp.ge.f32.partialorder %v1247, 0.0
          %vm1290 = vcmp.ge.f32.partialorder %v1249, 0.0
          %vm1291 = vcmp.ge.f32.partialorder %v1251, 0.0
          %vm1292 = vcmp.ge.f32.partialorder %v1253, 0.0
          %vm1293 = vcmp.ge.f32.partialorder %v1257, 0.0
          %vm1294 = vcmp.ge.f32.partialorder %v1259, 0.0
          %vm1295 = vcmp.ge.f32.partialorder %v1261, 0.0
          %vm1296 = vcmp.ge.f32.partialorder %v1263, 0.0
          %v1297 = vmul.f32 %v1187, 0.01
          %v1298 = vmul.f32 %v1189, 0.01
          %v1299 = vmul.f32 %v1191, 0.01
          %v1300 = vmul.f32 %v1193, 0.01
          %v1301 = vmul.f32 %v1197, 0.01
          %v1302 = vmul.f32 %v1199, 0.01
          %v1303 = vmul.f32 %v1201, 0.01
          %v1304 = vmul.f32 %v1203, 0.01
          %v1305 = vmul.f32 %v1207, 0.01
          %v1306 = vmul.f32 %v1209, 0.01
          %v1307 = vmul.f32 %v1211, 0.01
          %v1308 = vmul.f32 %v1213, 0.01
          %v1309 = vmul.f32 %v1217, 0.01
          %v1310 = vmul.f32 %v1219, 0.01
          %v1311 = vmul.f32 %v1221, 0.01
          %v1312 = vmul.f32 %v1223, 0.01
          %v1313 = vmul.f32 %v1227, 0.01
          %v1314 = vmul.f32 %v1229, 0.01
          %v1315 = vmul.f32 %v1231, 0.01
          %v1316 = vmul.f32 %v1233, 0.01
          %v1317 = vmul.f32 %v1237, 0.01
          %v1318 = vmul.f32 %v1239, 0.01
          %v1319 = vmul.f32 %v1241, 0.01
          %v1320 = vmul.f32 %v1243, 0.01
          %v1321 = vmul.f32 %v1247, 0.01
          %v1322 = vmul.f32 %v1249, 0.01
          %v1323 = vmul.f32 %v1251, 0.01
          %v1324 = vmul.f32 %v1253, 0.01
          %v1325 = vmul.f32 %v1257, 0.01
          %v1326 = vmul.f32 %v1259, 0.01
          %v1327 = vmul.f32 %v1261, 0.01
          %v1328 = vmul.f32 %v1263, 0.01
          %v1329 = vsel %vm1265, %v1187, %v1297
          %v1330 = vsel %vm1266, %v1189, %v1298
          %v1331 = vsel %vm1267, %v1191, %v1299
          %v1332 = vsel %vm1268, %v1193, %v1300
          %v1333 = vsel %vm1269, %v1197, %v1301
          %v1334 = vsel %vm1270, %v1199, %v1302
          %v1335 = vsel %vm1271, %v1201, %v1303
          %v1336 = vsel %vm1272, %v1203, %v1304
          %v1337 = vsel %vm1273, %v1207, %v1305
          %v1338 = vsel %vm1274, %v1209, %v1306
          %v1339 = vsel %vm1275, %v1211, %v1307
          %v1340 = vsel %vm1276, %v1213, %v1308
          %v1341 = vsel %vm1277, %v1217, %v1309
          %v1342 = vsel %vm1278, %v1219, %v1310
          %v1343 = vsel %vm1279, %v1221, %v1311
          %v1344 = vsel %vm1280, %v1223, %v1312
          %v1345 = vsel %vm1281, %v1227, %v1313
          %v1346 = vsel %vm1282, %v1229, %v1314
          %v1347 = vsel %vm1283, %v1231, %v1315
          %v1348 = vsel %vm1284, %v1233, %v1316
          %v1349 = vsel %vm1285, %v1237, %v1317
          %v1350 = vsel %vm1286, %v1239, %v1318
          %v1351 = vsel %vm1287, %v1241, %v1319
          %v1352 = vsel %vm1288, %v1243, %v1320
          %v1353 = vsel %vm1289, %v1247, %v1321
          %v1354 = vsel %vm1290, %v1249, %v1322
          %v1355 = vsel %vm1291, %v1251, %v1323
          %v1356 = vsel %vm1292, %v1253, %v1324
          %v1357 = vsel %vm1293, %v1257, %v1325
          %v1358 = vsel %vm1294, %v1259, %v1326
          %v1359 = vsel %vm1295, %v1261, %v1327
          %v1360 = vsel %vm1296, %v1263, %v1328
          %v1361 = vpack.c.bf16 %v1331, %v1329
          %v1362 = vpack.c.bf16 %v1332, %v1330
          %v1363 = vpack.c.bf16 %v1335, %v1333
          %v1364 = vpack.c.bf16 %v1336, %v1334
          %v1365 = vpack.c.bf16 %v1339, %v1337
          %v1366 = vpack.c.bf16 %v1340, %v1338
          %v1367 = vpack.c.bf16 %v1343, %v1341
          %v1368 = vpack.c.bf16 %v1344, %v1342
          %v1369 = vpack.c.bf16 %v1347, %v1345
          %v1370 = vpack.c.bf16 %v1348, %v1346
          %v1371 = vpack.c.bf16 %v1351, %v1349
          %v1372 = vpack.c.bf16 %v1352, %v1350
          %v1373 = vpack.c.bf16 %v1355, %v1353
          %v1374 = vpack.c.bf16 %v1356, %v1354
          %v1375 = vpack.c.bf16 %v1359, %v1357
          %v1376 = vpack.c.bf16 %v1360, %v1358
          %1393 = vrot.lane.b32.xlu0 %v1361, 127
          %v1394 = vpop.permute.xlu0 %1393
          %1395 = vrot.lane.b32.xlu0 %v1362, 127
          %v1396 = vpop.permute.xlu0 %1395
          %1397 = vrot.lane.b32.xlu0 %v1363, 127
          %v1398 = vpop.permute.xlu0 %1397
          %1399 = vrot.lane.b32.xlu0 %v1364, 127
          %v1400 = vpop.permute.xlu0 %1399
          %1401 = vrot.lane.b32.xlu0 %v1365, 127
          %v1402 = vpop.permute.xlu0 %1401
          %1403 = vrot.lane.b32.xlu0 %v1366, 127
          %v1404 = vpop.permute.xlu0 %1403
          %1405 = vrot.lane.b32.xlu0 %v1367, 127
          %v1406 = vpop.permute.xlu0 %1405
          %1407 = vrot.lane.b32.xlu0 %v1368, 127
          %v1408 = vpop.permute.xlu0 %1407
          %1409 = vrot.lane.b32.xlu0 %v1369, 127
          %v1410 = vpop.permute.xlu0 %1409
          %1411 = vrot.lane.b32.xlu0 %v1370, 127
          %v1412 = vpop.permute.xlu0 %1411
          %1413 = vrot.lane.b32.xlu0 %v1371, 127
          %v1414 = vpop.permute.xlu0 %1413
          %1415 = vrot.lane.b32.xlu0 %v1372, 127
          %v1416 = vpop.permute.xlu0 %1415
          %1417 = vrot.lane.b32.xlu0 %v1373, 127
          %v1418 = vpop.permute.xlu0 %1417
          %1419 = vrot.lane.b32.xlu0 %v1374, 127
          %v1420 = vpop.permute.xlu0 %1419
          %1421 = vrot.lane.b32.xlu0 %v1375, 127
          %v1422 = vpop.permute.xlu0 %1421
          %1423 = vrot.lane.b32.xlu0 %v1376, 127
          %v1424 = vpop.permute.xlu0 %1423
          %v1425 = vsel %vm500, %v1394, %v1396
          %v1426 = vsel %vm500, %v1398, %v1400
          %v1427 = vsel %vm500, %v1402, %v1404
          %v1428 = vsel %vm500, %v1406, %v1408
          %v1429 = vsel %vm500, %v1410, %v1412
          %v1430 = vsel %vm500, %v1414, %v1416
          %v1431 = vsel %vm500, %v1418, %v1420
          %v1432 = vsel %vm500, %v1422, %v1424
          %1449 = vrot.lane.b32.xlu0 %v1361, 126
          %v1450 = vpop.permute.xlu0 %1449
          %1451 = vrot.lane.b32.xlu0 %v1362, 126
          %v1452 = vpop.permute.xlu0 %1451
          %1453 = vrot.lane.b32.xlu0 %v1363, 126
          %v1454 = vpop.permute.xlu0 %1453
          %1455 = vrot.lane.b32.xlu0 %v1364, 126
          %v1456 = vpop.permute.xlu0 %1455
          %1457 = vrot.lane.b32.xlu0 %v1365, 126
          %v1458 = vpop.permute.xlu0 %1457
          %1459 = vrot.lane.b32.xlu0 %v1366, 126
          %v1460 = vpop.permute.xlu0 %1459
          %1461 = vrot.lane.b32.xlu0 %v1367, 126
          %v1462 = vpop.permute.xlu0 %1461
          %1463 = vrot.lane.b32.xlu0 %v1368, 126
          %v1464 = vpop.permute.xlu0 %1463
          %1465 = vrot.lane.b32.xlu0 %v1369, 126
          %v1466 = vpop.permute.xlu0 %1465
          %1467 = vrot.lane.b32.xlu0 %v1370, 126
          %v1468 = vpop.permute.xlu0 %1467
          %1469 = vrot.lane.b32.xlu0 %v1371, 126
          %v1470 = vpop.permute.xlu0 %1469
          %1471 = vrot.lane.b32.xlu0 %v1372, 126
          %v1472 = vpop.permute.xlu0 %1471
          %1473 = vrot.lane.b32.xlu0 %v1373, 126
          %v1474 = vpop.permute.xlu0 %1473
          %1475 = vrot.lane.b32.xlu0 %v1374, 126
          %v1476 = vpop.permute.xlu0 %1475
          %1477 = vrot.lane.b32.xlu0 %v1375, 126
          %v1478 = vpop.permute.xlu0 %1477
          %1479 = vrot.lane.b32.xlu0 %v1376, 126
          %v1480 = vpop.permute.xlu0 %1479
          %v1481 = vsel %vm529, %v1450, %v1452
          %v1482 = vsel %vm529, %v1454, %v1456
          %v1483 = vsel %vm529, %v1458, %v1460
          %v1484 = vsel %vm529, %v1462, %v1464
          %v1485 = vsel %vm529, %v1466, %v1468
          %v1486 = vsel %vm529, %v1470, %v1472
          %v1487 = vsel %vm529, %v1474, %v1476
          %v1488 = vsel %vm529, %v1478, %v1480
          %1505 = vrot.lane.b32.xlu0 %v1361, 112
          %v1506 = vpop.permute.xlu0 %1505
          %1507 = vrot.lane.b32.xlu0 %v1362, 112
          %v1508 = vpop.permute.xlu0 %1507
          %1509 = vrot.lane.b32.xlu0 %v1363, 112
          %v1510 = vpop.permute.xlu0 %1509
          %1511 = vrot.lane.b32.xlu0 %v1364, 112
          %v1512 = vpop.permute.xlu0 %1511
          %1513 = vrot.lane.b32.xlu0 %v1365, 112
          %v1514 = vpop.permute.xlu0 %1513
          %1515 = vrot.lane.b32.xlu0 %v1366, 112
          %v1516 = vpop.permute.xlu0 %1515
          %1517 = vrot.lane.b32.xlu0 %v1367, 112
          %v1518 = vpop.permute.xlu0 %1517
          %1519 = vrot.lane.b32.xlu0 %v1368, 112
          %v1520 = vpop.permute.xlu0 %1519
          %1521 = vrot.lane.b32.xlu0 %v1369, 112
          %v1522 = vpop.permute.xlu0 %1521
          %1523 = vrot.lane.b32.xlu0 %v1370, 112
          %v1524 = vpop.permute.xlu0 %1523
          %1525 = vrot.lane.b32.xlu0 %v1371, 112
          %v1526 = vpop.permute.xlu0 %1525
          %1527 = vrot.lane.b32.xlu0 %v1372, 112
          %v1528 = vpop.permute.xlu0 %1527
          %1529 = vrot.lane.b32.xlu0 %v1373, 112
          %v1530 = vpop.permute.xlu0 %1529
          %1531 = vrot.lane.b32.xlu0 %v1374, 112
          %v1532 = vpop.permute.xlu0 %1531
          %1533 = vrot.lane.b32.xlu0 %v1375, 112
          %v1534 = vpop.permute.xlu0 %1533
          %1535 = vrot.lane.b32.xlu0 %v1376, 112
          %v1536 = vpop.permute.xlu0 %1535
          %v1537 = vsel %vm558, %v1506, %v1508
          %v1538 = vsel %vm558, %v1510, %v1512
          %v1539 = vsel %vm558, %v1514, %v1516
          %v1540 = vsel %vm558, %v1518, %v1520
          %v1541 = vsel %vm558, %v1522, %v1524
          %v1542 = vsel %vm558, %v1526, %v1528
          %v1543 = vsel %vm558, %v1530, %v1532
          %v1544 = vsel %vm558, %v1534, %v1536
          %1561 = vrot.lane.b32.xlu0 %v1361, 111
          %v1562 = vpop.permute.xlu0 %1561
          %1563 = vrot.lane.b32.xlu0 %v1362, 111
          %v1564 = vpop.permute.xlu0 %1563
          %1565 = vrot.lane.b32.xlu0 %v1363, 111
          %v1566 = vpop.permute.xlu0 %1565
          %1567 = vrot.lane.b32.xlu0 %v1364, 111
          %v1568 = vpop.permute.xlu0 %1567
          %1569 = vrot.lane.b32.xlu0 %v1365, 111
          %v1570 = vpop.permute.xlu0 %1569
          %1571 = vrot.lane.b32.xlu0 %v1366, 111
          %v1572 = vpop.permute.xlu0 %1571
          %1573 = vrot.lane.b32.xlu0 %v1367, 111
          %v1574 = vpop.permute.xlu0 %1573
          %1575 = vrot.lane.b32.xlu0 %v1368, 111
          %v1576 = vpop.permute.xlu0 %1575
          %1577 = vrot.lane.b32.xlu0 %v1369, 111
          %v1578 = vpop.permute.xlu0 %1577
          %1579 = vrot.lane.b32.xlu0 %v1370, 111
          %v1580 = vpop.permute.xlu0 %1579
          %1581 = vrot.lane.b32.xlu0 %v1371, 111
          %v1582 = vpop.permute.xlu0 %1581
          %1583 = vrot.lane.b32.xlu0 %v1372, 111
          %v1584 = vpop.permute.xlu0 %1583
          %1585 = vrot.lane.b32.xlu0 %v1373, 111
          %v1586 = vpop.permute.xlu0 %1585
          %1587 = vrot.lane.b32.xlu0 %v1374, 111
          %v1588 = vpop.permute.xlu0 %1587
          %1589 = vrot.lane.b32.xlu0 %v1375, 111
          %v1590 = vpop.permute.xlu0 %1589
          %1591 = vrot.lane.b32.xlu0 %v1376, 111
          %v1592 = vpop.permute.xlu0 %1591
          %v1593 = vsel %vm582, %v1562, %v1564
          %v1594 = vsel %vm582, %v1566, %v1568
          %v1595 = vsel %vm582, %v1570, %v1572
          %v1596 = vsel %vm582, %v1574, %v1576
          %v1597 = vsel %vm582, %v1578, %v1580
          %v1598 = vsel %vm582, %v1582, %v1584
          %v1599 = vsel %vm582, %v1586, %v1588
          %v1600 = vsel %vm582, %v1590, %v1592
          %1617 = vrot.lane.b32.xlu0 %v1361, 110
          %v1618 = vpop.permute.xlu0 %1617
          %1619 = vrot.lane.b32.xlu0 %v1362, 110
          %v1620 = vpop.permute.xlu0 %1619
          %1621 = vrot.lane.b32.xlu0 %v1363, 110
          %v1622 = vpop.permute.xlu0 %1621
          %1623 = vrot.lane.b32.xlu0 %v1364, 110
          %v1624 = vpop.permute.xlu0 %1623
          %1625 = vrot.lane.b32.xlu0 %v1365, 110
          %v1626 = vpop.permute.xlu0 %1625
          %1627 = vrot.lane.b32.xlu0 %v1366, 110
          %v1628 = vpop.permute.xlu0 %1627
          %1629 = vrot.lane.b32.xlu0 %v1367, 110
          %v1630 = vpop.permute.xlu0 %1629
          %1631 = vrot.lane.b32.xlu0 %v1368, 110
          %v1632 = vpop.permute.xlu0 %1631
          %1633 = vrot.lane.b32.xlu0 %v1369, 110
          %v1634 = vpop.permute.xlu0 %1633
          %1635 = vrot.lane.b32.xlu0 %v1370, 110
          %v1636 = vpop.permute.xlu0 %1635
          %1637 = vrot.lane.b32.xlu0 %v1371, 110
          %v1638 = vpop.permute.xlu0 %1637
          %1639 = vrot.lane.b32.xlu0 %v1372, 110
          %v1640 = vpop.permute.xlu0 %1639
          %1641 = vrot.lane.b32.xlu0 %v1373, 110
          %v1642 = vpop.permute.xlu0 %1641
          %1643 = vrot.lane.b32.xlu0 %v1374, 110
          %v1644 = vpop.permute.xlu0 %1643
          %1645 = vrot.lane.b32.xlu0 %v1375, 110
          %v1646 = vpop.permute.xlu0 %1645
          %1647 = vrot.lane.b32.xlu0 %v1376, 110
          %v1648 = vpop.permute.xlu0 %1647
          %v1649 = vsel %vm611, %v1618, %v1620
          %v1650 = vsel %vm611, %v1622, %v1624
          %v1651 = vsel %vm611, %v1626, %v1628
          %v1652 = vsel %vm611, %v1630, %v1632
          %v1653 = vsel %vm611, %v1634, %v1636
          %v1654 = vsel %vm611, %v1638, %v1640
          %v1655 = vsel %vm611, %v1642, %v1644
          %v1656 = vsel %vm611, %v1646, %v1648
          %1673 = vrot.lane.b32.xlu0 %v1361, 96
          %v1674 = vpop.permute.xlu0 %1673
          %1675 = vrot.lane.b32.xlu0 %v1362, 96
          %v1676 = vpop.permute.xlu0 %1675
          %1677 = vrot.lane.b32.xlu0 %v1363, 96
          %v1678 = vpop.permute.xlu0 %1677
          %1679 = vrot.lane.b32.xlu0 %v1364, 96
          %v1680 = vpop.permute.xlu0 %1679
          %1681 = vrot.lane.b32.xlu0 %v1365, 96
          %v1682 = vpop.permute.xlu0 %1681
          %1683 = vrot.lane.b32.xlu0 %v1366, 96
          %v1684 = vpop.permute.xlu0 %1683
          %1685 = vrot.lane.b32.xlu0 %v1367, 96
          %v1686 = vpop.permute.xlu0 %1685
          %1687 = vrot.lane.b32.xlu0 %v1368, 96
          %v1688 = vpop.permute.xlu0 %1687
          %1689 = vrot.lane.b32.xlu0 %v1369, 96
          %v1690 = vpop.permute.xlu0 %1689
          %1691 = vrot.lane.b32.xlu0 %v1370, 96
          %v1692 = vpop.permute.xlu0 %1691
          %1693 = vrot.lane.b32.xlu0 %v1371, 96
          %v1694 = vpop.permute.xlu0 %1693
          %1695 = vrot.lane.b32.xlu0 %v1372, 96
          %v1696 = vpop.permute.xlu0 %1695
          %1697 = vrot.lane.b32.xlu0 %v1373, 96
          %v1698 = vpop.permute.xlu0 %1697
          %1699 = vrot.lane.b32.xlu0 %v1374, 96
          %v1700 = vpop.permute.xlu0 %1699
          %1701 = vrot.lane.b32.xlu0 %v1375, 96
          %v1702 = vpop.permute.xlu0 %1701
          %1703 = vrot.lane.b32.xlu0 %v1376, 96
          %v1704 = vpop.permute.xlu0 %1703
          %v1705 = vsel %vm640, %v1674, %v1676
          %v1706 = vsel %vm640, %v1678, %v1680
          %v1707 = vsel %vm640, %v1682, %v1684
          %v1708 = vsel %vm640, %v1686, %v1688
          %v1709 = vsel %vm640, %v1690, %v1692
          %v1710 = vsel %vm640, %v1694, %v1696
          %v1711 = vsel %vm640, %v1698, %v1700
          %v1712 = vsel %vm640, %v1702, %v1704
          %1729 = vrot.lane.b32.xlu0 %v1361, 95
          %v1730 = vpop.permute.xlu0 %1729
          %1731 = vrot.lane.b32.xlu0 %v1362, 95
          %v1732 = vpop.permute.xlu0 %1731
          %1733 = vrot.lane.b32.xlu0 %v1363, 95
          %v1734 = vpop.permute.xlu0 %1733
          %1735 = vrot.lane.b32.xlu0 %v1364, 95
          %v1736 = vpop.permute.xlu0 %1735
          %1737 = vrot.lane.b32.xlu0 %v1365, 95
          %v1738 = vpop.permute.xlu0 %1737
          %1739 = vrot.lane.b32.xlu0 %v1366, 95
          %v1740 = vpop.permute.xlu0 %1739
          %1741 = vrot.lane.b32.xlu0 %v1367, 95
          %v1742 = vpop.permute.xlu0 %1741
          %1743 = vrot.lane.b32.xlu0 %v1368, 95
          %v1744 = vpop.permute.xlu0 %1743
          %1745 = vrot.lane.b32.xlu0 %v1369, 95
          %v1746 = vpop.permute.xlu0 %1745
          %1747 = vrot.lane.b32.xlu0 %v1370, 95
          %v1748 = vpop.permute.xlu0 %1747
          %1749 = vrot.lane.b32.xlu0 %v1371, 95
          %v1750 = vpop.permute.xlu0 %1749
          %1751 = vrot.lane.b32.xlu0 %v1372, 95
          %v1752 = vpop.permute.xlu0 %1751
          %1753 = vrot.lane.b32.xlu0 %v1373, 95
          %v1754 = vpop.permute.xlu0 %1753
          %1755 = vrot.lane.b32.xlu0 %v1374, 95
          %v1756 = vpop.permute.xlu0 %1755
          %1757 = vrot.lane.b32.xlu0 %v1375, 95
          %v1758 = vpop.permute.xlu0 %1757
          %1759 = vrot.lane.b32.xlu0 %v1376, 95
          %v1760 = vpop.permute.xlu0 %1759
          %v1761 = vsel %vm669, %v1730, %v1732
          %v1762 = vsel %vm669, %v1734, %v1736
          %v1763 = vsel %vm669, %v1738, %v1740
          %v1764 = vsel %vm669, %v1742, %v1744
          %v1765 = vsel %vm669, %v1746, %v1748
          %v1766 = vsel %vm669, %v1750, %v1752
          %v1767 = vsel %vm669, %v1754, %v1756
          %v1768 = vsel %vm669, %v1758, %v1760
          %1785 = vrot.lane.b32.xlu0 %v1361, 94
          %v1786 = vpop.permute.xlu0 %1785
          %1787 = vrot.lane.b32.xlu0 %v1362, 94
          %v1788 = vpop.permute.xlu0 %1787
          %1789 = vrot.lane.b32.xlu0 %v1363, 94
          %v1790 = vpop.permute.xlu0 %1789
          %1791 = vrot.lane.b32.xlu0 %v1364, 94
          %v1792 = vpop.permute.xlu0 %1791
          %1793 = vrot.lane.b32.xlu0 %v1365, 94
          %v1794 = vpop.permute.xlu0 %1793
          %1795 = vrot.lane.b32.xlu0 %v1366, 94
          %v1796 = vpop.permute.xlu0 %1795
          %1797 = vrot.lane.b32.xlu0 %v1367, 94
          %v1798 = vpop.permute.xlu0 %1797
          %1799 = vrot.lane.b32.xlu0 %v1368, 94
          %v1800 = vpop.permute.xlu0 %1799
          %1801 = vrot.lane.b32.xlu0 %v1369, 94
          %v1802 = vpop.permute.xlu0 %1801
          %1803 = vrot.lane.b32.xlu0 %v1370, 94
          %v1804 = vpop.permute.xlu0 %1803
          %1805 = vrot.lane.b32.xlu0 %v1371, 94
          %v1806 = vpop.permute.xlu0 %1805
          %1807 = vrot.lane.b32.xlu0 %v1372, 94
          %v1808 = vpop.permute.xlu0 %1807
          %1809 = vrot.lane.b32.xlu0 %v1373, 94
          %v1810 = vpop.permute.xlu0 %1809
          %1811 = vrot.lane.b32.xlu0 %v1374, 94
          %v1812 = vpop.permute.xlu0 %1811
          %1813 = vrot.lane.b32.xlu0 %v1375, 94
          %v1814 = vpop.permute.xlu0 %1813
          %1815 = vrot.lane.b32.xlu0 %v1376, 94
          %v1816 = vpop.permute.xlu0 %1815
          %v1817 = vsel %vm689, %v1786, %v1788
          %v1818 = vsel %vm689, %v1790, %v1792
          %v1819 = vsel %vm689, %v1794, %v1796
          %v1820 = vsel %vm689, %v1798, %v1800
          %v1821 = vsel %vm689, %v1802, %v1804
          %v1822 = vsel %vm689, %v1806, %v1808
          %v1823 = vsel %vm689, %v1810, %v1812
          %v1824 = vsel %vm689, %v1814, %v1816
          %v1841 = vld [vmem:[%s3] sm:$0xff]
          %v1842 = vld [vmem:[%s3 + $0x8] sm:$0xff]
          %v1843 = vld [vmem:[%s3 + $0x10] sm:$0xff]
          %v1844 = vld [vmem:[%s3 + $0x18] sm:$0xff]
          %v1845 = vld [vmem:[%s3 + $0x20] sm:$0xf]
          %v1846 = vld [vmem:[%s3 + $0x24] sm:$0xff]
          %v1847 = vld [vmem:[%s3 + $0x2c] sm:$0xff]
          %v1848 = vld [vmem:[%s3 + $0x34] sm:$0xff]
          %v1849 = vld [vmem:[%s3 + $0x3c] sm:$0xff]
          %v1850 = vld [vmem:[%s3 + $0x44] sm:$0xf]
          %v1851 = vld [vmem:[%s3 + $0x48] sm:$0xff]
          %v1852 = vld [vmem:[%s3 + $0x50] sm:$0xff]
          %v1853 = vld [vmem:[%s3 + $0x58] sm:$0xff]
          %v1854 = vld [vmem:[%s3 + $0x60] sm:$0xff]
          %v1855 = vld [vmem:[%s3 + $0x68] sm:$0xf]
          %v1856 = vld [vmem:[%s3 + $0x6c] sm:$0xff]
          %v1857 = vld [vmem:[%s3 + $0x74] sm:$0xff]
          %v1858 = vld [vmem:[%s3 + $0x7c] sm:$0xff]
          %v1859 = vld [vmem:[%s3 + $0x84] sm:$0xff]
          %v1860 = vld [vmem:[%s3 + $0x8c] sm:$0xf]
          %v1861 = vld [vmem:[%s3 + $0x90] sm:$0xff]
          %v1862 = vld [vmem:[%s3 + $0x98] sm:$0xff]
          %v1863 = vld [vmem:[%s3 + $0xa0] sm:$0xff]
          %v1864 = vld [vmem:[%s3 + $0xa8] sm:$0xff]
          %v1865 = vld [vmem:[%s3 + $0xb0] sm:$0xf]
          %v1866 = vld [vmem:[%s3 + $0xb4] sm:$0xff]
          %v1867 = vld [vmem:[%s3 + $0xbc] sm:$0xff]
          %v1868 = vld [vmem:[%s3 + $0xc4] sm:$0xff]
          %v1869 = vld [vmem:[%s3 + $0xcc] sm:$0xff]
          %v1870 = vld [vmem:[%s3 + $0xd4] sm:$0xf]
          %v1871 = vld [vmem:[%s3 + $0xd8] sm:$0xff]
          %v1872 = vld [vmem:[%s3 + $0xe0] sm:$0xff]
          %v1873 = vld [vmem:[%s3 + $0xe8] sm:$0xff]
          %v1874 = vld [vmem:[%s3 + $0xf0] sm:$0xff]
          %v1875 = vld [vmem:[%s3 + $0xf8] sm:$0xf]
          %v1876 = vld [vmem:[%s3 + $0xfc] sm:$0xff]
          %v1877 = vld [vmem:[%s3 + $0x104] sm:$0xff]
          %v1878 = vld [vmem:[%s3 + $0x10c] sm:$0xff]
          %v1879 = vld [vmem:[%s3 + $0x114] sm:$0xff]
          %v1880 = vld [vmem:[%s3 + $0x11c] sm:$0xf]
          %v1881 = vld [vmem:[%s3 + $0x120] sm:$0xff]
          %v1882 = vld [vmem:[%s3 + $0x128] sm:$0xff]
          %v1883 = vld [vmem:[%s3 + $0x130] sm:$0xff]
          %v1884 = vld [vmem:[%s3 + $0x138] sm:$0xff]
          %v1885 = vld [vmem:[%s3 + $0x140] sm:$0xf]
          %v1886 = vld [vmem:[%s3 + $0x144] sm:$0xff]
          %v1887 = vld [vmem:[%s3 + $0x14c] sm:$0xff]
          %v1888 = vld [vmem:[%s3 + $0x154] sm:$0xff]
          %v1889 = vld [vmem:[%s3 + $0x15c] sm:$0xff]
          %v1890 = vld [vmem:[%s3 + $0x164] sm:$0xf]
          %v1891 = vld [vmem:[%s3 + $0x168] sm:$0xff]
          %v1892 = vld [vmem:[%s3 + $0x170] sm:$0xff]
          %v1893 = vld [vmem:[%s3 + $0x178] sm:$0xff]
          %v1894 = vld [vmem:[%s3 + $0x180] sm:$0xff]
          %v1895 = vld [vmem:[%s3 + $0x188] sm:$0xf]
          %v1896 = vld [vmem:[%s3 + $0x18c] sm:$0xff]
          %v1897 = vld [vmem:[%s3 + $0x194] sm:$0xff]
          %v1898 = vld [vmem:[%s3 + $0x19c] sm:$0xff]
          %v1899 = vld [vmem:[%s3 + $0x1a4] sm:$0xff]
          %v1900 = vld [vmem:[%s3 + $0x1ac] sm:$0xf]
          %v1901 = vld [vmem:[%s3 + $0x1b0] sm:$0xff]
          %v1902 = vld [vmem:[%s3 + $0x1b8] sm:$0xff]
          %v1903 = vld [vmem:[%s3 + $0x1c0] sm:$0xff]
          %v1904 = vld [vmem:[%s3 + $0x1c8] sm:$0xff]
          %v1905 = vld [vmem:[%s3 + $0x1d0] sm:$0xf]
          %v1906 = vld [vmem:[%s3 + $0x1d4] sm:$0xff]
          %v1907 = vld [vmem:[%s3 + $0x1dc] sm:$0xff]
          %v1908 = vld [vmem:[%s3 + $0x1e4] sm:$0xff]
          %v1909 = vld [vmem:[%s3 + $0x1ec] sm:$0xff]
          %v1910 = vld [vmem:[%s3 + $0x1f4] sm:$0xf]
          %v1911 = vld [vmem:[%s3 + $0x1f8] sm:$0xff]
          %v1912 = vld [vmem:[%s3 + $0x200] sm:$0xff]
          %v1913 = vld [vmem:[%s3 + $0x208] sm:$0xff]
          %v1914 = vld [vmem:[%s3 + $0x210] sm:$0xff]
          %v1915 = vld [vmem:[%s3 + $0x218] sm:$0xf]
          %v1916 = vld [vmem:[%s3 + $0x21c] sm:$0xff]
          %v1917 = vld [vmem:[%s3 + $0x224] sm:$0xff]
          %v1918 = vld [vmem:[%s3 + $0x22c] sm:$0xff]
          %v1919 = vld [vmem:[%s3 + $0x234] sm:$0xff]
          %v1920 = vld [vmem:[%s3 + $0x23c] sm:$0xf]
          %v1921 = vld [vmem:[%s4] sm:$0xff]
          %v1922 = vld [vmem:[%s4 + $0x8] sm:$0xff]
          %v1923 = vld [vmem:[%s4 + $0x10] sm:$0xff]
          %v1924 = vld [vmem:[%s4 + $0x18] sm:$0xff]
          %v1925 = vld [vmem:[%s4 + $0x20] sm:$0xff]
          %v1926 = vld [vmem:[%s4 + $0x28] sm:$0xff]
          %v1927 = vld [vmem:[%s4 + $0x30] sm:$0xff]
          %v1928 = vld [vmem:[%s4 + $0x38] sm:$0xff]
          %v1929 = vld [vmem:[%s4 + $0x40] sm:$0xff]
          %v1930 = vld [vmem:[%s4 + $0x48] sm:$0xff]
          %v1931 = vld [vmem:[%s4 + $0x50] sm:$0xff]
          %v1932 = vld [vmem:[%s4 + $0x58] sm:$0xff]
          %v1933 = vld [vmem:[%s4 + $0x60] sm:$0xff]
          %v1934 = vld [vmem:[%s4 + $0x68] sm:$0xff]
          %v1935 = vld [vmem:[%s4 + $0x70] sm:$0xff]
          %v1936 = vld [vmem:[%s4 + $0x78] sm:$0xff]
          %1938 = vset.pattern.permute.xlu0 0
          %1939 = vperm.xlu0 %1938, %v1921
          %v1940 = vpop.permute.xlu0 %1939
          %1943 = vset.pattern.permute.xlu0 0
          %1944 = vperm.xlu0 %1943, %v1922
          %v1945 = vpop.permute.xlu0 %1944
          %1948 = vset.pattern.permute.xlu0 0
          %1949 = vperm.xlu0 %1948, %v1923
          %v1950 = vpop.permute.xlu0 %1949
          %1953 = vset.pattern.permute.xlu0 0
          %1954 = vperm.xlu0 %1953, %v1924
          %v1955 = vpop.permute.xlu0 %1954
          %1958 = vset.pattern.permute.xlu0 0
          %1959 = vperm.xlu0 %1958, %v1925
          %v1960 = vpop.permute.xlu0 %1959
          %1963 = vset.pattern.permute.xlu0 0
          %1964 = vperm.xlu0 %1963, %v1926
          %v1965 = vpop.permute.xlu0 %1964
          %1968 = vset.pattern.permute.xlu0 0
          %1969 = vperm.xlu0 %1968, %v1927
          %v1970 = vpop.permute.xlu0 %1969
          %1973 = vset.pattern.permute.xlu0 0
          %1974 = vperm.xlu0 %1973, %v1928
          %v1975 = vpop.permute.xlu0 %1974
          %1978 = vset.pattern.permute.xlu0 0
          %1979 = vperm.xlu0 %1978, %v1929
          %v1980 = vpop.permute.xlu0 %1979
          %1983 = vset.pattern.permute.xlu0 0
          %1984 = vperm.xlu0 %1983, %v1930
          %v1985 = vpop.permute.xlu0 %1984
          %1988 = vset.pattern.permute.xlu0 0
          %1989 = vperm.xlu0 %1988, %v1931
          %v1990 = vpop.permute.xlu0 %1989
          %1993 = vset.pattern.permute.xlu0 0
          %1994 = vperm.xlu0 %1993, %v1932
          %v1995 = vpop.permute.xlu0 %1994
          %1998 = vset.pattern.permute.xlu0 0
          %1999 = vperm.xlu0 %1998, %v1933
          %v2000 = vpop.permute.xlu0 %1999
          %2003 = vset.pattern.permute.xlu0 0
          %2004 = vperm.xlu0 %2003, %v1934
          %v2005 = vpop.permute.xlu0 %2004
          %2008 = vset.pattern.permute.xlu0 0
          %2009 = vperm.xlu0 %2008, %v1935
          %v2010 = vpop.permute.xlu0 %2009
          %2013 = vset.pattern.permute.xlu0 0
          %2014 = vperm.xlu0 %2013, %v1936
          %v2015 = vpop.permute.xlu0 %2014
          %v2097 = vunpack.c.l.b16 %v1841
          %v2098 = vunpack.c.h.b16 %v1841
          %v2099 = vunpack.c.l.b16 %v1842
          %v2100 = vunpack.c.h.b16 %v1842
          %v2101 = vunpack.c.l.b16 %v1843
          %v2102 = vunpack.c.h.b16 %v1843
          %v2103 = vunpack.c.l.b16 %v1844
          %v2104 = vunpack.c.h.b16 %v1844
          %v2105 = vunpack.c.l.b16 %v1845
          %v2106 = vunpack.c.l.b16 %v1846
          %v2107 = vunpack.c.h.b16 %v1846
          %v2108 = vunpack.c.l.b16 %v1847
          %v2109 = vunpack.c.h.b16 %v1847
          %v2110 = vunpack.c.l.b16 %v1848
          %v2111 = vunpack.c.h.b16 %v1848
          %v2112 = vunpack.c.l.b16 %v1849
          %v2113 = vunpack.c.h.b16 %v1849
          %v2114 = vunpack.c.l.b16 %v1850
          %v2115 = vunpack.c.l.b16 %v1851
          %v2116 = vunpack.c.h.b16 %v1851
          %v2117 = vunpack.c.l.b16 %v1852
          %v2118 = vunpack.c.h.b16 %v1852
          %v2119 = vunpack.c.l.b16 %v1853
          %v2120 = vunpack.c.h.b16 %v1853
          %v2121 = vunpack.c.l.b16 %v1854
          %v2122 = vunpack.c.h.b16 %v1854
          %v2123 = vunpack.c.l.b16 %v1855
          %v2124 = vunpack.c.l.b16 %v1856
          %v2125 = vunpack.c.h.b16 %v1856
          %v2126 = vunpack.c.l.b16 %v1857
          %v2127 = vunpack.c.h.b16 %v1857
          %v2128 = vunpack.c.l.b16 %v1858
          %v2129 = vunpack.c.h.b16 %v1858
          %v2130 = vunpack.c.l.b16 %v1859
          %v2131 = vunpack.c.h.b16 %v1859
          %v2132 = vunpack.c.l.b16 %v1860
          %v2133 = vunpack.c.l.b16 %v1861
          %v2134 = vunpack.c.h.b16 %v1861
          %v2135 = vunpack.c.l.b16 %v1862
          %v2136 = vunpack.c.h.b16 %v1862
          %v2137 = vunpack.c.l.b16 %v1863
          %v2138 = vunpack.c.h.b16 %v1863
          %v2139 = vunpack.c.l.b16 %v1864
          %v2140 = vunpack.c.h.b16 %v1864
          %v2141 = vunpack.c.l.b16 %v1865
          %v2142 = vunpack.c.l.b16 %v1866
          %v2143 = vunpack.c.h.b16 %v1866
          %v2144 = vunpack.c.l.b16 %v1867
          %v2145 = vunpack.c.h.b16 %v1867
          %v2146 = vunpack.c.l.b16 %v1868
          %v2147 = vunpack.c.h.b16 %v1868
          %v2148 = vunpack.c.l.b16 %v1869
          %v2149 = vunpack.c.h.b16 %v1869
          %v2150 = vunpack.c.l.b16 %v1870
          %v2151 = vunpack.c.l.b16 %v1871
          %v2152 = vunpack.c.h.b16 %v1871
          %v2153 = vunpack.c.l.b16 %v1872
          %v2154 = vunpack.c.h.b16 %v1872
          %v2155 = vunpack.c.l.b16 %v1873
          %v2156 = vunpack.c.h.b16 %v1873
          %v2157 = vunpack.c.l.b16 %v1874
          %v2158 = vunpack.c.h.b16 %v1874
          %v2159 = vunpack.c.l.b16 %v1875
          %v2160 = vunpack.c.l.b16 %v1876
          %v2161 = vunpack.c.h.b16 %v1876
          %v2162 = vunpack.c.l.b16 %v1877
          %v2163 = vunpack.c.h.b16 %v1877
          %v2164 = vunpack.c.l.b16 %v1878
          %v2165 = vunpack.c.h.b16 %v1878
          %v2166 = vunpack.c.l.b16 %v1879
          %v2167 = vunpack.c.h.b16 %v1879
          %v2168 = vunpack.c.l.b16 %v1880
          %v2169 = vunpack.c.l.b16 %v1881
          %v2170 = vunpack.c.h.b16 %v1881
          %v2171 = vunpack.c.l.b16 %v1882
          %v2172 = vunpack.c.h.b16 %v1882
          %v2173 = vunpack.c.l.b16 %v1883
          %v2174 = vunpack.c.h.b16 %v1883
          %v2175 = vunpack.c.l.b16 %v1884
          %v2176 = vunpack.c.h.b16 %v1884
          %v2177 = vunpack.c.l.b16 %v1885
          %v2178 = vunpack.c.l.b16 %v1886
          %v2179 = vunpack.c.h.b16 %v1886
          %v2180 = vunpack.c.l.b16 %v1887
          %v2181 = vunpack.c.h.b16 %v1887
          %v2182 = vunpack.c.l.b16 %v1888
          %v2183 = vunpack.c.h.b16 %v1888
          %v2184 = vunpack.c.l.b16 %v1889
          %v2185 = vunpack.c.h.b16 %v1889
          %v2186 = vunpack.c.l.b16 %v1890
          %v2187 = vunpack.c.l.b16 %v1891
          %v2188 = vunpack.c.h.b16 %v1891
          %v2189 = vunpack.c.l.b16 %v1892
          %v2190 = vunpack.c.h.b16 %v1892
          %v2191 = vunpack.c.l.b16 %v1893
          %v2192 = vunpack.c.h.b16 %v1893
          %v2193 = vunpack.c.l.b16 %v1894
          %v2194 = vunpack.c.h.b16 %v1894
          %v2195 = vunpack.c.l.b16 %v1895
          %v2196 = vunpack.c.l.b16 %v1896
          %v2197 = vunpack.c.h.b16 %v1896
          %v2198 = vunpack.c.l.b16 %v1897
          %v2199 = vunpack.c.h.b16 %v1897
          %v2200 = vunpack.c.l.b16 %v1898
          %v2201 = vunpack.c.h.b16 %v1898
          %v2202 = vunpack.c.l.b16 %v1899
          %v2203 = vunpack.c.h.b16 %v1899
          %v2204 = vunpack.c.l.b16 %v1900
          %v2205 = vunpack.c.l.b16 %v1901
          %v2206 = vunpack.c.h.b16 %v1901
          %v2207 = vunpack.c.l.b16 %v1902
          %v2208 = vunpack.c.h.b16 %v1902
          %v2209 = vunpack.c.l.b16 %v1903
          %v2210 = vunpack.c.h.b16 %v1903
          %v2211 = vunpack.c.l.b16 %v1904
          %v2212 = vunpack.c.h.b16 %v1904
          %v2213 = vunpack.c.l.b16 %v1905
          %v2214 = vunpack.c.l.b16 %v1906
          %v2215 = vunpack.c.h.b16 %v1906
          %v2216 = vunpack.c.l.b16 %v1907
          %v2217 = vunpack.c.h.b16 %v1907
          %v2218 = vunpack.c.l.b16 %v1908
          %v2219 = vunpack.c.h.b16 %v1908
          %v2220 = vunpack.c.l.b16 %v1909
          %v2221 = vunpack.c.h.b16 %v1909
          %v2222 = vunpack.c.l.b16 %v1910
          %v2223 = vunpack.c.l.b16 %v1911
          %v2224 = vunpack.c.h.b16 %v1911
          %v2225 = vunpack.c.l.b16 %v1912
          %v2226 = vunpack.c.h.b16 %v1912
          %v2227 = vunpack.c.l.b16 %v1913
          %v2228 = vunpack.c.h.b16 %v1913
          %v2229 = vunpack.c.l.b16 %v1914
          %v2230 = vunpack.c.h.b16 %v1914
          %v2231 = vunpack.c.l.b16 %v1915
          %v2232 = vunpack.c.l.b16 %v1916
          %v2233 = vunpack.c.h.b16 %v1916
          %v2234 = vunpack.c.l.b16 %v1917
          %v2235 = vunpack.c.h.b16 %v1917
          %v2236 = vunpack.c.l.b16 %v1918
          %v2237 = vunpack.c.h.b16 %v1918
          %v2238 = vunpack.c.l.b16 %v1919
          %v2239 = vunpack.c.h.b16 %v1919
          %v2240 = vunpack.c.l.b16 %v1920
          %v2241 = vpack.c.b16 %v2106, %v2097
          %v2242 = vpack.c.b16 %v2107, %v2098
          %v2243 = vpack.c.b16 %v2108, %v2099
          %v2244 = vpack.c.b16 %v2109, %v2100
          %v2245 = vpack.c.b16 %v2110, %v2101
          %v2246 = vpack.c.b16 %v2111, %v2102
          %v2247 = vpack.c.b16 %v2112, %v2103
          %v2248 = vpack.c.b16 %v2113, %v2104
          %v2249 = vpack.c.b16 %v2114, %v2105
          %v2250 = vpack.c.b16 %v2124, %v2115
          %v2251 = vpack.c.b16 %v2125, %v2116
          %v2252 = vpack.c.b16 %v2126, %v2117
          %v2253 = vpack.c.b16 %v2127, %v2118
          %v2254 = vpack.c.b16 %v2128, %v2119
          %v2255 = vpack.c.b16 %v2129, %v2120
          %v2256 = vpack.c.b16 %v2130, %v2121
          %v2257 = vpack.c.b16 %v2131, %v2122
          %v2258 = vpack.c.b16 %v2132, %v2123
          %v2259 = vpack.c.b16 %v2142, %v2133
          %v2260 = vpack.c.b16 %v2143, %v2134
          %v2261 = vpack.c.b16 %v2144, %v2135
          %v2262 = vpack.c.b16 %v2145, %v2136
          %v2263 = vpack.c.b16 %v2146, %v2137
          %v2264 = vpack.c.b16 %v2147, %v2138
          %v2265 = vpack.c.b16 %v2148, %v2139
          %v2266 = vpack.c.b16 %v2149, %v2140
          %v2267 = vpack.c.b16 %v2150, %v2141
          %v2268 = vpack.c.b16 %v2160, %v2151
          %v2269 = vpack.c.b16 %v2161, %v2152
          %v2270 = vpack.c.b16 %v2162, %v2153
          %v2271 = vpack.c.b16 %v2163, %v2154
          %v2272 = vpack.c.b16 %v2164, %v2155
          %v2273 = vpack.c.b16 %v2165, %v2156
          %v2274 = vpack.c.b16 %v2166, %v2157
          %v2275 = vpack.c.b16 %v2167, %v2158
          %v2276 = vpack.c.b16 %v2168, %v2159
          %v2277 = vpack.c.b16 %v2178, %v2169
          %v2278 = vpack.c.b16 %v2179, %v2170
          %v2279 = vpack.c.b16 %v2180, %v2171
          %v2280 = vpack.c.b16 %v2181, %v2172
          %v2281 = vpack.c.b16 %v2182, %v2173
          %v2282 = vpack.c.b16 %v2183, %v2174
          %v2283 = vpack.c.b16 %v2184, %v2175
          %v2284 = vpack.c.b16 %v2185, %v2176
          %v2285 = vpack.c.b16 %v2186, %v2177
          %v2286 = vpack.c.b16 %v2196, %v2187
          %v2287 = vpack.c.b16 %v2197, %v2188
          %v2288 = vpack.c.b16 %v2198, %v2189
          %v2289 = vpack.c.b16 %v2199, %v2190
          %v2290 = vpack.c.b16 %v2200, %v2191
          %v2291 = vpack.c.b16 %v2201, %v2192
          %v2292 = vpack.c.b16 %v2202, %v2193
          %v2293 = vpack.c.b16 %v2203, %v2194
          %v2294 = vpack.c.b16 %v2204, %v2195
          %v2295 = vpack.c.b16 %v2214, %v2205
          %v2296 = vpack.c.b16 %v2215, %v2206
          %v2297 = vpack.c.b16 %v2216, %v2207
          %v2298 = vpack.c.b16 %v2217, %v2208
          %v2299 = vpack.c.b16 %v2218, %v2209
          %v2300 = vpack.c.b16 %v2219, %v2210
          %v2301 = vpack.c.b16 %v2220, %v2211
          %v2302 = vpack.c.b16 %v2221, %v2212
          %v2303 = vpack.c.b16 %v2222, %v2213
          %v2304 = vpack.c.b16 %v2232, %v2223
          %v2305 = vpack.c.b16 %v2233, %v2224
          %v2306 = vpack.c.b16 %v2234, %v2225
          %v2307 = vpack.c.b16 %v2235, %v2226
          %v2308 = vpack.c.b16 %v2236, %v2227
          %v2309 = vpack.c.b16 %v2237, %v2228
          %v2310 = vpack.c.b16 %v2238, %v2229
          %v2311 = vpack.c.b16 %v2239, %v2230
          %v2312 = vpack.c.b16 %v2240, %v2231
          %2385 = vmatprep.subr.bf16.mxu0 %v1362
          %2386 = vmatpush1.bf16.msra.mxu0 %v1361
          %2387 = vmatprep.subr.bf16.mxu0 %v1364
          %2388 = vmatpush1.bf16.msra.mxu0 %v1363
          %2389 = vmatprep.subr.bf16.mxu0 %v1366
          %2390 = vmatpush1.bf16.msra.mxu0 %v1365
          %2391 = vmatprep.subr.bf16.mxu0 %v1368
          %2392 = vmatpush1.bf16.msra.mxu0 %v1367
          %2393 = vmatprep.subr.bf16.mxu0 %v1370
          %2394 = vmatpush1.bf16.msra.mxu0 %v1369
          %2395 = vmatprep.subr.bf16.mxu0 %v1372
          %2396 = vmatpush1.bf16.msra.mxu0 %v1371
          %2397 = vmatprep.subr.bf16.mxu0 %v1374
          %2398 = vmatpush1.bf16.msra.mxu0 %v1373
          %2399 = vmatprep.subr.bf16.mxu0 %v1376
          %2400 = vmatpush1.bf16.msra.mxu0 %v1375
          %2401 = vmatprep.subr.bf16.mxu0 %v1396
          %2402 = vmatpush1.bf16.msra.mxu0 %v1425
          %2403 = vmatprep.subr.bf16.mxu0 %v1400
          %2404 = vmatpush1.bf16.msra.mxu0 %v1426
          %2405 = vmatprep.subr.bf16.mxu0 %v1404
          %2406 = vmatpush1.bf16.msra.mxu0 %v1427
          %2407 = vmatprep.subr.bf16.mxu0 %v1408
          %2408 = vmatpush1.bf16.msra.mxu0 %v1428
          %2409 = vmatprep.subr.bf16.mxu0 %v1412
          %2410 = vmatpush1.bf16.msra.mxu0 %v1429
          %2411 = vmatprep.subr.bf16.mxu0 %v1416
          %2412 = vmatpush1.bf16.msra.mxu0 %v1430
          %2413 = vmatprep.subr.bf16.mxu0 %v1420
          %2414 = vmatpush1.bf16.msra.mxu0 %v1431
          %2415 = vmatprep.subr.bf16.mxu0 %v1424
          %2416 = vmatpush1.bf16.msra.mxu0 %v1432
          %2417 = vmatprep.mubr.bf16.mxu0 %v2242
          %2418 = vmatmul.mubr.bf16.gmra.mrb[0].mxu0 %v2241
          %v2419 = vpop.f32.mrb[0].mxu0
          %v2420 = vadd.f32 %v1940, %v2419
          %v2421 = vpop.f32.mrb[0].mxu0
          %v2422 = vadd.f32 %v1940, %v2421
          %v2423 = vpop.f32.mrb[0].mxu0
          %v2424 = vadd.f32 %v1945, %v2423
          %v2425 = vpop.f32.mrb[0].mxu0
          %v2426 = vadd.f32 %v1945, %v2425
          %2427 = vmatprep.mubr.bf16.mxu0 %v2251
          %2428 = vmatmul.mubr.bf16.gmra.mrb[0].mxu0 %v2250
          %v2429 = vpop.f32.mrb[0].mxu0
          %v2430 = vadd.f32 %v1950, %v2429
          %v2431 = vpop.f32.mrb[0].mxu0
          %v2432 = vadd.f32 %v1950, %v2431
          %v2433 = vpop.f32.mrb[0].mxu0
          %v2434 = vadd.f32 %v1955, %v2433
          %v2435 = vpop.f32.mrb[0].mxu0
          %v2436 = vadd.f32 %v1955, %v2435
          %2437 = vmatprep.mubr.bf16.mxu0 %v2260
          %2438 = vmatmul.mubr.bf16.gmra.mrb[0].mxu0 %v2259
          %v2439 = vpop.f32.mrb[0].mxu0
          %v2440 = vadd.f32 %v1960, %v2439
          %v2441 = vpop.f32.mrb[0].mxu0
          %v2442 = vadd.f32 %v1960, %v2441
          %v2443 = vpop.f32.mrb[0].mxu0
          %v2444 = vadd.f32 %v1965, %v2443
          %v2445 = vpop.f32.mrb[0].mxu0
          %v2446 = vadd.f32 %v1965, %v2445
          %2447 = vmatprep.mubr.bf16.mxu0 %v2269
          %2448 = vmatmul.mubr.bf16.gmra.mrb[0].mxu0 %v2268
          %v2449 = vpop.f32.mrb[0].mxu0
          %v2450 = vadd.f32 %v1970, %v2449
          %v2451 = vpop.f32.mrb[0].mxu0
          %v2452 = vadd.f32 %v1970, %v2451
          %v2453 = vpop.f32.mrb[0].mxu0
          %v2454 = vadd.f32 %v1975, %v2453
          %v2455 = vpop.f32.mrb[0].mxu0
          %v2456 = vadd.f32 %v1975, %v2455
          %2457 = vmatprep.mubr.bf16.mxu0 %v2278
          %2458 = vmatmul.mubr.bf16.gmra.mrb[0].mxu0 %v2277
          %v2459 = vpop.f32.mrb[0].mxu0
          %v2460 = vadd.f32 %v1980, %v2459
          %v2461 = vpop.f32.mrb[0].mxu0
          %v2462 = vadd.f32 %v1980, %v2461
          %v2463 = vpop.f32.mrb[0].mxu0
          %v2464 = vadd.f32 %v1985, %v2463
          %v2465 = vpop.f32.mrb[0].mxu0
          %v2466 = vadd.f32 %v1985, %v2465
          %2467 = vmatprep.mubr.bf16.mxu0 %v2287
          %2468 = vmatmul.mubr.bf16.gmra.mrb[0].mxu0 %v2286
          %v2469 = vpop.f32.mrb[0].mxu0
          %v2470 = vadd.f32 %v1990, %v2469
          %v2471 = vpop.f32.mrb[0].mxu0
          %v2472 = vadd.f32 %v1990, %v2471
          %v2473 = vpop.f32.mrb[0].mxu0
          %v2474 = vadd.f32 %v1995, %v2473
          %v2475 = vpop.f32.mrb[0].mxu0
          %v2476 = vadd.f32 %v1995, %v2475
          %2477 = vmatprep.mubr.bf16.mxu0 %v2296
          %2478 = vmatmul.mubr.bf16.gmra.mrb[0].mxu0 %v2295
          %v2479 = vpop.f32.mrb[0].mxu0
          %v2480 = vadd.f32 %v2000, %v2479
          %v2481 = vpop.f32.mrb[0].mxu0
          %v2482 = vadd.f32 %v2000, %v2481
          %v2483 = vpop.f32.mrb[0].mxu0
          %v2484 = vadd.f32 %v2005, %v2483
          %v2485 = vpop.f32.mrb[0].mxu0
          %v2486 = vadd.f32 %v2005, %v2485
          %2487 = vmatprep.mubr.bf16.mxu0 %v2305
          %2488 = vmatmul.mubr.bf16.gmra.mrb[0].mxu0 %v2304
          %v2489 = vpop.f32.mrb[0].mxu0
          %v2490 = vadd.f32 %v2010, %v2489
          %v2491 = vpop.f32.mrb[0].mxu0
          %v2492 = vadd.f32 %v2010, %v2491
          %v2493 = vpop.f32.mrb[0].mxu0
          %v2494 = vadd.f32 %v2015, %v2493
          %v2495 = vpop.f32.mrb[0].mxu0
          %v2496 = vadd.f32 %v2015, %v2495
          %2497 = vdwg.mxu0
          %2498 = vmatprep.subr.bf16.mxu0 %v1452
          %2499 = vmatpush1.bf16.msra.mxu0 %v1481
          %2500 = vmatprep.subr.bf16.mxu0 %v1456
          %2501 = vmatpush1.bf16.msra.mxu0 %v1482
          %2502 = vmatprep.subr.bf16.mxu0 %v1460
          %2503 = vmatpush1.bf16.msra.mxu0 %v1483
          %2504 = vmatprep.subr.bf16.mxu0 %v1464
          %2505 = vmatpush1.bf16.msra.mxu0 %v1484
          %2506 = vmatprep.subr.bf16.mxu0 %v1468
          %2507 = vmatpush1.bf16.msra.mxu0 %v1485
          %2508 = vmatprep.subr.bf16.mxu0 %v1472
          %2509 = vmatpush1.bf16.msra.mxu0 %v1486
          %2510 = vmatprep.subr.bf16.mxu0 %v1476
          %2511 = vmatpush1.bf16.msra.mxu0 %v1487
          %2512 = vmatprep.subr.bf16.mxu0 %v1480
          %2513 = vmatpush1.bf16.msra.mxu0 %v1488
          %2514 = vmatprep.subr.bf16.mxu0 %v1508
          %2515 = vmatpush1.bf16.msra.mxu0 %v1537
          %2516 = vmatprep.subr.bf16.mxu0 %v1512
          %2517 = vmatpush1.bf16.msra.mxu0 %v1538
          %2518 = vmatprep.subr.bf16.mxu0 %v1516
          %2519 = vmatpush1.bf16.msra.mxu0 %v1539
          %2520 = vmatprep.subr.bf16.mxu0 %v1520
          %2521 = vmatpush1.bf16.msra.mxu0 %v1540
          %2522 = vmatprep.subr.bf16.mxu0 %v1524
          %2523 = vmatpush1.bf16.msra.mxu0 %v1541
          %2524 = vmatprep.subr.bf16.mxu0 %v1528
          %2525 = vmatpush1.bf16.msra.mxu0 %v1542
          %2526 = vmatprep.subr.bf16.mxu0 %v1532
          %2527 = vmatpush1.bf16.msra.mxu0 %v1543
          %2528 = vmatprep.subr.bf16.mxu0 %v1536
          %2529 = vmatpush1.bf16.msra.mxu0 %v1544
          %2530 = vmatprep.mubr.bf16.mxu0 %v2244
          %2531 = vmatmul.mubr.bf16.gmra.mrb[0].mxu0 %v2243
          %v2532 = vpop.f32.mrb[0].mxu0
          %v2533 = vadd.f32 %v2420, %v2532
          %v2534 = vpop.f32.mrb[0].mxu0
          %v2535 = vadd.f32 %v2422, %v2534
          %v2536 = vpop.f32.mrb[0].mxu0
          %v2537 = vadd.f32 %v2424, %v2536
          %v2538 = vpop.f32.mrb[0].mxu0
          %v2539 = vadd.f32 %v2426, %v2538
          %2540 = vmatprep.mubr.bf16.mxu0 %v2253
          %2541 = vmatmul.mubr.bf16.gmra.mrb[0].mxu0 %v2252
          %v2542 = vpop.f32.mrb[0].mxu0
          %v2543 = vadd.f32 %v2430, %v2542
          %v2544 = vpop.f32.mrb[0].mxu0
          %v2545 = vadd.f32 %v2432, %v2544
          %v2546 = vpop.f32.mrb[0].mxu0
          %v2547 = vadd.f32 %v2434, %v2546
          %v2548 = vpop.f32.mrb[0].mxu0
          %v2549 = vadd.f32 %v2436, %v2548
          %2550 = vmatprep.mubr.bf16.mxu0 %v2262
          %2551 = vmatmul.mubr.bf16.gmra.mrb[0].mxu0 %v2261
          %v2552 = vpop.f32.mrb[0].mxu0
          %v2553 = vadd.f32 %v2440, %v2552
          %v2554 = vpop.f32.mrb[0].mxu0
          %v2555 = vadd.f32 %v2442, %v2554
          %v2556 = vpop.f32.mrb[0].mxu0
          %v2557 = vadd.f32 %v2444, %v2556
          %v2558 = vpop.f32.mrb[0].mxu0
          %v2559 = vadd.f32 %v2446, %v2558
          %2560 = vmatprep.mubr.bf16.mxu0 %v2271
          %2561 = vmatmul.mubr.bf16.gmra.mrb[0].mxu0 %v2270
          %v2562 = vpop.f32.mrb[0].mxu0
          %v2563 = vadd.f32 %v2450, %v2562
          %v2564 = vpop.f32.mrb[0].mxu0
          %v2565 = vadd.f32 %v2452, %v2564
          %v2566 = vpop.f32.mrb[0].mxu0
          %v2567 = vadd.f32 %v2454, %v2566
          %v2568 = vpop.f32.mrb[0].mxu0
          %v2569 = vadd.f32 %v2456, %v2568
          %2570 = vmatprep.mubr.bf16.mxu0 %v2280
          %2571 = vmatmul.mubr.bf16.gmra.mrb[0].mxu0 %v2279
          %v2572 = vpop.f32.mrb[0].mxu0
          %v2573 = vadd.f32 %v2460, %v2572
          %v2574 = vpop.f32.mrb[0].mxu0
          %v2575 = vadd.f32 %v2462, %v2574
          %v2576 = vpop.f32.mrb[0].mxu0
          %v2577 = vadd.f32 %v2464, %v2576
          %v2578 = vpop.f32.mrb[0].mxu0
          %v2579 = vadd.f32 %v2466, %v2578
          %2580 = vmatprep.mubr.bf16.mxu0 %v2289
          %2581 = vmatmul.mubr.bf16.gmra.mrb[0].mxu0 %v2288
          %v2582 = vpop.f32.mrb[0].mxu0
          %v2583 = vadd.f32 %v2470, %v2582
          %v2584 = vpop.f32.mrb[0].mxu0
          %v2585 = vadd.f32 %v2472, %v2584
          %v2586 = vpop.f32.mrb[0].mxu0
          %v2587 = vadd.f32 %v2474, %v2586
          %v2588 = vpop.f32.mrb[0].mxu0
          %v2589 = vadd.f32 %v2476, %v2588
          %2590 = vmatprep.mubr.bf16.mxu0 %v2298
          %2591 = vmatmul.mubr.bf16.gmra.mrb[0].mxu0 %v2297
          %v2592 = vpop.f32.mrb[0].mxu0
          %v2593 = vadd.f32 %v2480, %v2592
          %v2594 = vpop.f32.mrb[0].mxu0
          %v2595 = vadd.f32 %v2482, %v2594
          %v2596 = vpop.f32.mrb[0].mxu0
          %v2597 = vadd.f32 %v2484, %v2596
          %v2598 = vpop.f32.mrb[0].mxu0
          %v2599 = vadd.f32 %v2486, %v2598
          %2600 = vmatprep.mubr.bf16.mxu0 %v2307
          %2601 = vmatmul.mubr.bf16.gmra.mrb[0].mxu0 %v2306
          %v2602 = vpop.f32.mrb[0].mxu0
          %v2603 = vadd.f32 %v2490, %v2602
          %v2604 = vpop.f32.mrb[0].mxu0
          %v2605 = vadd.f32 %v2492, %v2604
          %v2606 = vpop.f32.mrb[0].mxu0
          %v2607 = vadd.f32 %v2494, %v2606
          %v2608 = vpop.f32.mrb[0].mxu0
          %v2609 = vadd.f32 %v2496, %v2608
          %2610 = vdwg.mxu0
          %2611 = vmatprep.subr.bf16.mxu0 %v1564
          %2612 = vmatpush1.bf16.msra.mxu0 %v1593
          %2613 = vmatprep.subr.bf16.mxu0 %v1568
          %2614 = vmatpush1.bf16.msra.mxu0 %v1594
          %2615 = vmatprep.subr.bf16.mxu0 %v1572
          %2616 = vmatpush1.bf16.msra.mxu0 %v1595
          %2617 = vmatprep.subr.bf16.mxu0 %v1576
          %2618 = vmatpush1.bf16.msra.mxu0 %v1596
          %2619 = vmatprep.subr.bf16.mxu0 %v1580
          %2620 = vmatpush1.bf16.msra.mxu0 %v1597
          %2621 = vmatprep.subr.bf16.mxu0 %v1584
          %2622 = vmatpush1.bf16.msra.mxu0 %v1598
          %2623 = vmatprep.subr.bf16.mxu0 %v1588
          %2624 = vmatpush1.bf16.msra.mxu0 %v1599
          %2625 = vmatprep.subr.bf16.mxu0 %v1592
          %2626 = vmatpush1.bf16.msra.mxu0 %v1600
          %2627 = vmatprep.subr.bf16.mxu0 %v1620
          %2628 = vmatpush1.bf16.msra.mxu0 %v1649
          %2629 = vmatprep.subr.bf16.mxu0 %v1624
          %2630 = vmatpush1.bf16.msra.mxu0 %v1650
          %2631 = vmatprep.subr.bf16.mxu0 %v1628
          %2632 = vmatpush1.bf16.msra.mxu0 %v1651
          %2633 = vmatprep.subr.bf16.mxu0 %v1632
          %2634 = vmatpush1.bf16.msra.mxu0 %v1652
          %2635 = vmatprep.subr.bf16.mxu0 %v1636
          %2636 = vmatpush1.bf16.msra.mxu0 %v1653
          %2637 = vmatprep.subr.bf16.mxu0 %v1640
          %2638 = vmatpush1.bf16.msra.mxu0 %v1654
          %2639 = vmatprep.subr.bf16.mxu0 %v1644
          %2640 = vmatpush1.bf16.msra.mxu0 %v1655
          %2641 = vmatprep.subr.bf16.mxu0 %v1648
          %2642 = vmatpush1.bf16.msra.mxu0 %v1656
          %2643 = vmatprep.mubr.bf16.mxu0 %v2246
          %2644 = vmatmul.mubr.bf16.gmra.mrb[0].mxu0 %v2245
          %v2645 = vpop.f32.mrb[0].mxu0
          %v2646 = vadd.f32 %v2533, %v2645
          %v2647 = vpop.f32.mrb[0].mxu0
          %v2648 = vadd.f32 %v2535, %v2647
          %v2649 = vpop.f32.mrb[0].mxu0
          %v2650 = vadd.f32 %v2537, %v2649
          %v2651 = vpop.f32.mrb[0].mxu0
          %v2652 = vadd.f32 %v2539, %v2651
          %2653 = vmatprep.mubr.bf16.mxu0 %v2255
          %2654 = vmatmul.mubr.bf16.gmra.mrb[0].mxu0 %v2254
          %v2655 = vpop.f32.mrb[0].mxu0
          %v2656 = vadd.f32 %v2543, %v2655
          %v2657 = vpop.f32.mrb[0].mxu0
          %v2658 = vadd.f32 %v2545, %v2657
          %v2659 = vpop.f32.mrb[0].mxu0
          %v2660 = vadd.f32 %v2547, %v2659
          %v2661 = vpop.f32.mrb[0].mxu0
          %v2662 = vadd.f32 %v2549, %v2661
          %2663 = vmatprep.mubr.bf16.mxu0 %v2264
          %2664 = vmatmul.mubr.bf16.gmra.mrb[0].mxu0 %v2263
          %v2665 = vpop.f32.mrb[0].mxu0
          %v2666 = vadd.f32 %v2553, %v2665
          %v2667 = vpop.f32.mrb[0].mxu0
          %v2668 = vadd.f32 %v2555, %v2667
          %v2669 = vpop.f32.mrb[0].mxu0
          %v2670 = vadd.f32 %v2557, %v2669
          %v2671 = vpop.f32.mrb[0].mxu0
          %v2672 = vadd.f32 %v2559, %v2671
          %2673 = vmatprep.mubr.bf16.mxu0 %v2273
          %2674 = vmatmul.mubr.bf16.gmra.mrb[0].mxu0 %v2272
          %v2675 = vpop.f32.mrb[0].mxu0
          %v2676 = vadd.f32 %v2563, %v2675
          %v2677 = vpop.f32.mrb[0].mxu0
          %v2678 = vadd.f32 %v2565, %v2677
          %v2679 = vpop.f32.mrb[0].mxu0
          %v2680 = vadd.f32 %v2567, %v2679
          %v2681 = vpop.f32.mrb[0].mxu0
          %v2682 = vadd.f32 %v2569, %v2681
          %2683 = vmatprep.mubr.bf16.mxu0 %v2282
          %2684 = vmatmul.mubr.bf16.gmra.mrb[0].mxu0 %v2281
          %v2685 = vpop.f32.mrb[0].mxu0
          %v2686 = vadd.f32 %v2573, %v2685
          %v2687 = vpop.f32.mrb[0].mxu0
          %v2688 = vadd.f32 %v2575, %v2687
          %v2689 = vpop.f32.mrb[0].mxu0
          %v2690 = vadd.f32 %v2577, %v2689
          %v2691 = vpop.f32.mrb[0].mxu0
          %v2692 = vadd.f32 %v2579, %v2691
          %2693 = vmatprep.mubr.bf16.mxu0 %v2291
          %2694 = vmatmul.mubr.bf16.gmra.mrb[0].mxu0 %v2290
          %v2695 = vpop.f32.mrb[0].mxu0
          %v2696 = vadd.f32 %v2583, %v2695
          %v2697 = vpop.f32.mrb[0].mxu0
          %v2698 = vadd.f32 %v2585, %v2697
          %v2699 = vpop.f32.mrb[0].mxu0
          %v2700 = vadd.f32 %v2587, %v2699
          %v2701 = vpop.f32.mrb[0].mxu0
          %v2702 = vadd.f32 %v2589, %v2701
          %2703 = vmatprep.mubr.bf16.mxu0 %v2300
          %2704 = vmatmul.mubr.bf16.gmra.mrb[0].mxu0 %v2299
          %v2705 = vpop.f32.mrb[0].mxu0
          %v2706 = vadd.f32 %v2593, %v2705
          %v2707 = vpop.f32.mrb[0].mxu0
          %v2708 = vadd.f32 %v2595, %v2707
          %v2709 = vpop.f32.mrb[0].mxu0
          %v2710 = vadd.f32 %v2597, %v2709
          %v2711 = vpop.f32.mrb[0].mxu0
          %v2712 = vadd.f32 %v2599, %v2711
          %2713 = vmatprep.mubr.bf16.mxu0 %v2309
          %2714 = vmatmul.mubr.bf16.gmra.mrb[0].mxu0 %v2308
          %v2715 = vpop.f32.mrb[0].mxu0
          %v2716 = vadd.f32 %v2603, %v2715
          %v2717 = vpop.f32.mrb[0].mxu0
          %v2718 = vadd.f32 %v2605, %v2717
          %v2719 = vpop.f32.mrb[0].mxu0
          %v2720 = vadd.f32 %v2607, %v2719
          %v2721 = vpop.f32.mrb[0].mxu0
          %v2722 = vadd.f32 %v2609, %v2721
          %2723 = vdwg.mxu0
          %2724 = vmatprep.subr.bf16.mxu0 %v1676
          %2725 = vmatpush1.bf16.msra.mxu0 %v1705
          %2726 = vmatprep.subr.bf16.mxu0 %v1680
          %2727 = vmatpush1.bf16.msra.mxu0 %v1706
          %2728 = vmatprep.subr.bf16.mxu0 %v1684
          %2729 = vmatpush1.bf16.msra.mxu0 %v1707
          %2730 = vmatprep.subr.bf16.mxu0 %v1688
          %2731 = vmatpush1.bf16.msra.mxu0 %v1708
          %2732 = vmatprep.subr.bf16.mxu0 %v1692
          %2733 = vmatpush1.bf16.msra.mxu0 %v1709
          %2734 = vmatprep.subr.bf16.mxu0 %v1696
          %2735 = vmatpush1.bf16.msra.mxu0 %v1710
          %2736 = vmatprep.subr.bf16.mxu0 %v1700
          %2737 = vmatpush1.bf16.msra.mxu0 %v1711
          %2738 = vmatprep.subr.bf16.mxu0 %v1704
          %2739 = vmatpush1.bf16.msra.mxu0 %v1712
          %2740 = vmatprep.subr.bf16.mxu0 %v1732
          %2741 = vmatpush1.bf16.msra.mxu0 %v1761
          %2742 = vmatprep.subr.bf16.mxu0 %v1736
          %2743 = vmatpush1.bf16.msra.mxu0 %v1762
          %2744 = vmatprep.subr.bf16.mxu0 %v1740
          %2745 = vmatpush1.bf16.msra.mxu0 %v1763
          %2746 = vmatprep.subr.bf16.mxu0 %v1744
          %2747 = vmatpush1.bf16.msra.mxu0 %v1764
          %2748 = vmatprep.subr.bf16.mxu0 %v1748
          %2749 = vmatpush1.bf16.msra.mxu0 %v1765
          %2750 = vmatprep.subr.bf16.mxu0 %v1752
          %2751 = vmatpush1.bf16.msra.mxu0 %v1766
          %2752 = vmatprep.subr.bf16.mxu0 %v1756
          %2753 = vmatpush1.bf16.msra.mxu0 %v1767
          %2754 = vmatprep.subr.bf16.mxu0 %v1760
          %2755 = vmatpush1.bf16.msra.mxu0 %v1768
          %2756 = vmatprep.mubr.bf16.mxu0 %v2248
          %2757 = vmatmul.mubr.bf16.gmra.mrb[0].mxu0 %v2247
          %v2758 = vpop.f32.mrb[0].mxu0
          %v2759 = vadd.f32 %v2646, %v2758
          %v2760 = vpop.f32.mrb[0].mxu0
          %v2761 = vadd.f32 %v2648, %v2760
          %v2762 = vpop.f32.mrb[0].mxu0
          %v2763 = vadd.f32 %v2650, %v2762
          %v2764 = vpop.f32.mrb[0].mxu0
          %v2765 = vadd.f32 %v2652, %v2764
          %2766 = vmatprep.mubr.bf16.mxu0 %v2257
          %2767 = vmatmul.mubr.bf16.gmra.mrb[0].mxu0 %v2256
          %v2768 = vpop.f32.mrb[0].mxu0
          %v2769 = vadd.f32 %v2656, %v2768
          %v2770 = vpop.f32.mrb[0].mxu0
          %v2771 = vadd.f32 %v2658, %v2770
          %v2772 = vpop.f32.mrb[0].mxu0
          %v2773 = vadd.f32 %v2660, %v2772
          %v2774 = vpop.f32.mrb[0].mxu0
          %v2775 = vadd.f32 %v2662, %v2774
          %2776 = vmatprep.mubr.bf16.mxu0 %v2266
          %2777 = vmatmul.mubr.bf16.gmra.mrb[0].mxu0 %v2265
          %v2778 = vpop.f32.mrb[0].mxu0
          %v2779 = vadd.f32 %v2666, %v2778
          %v2780 = vpop.f32.mrb[0].mxu0
          %v2781 = vadd.f32 %v2668, %v2780
          %v2782 = vpop.f32.mrb[0].mxu0
          %v2783 = vadd.f32 %v2670, %v2782
          %v2784 = vpop.f32.mrb[0].mxu0
          %v2785 = vadd.f32 %v2672, %v2784
          %2786 = vmatprep.mubr.bf16.mxu0 %v2275
          %2787 = vmatmul.mubr.bf16.gmra.mrb[0].mxu0 %v2274
          %v2788 = vpop.f32.mrb[0].mxu0
          %v2789 = vadd.f32 %v2676, %v2788
          %v2790 = vpop.f32.mrb[0].mxu0
          %v2791 = vadd.f32 %v2678, %v2790
          %v2792 = vpop.f32.mrb[0].mxu0
          %v2793 = vadd.f32 %v2680, %v2792
          %v2794 = vpop.f32.mrb[0].mxu0
          %v2795 = vadd.f32 %v2682, %v2794
          %2796 = vmatprep.mubr.bf16.mxu0 %v2284
          %2797 = vmatmul.mubr.bf16.gmra.mrb[0].mxu0 %v2283
          %v2798 = vpop.f32.mrb[0].mxu0
          %v2799 = vadd.f32 %v2686, %v2798
          %v2800 = vpop.f32.mrb[0].mxu0
          %v2801 = vadd.f32 %v2688, %v2800
          %v2802 = vpop.f32.mrb[0].mxu0
          %v2803 = vadd.f32 %v2690, %v2802
          %v2804 = vpop.f32.mrb[0].mxu0
          %v2805 = vadd.f32 %v2692, %v2804
          %2806 = vmatprep.mubr.bf16.mxu0 %v2293
          %2807 = vmatmul.mubr.bf16.gmra.mrb[0].mxu0 %v2292
          %v2808 = vpop.f32.mrb[0].mxu0
          %v2809 = vadd.f32 %v2696, %v2808
          %v2810 = vpop.f32.mrb[0].mxu0
          %v2811 = vadd.f32 %v2698, %v2810
          %v2812 = vpop.f32.mrb[0].mxu0
          %v2813 = vadd.f32 %v2700, %v2812
          %v2814 = vpop.f32.mrb[0].mxu0
          %v2815 = vadd.f32 %v2702, %v2814
          %2816 = vmatprep.mubr.bf16.mxu0 %v2302
          %2817 = vmatmul.mubr.bf16.gmra.mrb[0].mxu0 %v2301
          %v2818 = vpop.f32.mrb[0].mxu0
          %v2819 = vadd.f32 %v2706, %v2818
          %v2820 = vpop.f32.mrb[0].mxu0
          %v2821 = vadd.f32 %v2708, %v2820
          %v2822 = vpop.f32.mrb[0].mxu0
          %v2823 = vadd.f32 %v2710, %v2822
          %v2824 = vpop.f32.mrb[0].mxu0
          %v2825 = vadd.f32 %v2712, %v2824
          %2826 = vmatprep.mubr.bf16.mxu0 %v2311
          %2827 = vmatmul.mubr.bf16.gmra.mrb[0].mxu0 %v2310
          %v2828 = vpop.f32.mrb[0].mxu0
          %v2829 = vadd.f32 %v2716, %v2828
          %v2830 = vpop.f32.mrb[0].mxu0
          %v2831 = vadd.f32 %v2718, %v2830
          %v2832 = vpop.f32.mrb[0].mxu0
          %v2833 = vadd.f32 %v2720, %v2832
          %v2834 = vpop.f32.mrb[0].mxu0
          %v2835 = vadd.f32 %v2722, %v2834
          %2836 = vdwg.mxu0
          %2837 = vmatprep.subr.bf16.mxu0 %v1788
          %2838 = vmatpush1.bf16.msra.mxu0 %v1817
          %2839 = vmatprep.subr.bf16.mxu0 %v1792
          %2840 = vmatpush1.bf16.msra.mxu0 %v1818
          %2841 = vmatprep.subr.bf16.mxu0 %v1796
          %2842 = vmatpush1.bf16.msra.mxu0 %v1819
          %2843 = vmatprep.subr.bf16.mxu0 %v1800
          %2844 = vmatpush1.bf16.msra.mxu0 %v1820
          %2845 = vmatprep.subr.bf16.mxu0 %v1804
          %2846 = vmatpush1.bf16.msra.mxu0 %v1821
          %2847 = vmatprep.subr.bf16.mxu0 %v1808
          %2848 = vmatpush1.bf16.msra.mxu0 %v1822
          %2849 = vmatprep.subr.bf16.mxu0 %v1812
          %2850 = vmatpush1.bf16.msra.mxu0 %v1823
          %2851 = vmatprep.subr.bf16.mxu0 %v1816
          %2852 = vmatpush1.bf16.msra.mxu0 %v1824
          %2853 = vmatprep.subr.bf16.mxu0 0
          %2854 = vmatpush1.bf16.msra.mxu0 0
          %2855 = vmatprep.subr.bf16.mxu0 0
          %2856 = vmatpush1.bf16.msra.mxu0 0
          %2857 = vmatprep.subr.bf16.mxu0 0
          %2858 = vmatpush1.bf16.msra.mxu0 0
          %2859 = vmatprep.subr.bf16.mxu0 0
          %2860 = vmatpush1.bf16.msra.mxu0 0
          %2861 = vmatprep.subr.bf16.mxu0 0
          %2862 = vmatpush1.bf16.msra.mxu0 0
          %2863 = vmatprep.subr.bf16.mxu0 0
          %2864 = vmatpush1.bf16.msra.mxu0 0
          %2865 = vmatprep.subr.bf16.mxu0 0
          %2866 = vmatpush1.bf16.msra.mxu0 0
          %2867 = vmatprep.subr.bf16.mxu0 0
          %2868 = vmatpush1.bf16.msra.mxu0 0
          %2869 = vmatprep.mubr.bf16.mxu0 0
          %2870 = vmatmul.mubr.bf16.gmra.mrb[0].mxu0 %v2249
          %v2871 = vpop.f32.mrb[0].mxu0
          %v2872 = vadd.f32 %v2759, %v2871
          %v2873 = vpop.f32.mrb[0].mxu0
          %v2874 = vadd.f32 %v2761, %v2873
          %v2875 = vpop.f32.mrb[0].mxu0
          %v2876 = vadd.f32 %v2763, %v2875
          %v2877 = vpop.f32.mrb[0].mxu0
          %v2878 = vadd.f32 %v2765, %v2877
          %2879 = vmatprep.mubr.bf16.mxu0 0
          %2880 = vmatmul.mubr.bf16.gmra.mrb[0].mxu0 %v2258
          %v2881 = vpop.f32.mrb[0].mxu0
          %v2882 = vadd.f32 %v2769, %v2881
          %v2883 = vpop.f32.mrb[0].mxu0
          %v2884 = vadd.f32 %v2771, %v2883
          %v2885 = vpop.f32.mrb[0].mxu0
          %v2886 = vadd.f32 %v2773, %v2885
          %v2887 = vpop.f32.mrb[0].mxu0
          %v2888 = vadd.f32 %v2775, %v2887
          %2889 = vmatprep.mubr.bf16.mxu0 0
          %2890 = vmatmul.mubr.bf16.gmra.mrb[0].mxu0 %v2267
          %v2891 = vpop.f32.mrb[0].mxu0
          %v2892 = vadd.f32 %v2779, %v2891
          %v2893 = vpop.f32.mrb[0].mxu0
          %v2894 = vadd.f32 %v2781, %v2893
          %v2895 = vpop.f32.mrb[0].mxu0
          %v2896 = vadd.f32 %v2783, %v2895
          %v2897 = vpop.f32.mrb[0].mxu0
          %v2898 = vadd.f32 %v2785, %v2897
          %2899 = vmatprep.mubr.bf16.mxu0 0
          %2900 = vmatmul.mubr.bf16.gmra.mrb[0].mxu0 %v2276
          %v2901 = vpop.f32.mrb[0].mxu0
          %v2902 = vadd.f32 %v2789, %v2901
          %v2903 = vpop.f32.mrb[0].mxu0
          %v2904 = vadd.f32 %v2791, %v2903
          %v2905 = vpop.f32.mrb[0].mxu0
          %v2906 = vadd.f32 %v2793, %v2905
          %v2907 = vpop.f32.mrb[0].mxu0
          %v2908 = vadd.f32 %v2795, %v2907
          %2909 = vmatprep.mubr.bf16.mxu0 0
          %2910 = vmatmul.mubr.bf16.gmra.mrb[0].mxu0 %v2285
          %v2911 = vpop.f32.mrb[0].mxu0
          %v2912 = vadd.f32 %v2799, %v2911
          %v2913 = vpop.f32.mrb[0].mxu0
          %v2914 = vadd.f32 %v2801, %v2913
          %v2915 = vpop.f32.mrb[0].mxu0
          %v2916 = vadd.f32 %v2803, %v2915
          %v2917 = vpop.f32.mrb[0].mxu0
          %v2918 = vadd.f32 %v2805, %v2917
          %2919 = vmatprep.mubr.bf16.mxu0 0
          %2920 = vmatmul.mubr.bf16.gmra.mrb[0].mxu0 %v2294
          %v2921 = vpop.f32.mrb[0].mxu0
          %v2922 = vadd.f32 %v2809, %v2921
          %v2923 = vpop.f32.mrb[0].mxu0
          %v2924 = vadd.f32 %v2811, %v2923
          %v2925 = vpop.f32.mrb[0].mxu0
          %v2926 = vadd.f32 %v2813, %v2925
          %v2927 = vpop.f32.mrb[0].mxu0
          %v2928 = vadd.f32 %v2815, %v2927
          %2929 = vmatprep.mubr.bf16.mxu0 0
          %2930 = vmatmul.mubr.bf16.gmra.mrb[0].mxu0 %v2303
          %v2931 = vpop.f32.mrb[0].mxu0
          %v2932 = vadd.f32 %v2819, %v2931
          %v2933 = vpop.f32.mrb[0].mxu0
          %v2934 = vadd.f32 %v2821, %v2933
          %v2935 = vpop.f32.mrb[0].mxu0
          %v2936 = vadd.f32 %v2823, %v2935
          %v2937 = vpop.f32.mrb[0].mxu0
          %v2938 = vadd.f32 %v2825, %v2937
          %2939 = vmatprep.mubr.bf16.mxu0 0
          %2940 = vmatmul.mubr.bf16.gmra.mrb[0].mxu0 %v2312
          %v2941 = vpop.f32.mrb[0].mxu0
          %v2942 = vadd.f32 %v2829, %v2941
          %v2943 = vpop.f32.mrb[0].mxu0
          %v2944 = vadd.f32 %v2831, %v2943
          %v2945 = vpop.f32.mrb[0].mxu0
          %v2946 = vadd.f32 %v2833, %v2945
          %v2947 = vpop.f32.mrb[0].mxu0
          %v2948 = vadd.f32 %v2835, %v2947
          %2949 = vdwg.mxu0
          %vm2950 = vcmp.ge.f32.partialorder %v2872, 0.0
          %vm2951 = vcmp.ge.f32.partialorder %v2874, 0.0
          %vm2952 = vcmp.ge.f32.partialorder %v2876, 0.0
          %vm2953 = vcmp.ge.f32.partialorder %v2878, 0.0
          %vm2954 = vcmp.ge.f32.partialorder %v2882, 0.0
          %vm2955 = vcmp.ge.f32.partialorder %v2884, 0.0
          %vm2956 = vcmp.ge.f32.partialorder %v2886, 0.0
          %vm2957 = vcmp.ge.f32.partialorder %v2888, 0.0
          %vm2958 = vcmp.ge.f32.partialorder %v2892, 0.0
          %vm2959 = vcmp.ge.f32.partialorder %v2894, 0.0
          %vm2960 = vcmp.ge.f32.partialorder %v2896, 0.0
          %vm2961 = vcmp.ge.f32.partialorder %v2898, 0.0
          %vm2962 = vcmp.ge.f32.partialorder %v2902, 0.0
          %vm2963 = vcmp.ge.f32.partialorder %v2904, 0.0
          %vm2964 = vcmp.ge.f32.partialorder %v2906, 0.0
          %vm2965 = vcmp.ge.f32.partialorder %v2908, 0.0
          %vm2966 = vcmp.ge.f32.partialorder %v2912, 0.0
          %vm2967 = vcmp.ge.f32.partialorder %v2914, 0.0
          %vm2968 = vcmp.ge.f32.partialorder %v2916, 0.0
          %vm2969 = vcmp.ge.f32.partialorder %v2918, 0.0
          %vm2970 = vcmp.ge.f32.partialorder %v2922, 0.0
          %vm2971 = vcmp.ge.f32.partialorder %v2924, 0.0
          %vm2972 = vcmp.ge.f32.partialorder %v2926, 0.0
          %vm2973 = vcmp.ge.f32.partialorder %v2928, 0.0
          %vm2974 = vcmp.ge.f32.partialorder %v2932, 0.0
          %vm2975 = vcmp.ge.f32.partialorder %v2934, 0.0
          %vm2976 = vcmp.ge.f32.partialorder %v2936, 0.0
          %vm2977 = vcmp.ge.f32.partialorder %v2938, 0.0
          %vm2978 = vcmp.ge.f32.partialorder %v2942, 0.0
          %vm2979 = vcmp.ge.f32.partialorder %v2944, 0.0
          %vm2980 = vcmp.ge.f32.partialorder %v2946, 0.0
          %vm2981 = vcmp.ge.f32.partialorder %v2948, 0.0
          %v2982 = vmul.f32 %v2872, 0.01
          %v2983 = vmul.f32 %v2874, 0.01
          %v2984 = vmul.f32 %v2876, 0.01
          %v2985 = vmul.f32 %v2878, 0.01
          %v2986 = vmul.f32 %v2882, 0.01
          %v2987 = vmul.f32 %v2884, 0.01
          %v2988 = vmul.f32 %v2886, 0.01
          %v2989 = vmul.f32 %v2888, 0.01
          %v2990 = vmul.f32 %v2892, 0.01
          %v2991 = vmul.f32 %v2894, 0.01
          %v2992 = vmul.f32 %v2896, 0.01
          %v2993 = vmul.f32 %v2898, 0.01
          %v2994 = vmul.f32 %v2902, 0.01
          %v2995 = vmul.f32 %v2904, 0.01
          %v2996 = vmul.f32 %v2906, 0.01
          %v2997 = vmul.f32 %v2908, 0.01
          %v2998 = vmul.f32 %v2912, 0.01
          %v2999 = vmul.f32 %v2914, 0.01
          %v3000 = vmul.f32 %v2916, 0.01
          %v3001 = vmul.f32 %v2918, 0.01
          %v3002 = vmul.f32 %v2922, 0.01
          %v3003 = vmul.f32 %v2924, 0.01
          %v3004 = vmul.f32 %v2926, 0.01
          %v3005 = vmul.f32 %v2928, 0.01
          %v3006 = vmul.f32 %v2932, 0.01
          %v3007 = vmul.f32 %v2934, 0.01
          %v3008 = vmul.f32 %v2936, 0.01
          %v3009 = vmul.f32 %v2938, 0.01
          %v3010 = vmul.f32 %v2942, 0.01
          %v3011 = vmul.f32 %v2944, 0.01
          %v3012 = vmul.f32 %v2946, 0.01
          %v3013 = vmul.f32 %v2948, 0.01
          %v3014 = vsel %vm2950, %v2872, %v2982
          %v3015 = vsel %vm2951, %v2874, %v2983
          %v3016 = vsel %vm2952, %v2876, %v2984
          %v3017 = vsel %vm2953, %v2878, %v2985
          %v3018 = vsel %vm2954, %v2882, %v2986
          %v3019 = vsel %vm2955, %v2884, %v2987
          %v3020 = vsel %vm2956, %v2886, %v2988
          %v3021 = vsel %vm2957, %v2888, %v2989
          %v3022 = vsel %vm2958, %v2892, %v2990
          %v3023 = vsel %vm2959, %v2894, %v2991
          %v3024 = vsel %vm2960, %v2896, %v2992
          %v3025 = vsel %vm2961, %v2898, %v2993
          %v3026 = vsel %vm2962, %v2902, %v2994
          %v3027 = vsel %vm2963, %v2904, %v2995
          %v3028 = vsel %vm2964, %v2906, %v2996
          %v3029 = vsel %vm2965, %v2908, %v2997
          %v3030 = vsel %vm2966, %v2912, %v2998
          %v3031 = vsel %vm2967, %v2914, %v2999
          %v3032 = vsel %vm2968, %v2916, %v3000
          %v3033 = vsel %vm2969, %v2918, %v3001
          %v3034 = vsel %vm2970, %v2922, %v3002
          %v3035 = vsel %vm2971, %v2924, %v3003
          %v3036 = vsel %vm2972, %v2926, %v3004
          %v3037 = vsel %vm2973, %v2928, %v3005
          %v3038 = vsel %vm2974, %v2932, %v3006
          %v3039 = vsel %vm2975, %v2934, %v3007
          %v3040 = vsel %vm2976, %v2936, %v3008
          %v3041 = vsel %vm2977, %v2938, %v3009
          %v3042 = vsel %vm2978, %v2942, %v3010
          %v3043 = vsel %vm2979, %v2944, %v3011
          %v3044 = vsel %vm2980, %v2946, %v3012
          %v3045 = vsel %vm2981, %v2948, %v3013
          %v3046 = vpack.c.bf16 %v3016, %v3014
          %v3047 = vpack.c.bf16 %v3017, %v3015
          %v3048 = vpack.c.bf16 %v3020, %v3018
          %v3049 = vpack.c.bf16 %v3021, %v3019
          %v3050 = vpack.c.bf16 %v3024, %v3022
          %v3051 = vpack.c.bf16 %v3025, %v3023
          %v3052 = vpack.c.bf16 %v3028, %v3026
          %v3053 = vpack.c.bf16 %v3029, %v3027
          %v3054 = vpack.c.bf16 %v3032, %v3030
          %v3055 = vpack.c.bf16 %v3033, %v3031
          %v3056 = vpack.c.bf16 %v3036, %v3034
          %v3057 = vpack.c.bf16 %v3037, %v3035
          %v3058 = vpack.c.bf16 %v3040, %v3038
          %v3059 = vpack.c.bf16 %v3041, %v3039
          %v3060 = vpack.c.bf16 %v3044, %v3042
          %v3061 = vpack.c.bf16 %v3045, %v3043
          %3078 = vrot.lane.b32.xlu0 %v3046, 127
          %v3079 = vpop.permute.xlu0 %3078
          %3080 = vrot.lane.b32.xlu0 %v3047, 127
          %v3081 = vpop.permute.xlu0 %3080
          %3082 = vrot.lane.b32.xlu0 %v3048, 127
          %v3083 = vpop.permute.xlu0 %3082
          %3084 = vrot.lane.b32.xlu0 %v3049, 127
          %v3085 = vpop.permute.xlu0 %3084
          %3086 = vrot.lane.b32.xlu0 %v3050, 127
          %v3087 = vpop.permute.xlu0 %3086
          %3088 = vrot.lane.b32.xlu0 %v3051, 127
          %v3089 = vpop.permute.xlu0 %3088
          %3090 = vrot.lane.b32.xlu0 %v3052, 127
          %v3091 = vpop.permute.xlu0 %3090
          %3092 = vrot.lane.b32.xlu0 %v3053, 127
          %v3093 = vpop.permute.xlu0 %3092
          %3094 = vrot.lane.b32.xlu0 %v3054, 127
          %v3095 = vpop.permute.xlu0 %3094
          %3096 = vrot.lane.b32.xlu0 %v3055, 127
          %v3097 = vpop.permute.xlu0 %3096
          %3098 = vrot.lane.b32.xlu0 %v3056, 127
          %v3099 = vpop.permute.xlu0 %3098
          %3100 = vrot.lane.b32.xlu0 %v3057, 127
          %v3101 = vpop.permute.xlu0 %3100
          %3102 = vrot.lane.b32.xlu0 %v3058, 127
          %v3103 = vpop.permute.xlu0 %3102
          %3104 = vrot.lane.b32.xlu0 %v3059, 127
          %v3105 = vpop.permute.xlu0 %3104
          %3106 = vrot.lane.b32.xlu0 %v3060, 127
          %v3107 = vpop.permute.xlu0 %3106
          %3108 = vrot.lane.b32.xlu0 %v3061, 127
          %v3109 = vpop.permute.xlu0 %3108
          %v3110 = vsel %vm500, %v3079, %v3081
          %v3111 = vsel %vm500, %v3083, %v3085
          %v3112 = vsel %vm500, %v3087, %v3089
          %v3113 = vsel %vm500, %v3091, %v3093
          %v3114 = vsel %vm500, %v3095, %v3097
          %v3115 = vsel %vm500, %v3099, %v3101
          %v3116 = vsel %vm500, %v3103, %v3105
          %v3117 = vsel %vm500, %v3107, %v3109
          %3134 = vrot.lane.b32.xlu0 %v3046, 126
          %v3135 = vpop.permute.xlu0 %3134
          %3136 = vrot.lane.b32.xlu0 %v3047, 126
          %v3137 = vpop.permute.xlu0 %3136
          %3138 = vrot.lane.b32.xlu0 %v3048, 126
          %v3139 = vpop.permute.xlu0 %3138
          %3140 = vrot.lane.b32.xlu0 %v3049, 126
          %v3141 = vpop.permute.xlu0 %3140
          %3142 = vrot.lane.b32.xlu0 %v3050, 126
          %v3143 = vpop.permute.xlu0 %3142
          %3144 = vrot.lane.b32.xlu0 %v3051, 126
          %v3145 = vpop.permute.xlu0 %3144
          %3146 = vrot.lane.b32.xlu0 %v3052, 126
          %v3147 = vpop.permute.xlu0 %3146
          %3148 = vrot.lane.b32.xlu0 %v3053, 126
          %v3149 = vpop.permute.xlu0 %3148
          %3150 = vrot.lane.b32.xlu0 %v3054, 126
          %v3151 = vpop.permute.xlu0 %3150
          %3152 = vrot.lane.b32.xlu0 %v3055, 126
          %v3153 = vpop.permute.xlu0 %3152
          %3154 = vrot.lane.b32.xlu0 %v3056, 126
          %v3155 = vpop.permute.xlu0 %3154
          %3156 = vrot.lane.b32.xlu0 %v3057, 126
          %v3157 = vpop.permute.xlu0 %3156
          %3158 = vrot.lane.b32.xlu0 %v3058, 126
          %v3159 = vpop.permute.xlu0 %3158
          %3160 = vrot.lane.b32.xlu0 %v3059, 126
          %v3161 = vpop.permute.xlu0 %3160
          %3162 = vrot.lane.b32.xlu0 %v3060, 126
          %v3163 = vpop.permute.xlu0 %3162
          %3164 = vrot.lane.b32.xlu0 %v3061, 126
          %v3165 = vpop.permute.xlu0 %3164
          %v3166 = vsel %vm529, %v3135, %v3137
          %v3167 = vsel %vm529, %v3139, %v3141
          %v3168 = vsel %vm529, %v3143, %v3145
          %v3169 = vsel %vm529, %v3147, %v3149
          %v3170 = vsel %vm529, %v3151, %v3153
          %v3171 = vsel %vm529, %v3155, %v3157
          %v3172 = vsel %vm529, %v3159, %v3161
          %v3173 = vsel %vm529, %v3163, %v3165
          %3190 = vrot.lane.b32.xlu0 %v3046, 112
          %v3191 = vpop.permute.xlu0 %3190
          %3192 = vrot.lane.b32.xlu0 %v3047, 112
          %v3193 = vpop.permute.xlu0 %3192
          %3194 = vrot.lane.b32.xlu0 %v3048, 112
          %v3195 = vpop.permute.xlu0 %3194
          %3196 = vrot.lane.b32.xlu0 %v3049, 112
          %v3197 = vpop.permute.xlu0 %3196
          %3198 = vrot.lane.b32.xlu0 %v3050, 112
          %v3199 = vpop.permute.xlu0 %3198
          %3200 = vrot.lane.b32.xlu0 %v3051, 112
          %v3201 = vpop.permute.xlu0 %3200
          %3202 = vrot.lane.b32.xlu0 %v3052, 112
          %v3203 = vpop.permute.xlu0 %3202
          %3204 = vrot.lane.b32.xlu0 %v3053, 112
          %v3205 = vpop.permute.xlu0 %3204
          %3206 = vrot.lane.b32.xlu0 %v3054, 112
          %v3207 = vpop.permute.xlu0 %3206
          %3208 = vrot.lane.b32.xlu0 %v3055, 112
          %v3209 = vpop.permute.xlu0 %3208
          %3210 = vrot.lane.b32.xlu0 %v3056, 112
          %v3211 = vpop.permute.xlu0 %3210
          %3212 = vrot.lane.b32.xlu0 %v3057, 112
          %v3213 = vpop.permute.xlu0 %3212
          %3214 = vrot.lane.b32.xlu0 %v3058, 112
          %v3215 = vpop.permute.xlu0 %3214
          %3216 = vrot.lane.b32.xlu0 %v3059, 112
          %v3217 = vpop.permute.xlu0 %3216
          %3218 = vrot.lane.b32.xlu0 %v3060, 112
          %v3219 = vpop.permute.xlu0 %3218
          %3220 = vrot.lane.b32.xlu0 %v3061, 112
          %v3221 = vpop.permute.xlu0 %3220
          %v3222 = vsel %vm558, %v3191, %v3193
          %v3223 = vsel %vm558, %v3195, %v3197
          %v3224 = vsel %vm558, %v3199, %v3201
          %v3225 = vsel %vm558, %v3203, %v3205
          %v3226 = vsel %vm558, %v3207, %v3209
          %v3227 = vsel %vm558, %v3211, %v3213
          %v3228 = vsel %vm558, %v3215, %v3217
          %v3229 = vsel %vm558, %v3219, %v3221
          %3246 = vrot.lane.b32.xlu0 %v3046, 111
          %v3247 = vpop.permute.xlu0 %3246
          %3248 = vrot.lane.b32.xlu0 %v3047, 111
          %v3249 = vpop.permute.xlu0 %3248
          %3250 = vrot.lane.b32.xlu0 %v3048, 111
          %v3251 = vpop.permute.xlu0 %3250
          %3252 = vrot.lane.b32.xlu0 %v3049, 111
          %v3253 = vpop.permute.xlu0 %3252
          %3254 = vrot.lane.b32.xlu0 %v3050, 111
          %v3255 = vpop.permute.xlu0 %3254
          %3256 = vrot.lane.b32.xlu0 %v3051, 111
          %v3257 = vpop.permute.xlu0 %3256
          %3258 = vrot.lane.b32.xlu0 %v3052, 111
          %v3259 = vpop.permute.xlu0 %3258
          %3260 = vrot.lane.b32.xlu0 %v3053, 111
          %v3261 = vpop.permute.xlu0 %3260
          %3262 = vrot.lane.b32.xlu0 %v3054, 111
          %v3263 = vpop.permute.xlu0 %3262
          %3264 = vrot.lane.b32.xlu0 %v3055, 111
          %v3265 = vpop.permute.xlu0 %3264
          %3266 = vrot.lane.b32.xlu0 %v3056, 111
          %v3267 = vpop.permute.xlu0 %3266
          %3268 = vrot.lane.b32.xlu0 %v3057, 111
          %v3269 = vpop.permute.xlu0 %3268
          %3270 = vrot.lane.b32.xlu0 %v3058, 111
          %v3271 = vpop.permute.xlu0 %3270
          %3272 = vrot.lane.b32.xlu0 %v3059, 111
          %v3273 = vpop.permute.xlu0 %3272
          %3274 = vrot.lane.b32.xlu0 %v3060, 111
          %v3275 = vpop.permute.xlu0 %3274
          %3276 = vrot.lane.b32.xlu0 %v3061, 111
          %v3277 = vpop.permute.xlu0 %3276
          %v3278 = vsel %vm582, %v3247, %v3249
          %v3279 = vsel %vm582, %v3251, %v3253
          %v3280 = vsel %vm582, %v3255, %v3257
          %v3281 = vsel %vm582, %v3259, %v3261
          %v3282 = vsel %vm582, %v3263, %v3265
          %v3283 = vsel %vm582, %v3267, %v3269
          %v3284 = vsel %vm582, %v3271, %v3273
          %v3285 = vsel %vm582, %v3275, %v3277
          %3302 = vrot.lane.b32.xlu0 %v3046, 110
          %v3303 = vpop.permute.xlu0 %3302
          %3304 = vrot.lane.b32.xlu0 %v3047, 110
          %v3305 = vpop.permute.xlu0 %3304
          %3306 = vrot.lane.b32.xlu0 %v3048, 110
          %v3307 = vpop.permute.xlu0 %3306
          %3308 = vrot.lane.b32.xlu0 %v3049, 110
          %v3309 = vpop.permute.xlu0 %3308
          %3310 = vrot.lane.b32.xlu0 %v3050, 110
          %v3311 = vpop.permute.xlu0 %3310
          %3312 = vrot.lane.b32.xlu0 %v3051, 110
          %v3313 = vpop.permute.xlu0 %3312
          %3314 = vrot.lane.b32.xlu0 %v3052, 110
          %v3315 = vpop.permute.xlu0 %3314
          %3316 = vrot.lane.b32.xlu0 %v3053, 110
          %v3317 = vpop.permute.xlu0 %3316
          %3318 = vrot.lane.b32.xlu0 %v3054, 110
          %v3319 = vpop.permute.xlu0 %3318
          %3320 = vrot.lane.b32.xlu0 %v3055, 110
          %v3321 = vpop.permute.xlu0 %3320
          %3322 = vrot.lane.b32.xlu0 %v3056, 110
          %v3323 = vpop.permute.xlu0 %3322
          %3324 = vrot.lane.b32.xlu0 %v3057, 110
          %v3325 = vpop.permute.xlu0 %3324
          %3326 = vrot.lane.b32.xlu0 %v3058, 110
          %v3327 = vpop.permute.xlu0 %3326
          %3328 = vrot.lane.b32.xlu0 %v3059, 110
          %v3329 = vpop.permute.xlu0 %3328
          %3330 = vrot.lane.b32.xlu0 %v3060, 110
          %v3331 = vpop.permute.xlu0 %3330
          %3332 = vrot.lane.b32.xlu0 %v3061, 110
          %v3333 = vpop.permute.xlu0 %3332
          %v3334 = vsel %vm611, %v3303, %v3305
          %v3335 = vsel %vm611, %v3307, %v3309
          %v3336 = vsel %vm611, %v3311, %v3313
          %v3337 = vsel %vm611, %v3315, %v3317
          %v3338 = vsel %vm611, %v3319, %v3321
          %v3339 = vsel %vm611, %v3323, %v3325
          %v3340 = vsel %vm611, %v3327, %v3329
          %v3341 = vsel %vm611, %v3331, %v3333
          %3358 = vrot.lane.b32.xlu0 %v3046, 96
          %v3359 = vpop.permute.xlu0 %3358
          %3360 = vrot.lane.b32.xlu0 %v3047, 96
          %v3361 = vpop.permute.xlu0 %3360
          %3362 = vrot.lane.b32.xlu0 %v3048, 96
          %v3363 = vpop.permute.xlu0 %3362
          %3364 = vrot.lane.b32.xlu0 %v3049, 96
          %v3365 = vpop.permute.xlu0 %3364
          %3366 = vrot.lane.b32.xlu0 %v3050, 96
          %v3367 = vpop.permute.xlu0 %3366
          %3368 = vrot.lane.b32.xlu0 %v3051, 96
          %v3369 = vpop.permute.xlu0 %3368
          %3370 = vrot.lane.b32.xlu0 %v3052, 96
          %v3371 = vpop.permute.xlu0 %3370
          %3372 = vrot.lane.b32.xlu0 %v3053, 96
          %v3373 = vpop.permute.xlu0 %3372
          %3374 = vrot.lane.b32.xlu0 %v3054, 96
          %v3375 = vpop.permute.xlu0 %3374
          %3376 = vrot.lane.b32.xlu0 %v3055, 96
          %v3377 = vpop.permute.xlu0 %3376
          %3378 = vrot.lane.b32.xlu0 %v3056, 96
          %v3379 = vpop.permute.xlu0 %3378
          %3380 = vrot.lane.b32.xlu0 %v3057, 96
          %v3381 = vpop.permute.xlu0 %3380
          %3382 = vrot.lane.b32.xlu0 %v3058, 96
          %v3383 = vpop.permute.xlu0 %3382
          %3384 = vrot.lane.b32.xlu0 %v3059, 96
          %v3385 = vpop.permute.xlu0 %3384
          %3386 = vrot.lane.b32.xlu0 %v3060, 96
          %v3387 = vpop.permute.xlu0 %3386
          %3388 = vrot.lane.b32.xlu0 %v3061, 96
          %v3389 = vpop.permute.xlu0 %3388
          %v3390 = vsel %vm640, %v3359, %v3361
          %v3391 = vsel %vm640, %v3363, %v3365
          %v3392 = vsel %vm640, %v3367, %v3369
          %v3393 = vsel %vm640, %v3371, %v3373
          %v3394 = vsel %vm640, %v3375, %v3377
          %v3395 = vsel %vm640, %v3379, %v3381
          %v3396 = vsel %vm640, %v3383, %v3385
          %v3397 = vsel %vm640, %v3387, %v3389
          %3414 = vrot.lane.b32.xlu0 %v3046, 95
          %v3415 = vpop.permute.xlu0 %3414
          %3416 = vrot.lane.b32.xlu0 %v3047, 95
          %v3417 = vpop.permute.xlu0 %3416
          %3418 = vrot.lane.b32.xlu0 %v3048, 95
          %v3419 = vpop.permute.xlu0 %3418
          %3420 = vrot.lane.b32.xlu0 %v3049, 95
          %v3421 = vpop.permute.xlu0 %3420
          %3422 = vrot.lane.b32.xlu0 %v3050, 95
          %v3423 = vpop.permute.xlu0 %3422
          %3424 = vrot.lane.b32.xlu0 %v3051, 95
          %v3425 = vpop.permute.xlu0 %3424
          %3426 = vrot.lane.b32.xlu0 %v3052, 95
          %v3427 = vpop.permute.xlu0 %3426
          %3428 = vrot.lane.b32.xlu0 %v3053, 95
          %v3429 = vpop.permute.xlu0 %3428
          %3430 = vrot.lane.b32.xlu0 %v3054, 95
          %v3431 = vpop.permute.xlu0 %3430
          %3432 = vrot.lane.b32.xlu0 %v3055, 95
          %v3433 = vpop.permute.xlu0 %3432
          %3434 = vrot.lane.b32.xlu0 %v3056, 95
          %v3435 = vpop.permute.xlu0 %3434
          %3436 = vrot.lane.b32.xlu0 %v3057, 95
          %v3437 = vpop.permute.xlu0 %3436
          %3438 = vrot.lane.b32.xlu0 %v3058, 95
          %v3439 = vpop.permute.xlu0 %3438
          %3440 = vrot.lane.b32.xlu0 %v3059, 95
          %v3441 = vpop.permute.xlu0 %3440
          %3442 = vrot.lane.b32.xlu0 %v3060, 95
          %v3443 = vpop.permute.xlu0 %3442
          %3444 = vrot.lane.b32.xlu0 %v3061, 95
          %v3445 = vpop.permute.xlu0 %3444
          %v3446 = vsel %vm669, %v3415, %v3417
          %v3447 = vsel %vm669, %v3419, %v3421
          %v3448 = vsel %vm669, %v3423, %v3425
          %v3449 = vsel %vm669, %v3427, %v3429
          %v3450 = vsel %vm669, %v3431, %v3433
          %v3451 = vsel %vm669, %v3435, %v3437
          %v3452 = vsel %vm669, %v3439, %v3441
          %v3453 = vsel %vm669, %v3443, %v3445
          %3470 = vrot.lane.b32.xlu0 %v3046, 94
          %v3471 = vpop.permute.xlu0 %3470
          %3472 = vrot.lane.b32.xlu0 %v3047, 94
          %v3473 = vpop.permute.xlu0 %3472
          %3474 = vrot.lane.b32.xlu0 %v3048, 94
          %v3475 = vpop.permute.xlu0 %3474
          %3476 = vrot.lane.b32.xlu0 %v3049, 94
          %v3477 = vpop.permute.xlu0 %3476
          %3478 = vrot.lane.b32.xlu0 %v3050, 94
          %v3479 = vpop.permute.xlu0 %3478
          %3480 = vrot.lane.b32.xlu0 %v3051, 94
          %v3481 = vpop.permute.xlu0 %3480
          %3482 = vrot.lane.b32.xlu0 %v3052, 94
          %v3483 = vpop.permute.xlu0 %3482
          %3484 = vrot.lane.b32.xlu0 %v3053, 94
          %v3485 = vpop.permute.xlu0 %3484
          %3486 = vrot.lane.b32.xlu0 %v3054, 94
          %v3487 = vpop.permute.xlu0 %3486
          %3488 = vrot.lane.b32.xlu0 %v3055, 94
          %v3489 = vpop.permute.xlu0 %3488
          %3490 = vrot.lane.b32.xlu0 %v3056, 94
          %v3491 = vpop.permute.xlu0 %3490
          %3492 = vrot.lane.b32.xlu0 %v3057, 94
          %v3493 = vpop.permute.xlu0 %3492
          %3494 = vrot.lane.b32.xlu0 %v3058, 94
          %v3495 = vpop.permute.xlu0 %3494
          %3496 = vrot.lane.b32.xlu0 %v3059, 94
          %v3497 = vpop.permute.xlu0 %3496
          %3498 = vrot.lane.b32.xlu0 %v3060, 94
          %v3499 = vpop.permute.xlu0 %3498
          %3500 = vrot.lane.b32.xlu0 %v3061, 94
          %v3501 = vpop.permute.xlu0 %3500
          %v3502 = vsel %vm689, %v3471, %v3473
          %v3503 = vsel %vm689, %v3475, %v3477
          %v3504 = vsel %vm689, %v3479, %v3481
          %v3505 = vsel %vm689, %v3483, %v3485
          %v3506 = vsel %vm689, %v3487, %v3489
          %v3507 = vsel %vm689, %v3491, %v3493
          %v3508 = vsel %vm689, %v3495, %v3497
          %v3509 = vsel %vm689, %v3499, %v3501
          %v3526 = vld [vmem:[%s5] sm:$0xff]
          %v3527 = vld [vmem:[%s5 + $0x8] sm:$0xff]
          %v3528 = vld [vmem:[%s5 + $0x10] sm:$0xff]
          %v3529 = vld [vmem:[%s5 + $0x18] sm:$0xff]
          %v3530 = vld [vmem:[%s5 + $0x20] sm:$0xf]
          %v3531 = vld [vmem:[%s5 + $0x24] sm:$0xff]
          %v3532 = vld [vmem:[%s5 + $0x2c] sm:$0xff]
          %v3533 = vld [vmem:[%s5 + $0x34] sm:$0xff]
          %v3534 = vld [vmem:[%s5 + $0x3c] sm:$0xff]
          %v3535 = vld [vmem:[%s5 + $0x44] sm:$0xf]
          %v3536 = vld [vmem:[%s5 + $0x48] sm:$0xff]
          %v3537 = vld [vmem:[%s5 + $0x50] sm:$0xff]
          %v3538 = vld [vmem:[%s5 + $0x58] sm:$0xff]
          %v3539 = vld [vmem:[%s5 + $0x60] sm:$0xff]
          %v3540 = vld [vmem:[%s5 + $0x68] sm:$0xf]
          %v3541 = vld [vmem:[%s5 + $0x6c] sm:$0xff]
          %v3542 = vld [vmem:[%s5 + $0x74] sm:$0xff]
          %v3543 = vld [vmem:[%s5 + $0x7c] sm:$0xff]
          %v3544 = vld [vmem:[%s5 + $0x84] sm:$0xff]
          %v3545 = vld [vmem:[%s5 + $0x8c] sm:$0xf]
          %v3546 = vld [vmem:[%s5 + $0x90] sm:$0xff]
          %v3547 = vld [vmem:[%s5 + $0x98] sm:$0xff]
          %v3548 = vld [vmem:[%s5 + $0xa0] sm:$0xff]
          %v3549 = vld [vmem:[%s5 + $0xa8] sm:$0xff]
          %v3550 = vld [vmem:[%s5 + $0xb0] sm:$0xf]
          %v3551 = vld [vmem:[%s5 + $0xb4] sm:$0xff]
          %v3552 = vld [vmem:[%s5 + $0xbc] sm:$0xff]
          %v3553 = vld [vmem:[%s5 + $0xc4] sm:$0xff]
          %v3554 = vld [vmem:[%s5 + $0xcc] sm:$0xff]
          %v3555 = vld [vmem:[%s5 + $0xd4] sm:$0xf]
          %v3556 = vld [vmem:[%s5 + $0xd8] sm:$0xff]
          %v3557 = vld [vmem:[%s5 + $0xe0] sm:$0xff]
          %v3558 = vld [vmem:[%s5 + $0xe8] sm:$0xff]
          %v3559 = vld [vmem:[%s5 + $0xf0] sm:$0xff]
          %v3560 = vld [vmem:[%s5 + $0xf8] sm:$0xf]
          %v3561 = vld [vmem:[%s5 + $0xfc] sm:$0xff]
          %v3562 = vld [vmem:[%s5 + $0x104] sm:$0xff]
          %v3563 = vld [vmem:[%s5 + $0x10c] sm:$0xff]
          %v3564 = vld [vmem:[%s5 + $0x114] sm:$0xff]
          %v3565 = vld [vmem:[%s5 + $0x11c] sm:$0xf]
          %v3566 = vld [vmem:[%s5 + $0x120] sm:$0xff]
          %v3567 = vld [vmem:[%s5 + $0x128] sm:$0xff]
          %v3568 = vld [vmem:[%s5 + $0x130] sm:$0xff]
          %v3569 = vld [vmem:[%s5 + $0x138] sm:$0xff]
          %v3570 = vld [vmem:[%s5 + $0x140] sm:$0xf]
          %v3571 = vld [vmem:[%s5 + $0x144] sm:$0xff]
          %v3572 = vld [vmem:[%s5 + $0x14c] sm:$0xff]
          %v3573 = vld [vmem:[%s5 + $0x154] sm:$0xff]
          %v3574 = vld [vmem:[%s5 + $0x15c] sm:$0xff]
          %v3575 = vld [vmem:[%s5 + $0x164] sm:$0xf]
          %v3576 = vld [vmem:[%s5 + $0x168] sm:$0xff]
          %v3577 = vld [vmem:[%s5 + $0x170] sm:$0xff]
          %v3578 = vld [vmem:[%s5 + $0x178] sm:$0xff]
          %v3579 = vld [vmem:[%s5 + $0x180] sm:$0xff]
          %v3580 = vld [vmem:[%s5 + $0x188] sm:$0xf]
          %v3581 = vld [vmem:[%s5 + $0x18c] sm:$0xff]
          %v3582 = vld [vmem:[%s5 + $0x194] sm:$0xff]
          %v3583 = vld [vmem:[%s5 + $0x19c] sm:$0xff]
          %v3584 = vld [vmem:[%s5 + $0x1a4] sm:$0xff]
          %v3585 = vld [vmem:[%s5 + $0x1ac] sm:$0xf]
          %v3586 = vld [vmem:[%s6] sm:$0xff]
          %v3587 = vld [vmem:[%s6 + $0x8] sm:$0xff]
          %v3588 = vld [vmem:[%s6 + $0x10] sm:$0xff]
          %v3589 = vld [vmem:[%s6 + $0x18] sm:$0xff]
          %v3590 = vld [vmem:[%s6 + $0x20] sm:$0xff]
          %v3591 = vld [vmem:[%s6 + $0x28] sm:$0xff]
          %v3592 = vld [vmem:[%s6 + $0x30] sm:$0xff]
          %v3593 = vld [vmem:[%s6 + $0x38] sm:$0xff]
          %v3594 = vld [vmem:[%s6 + $0x40] sm:$0xff]
          %v3595 = vld [vmem:[%s6 + $0x48] sm:$0xff]
          %v3596 = vld [vmem:[%s6 + $0x50] sm:$0xff]
          %v3597 = vld [vmem:[%s6 + $0x58] sm:$0xff]
          %3599 = vset.pattern.permute.xlu0 0
          %3600 = vperm.xlu0 %3599, %v3586
          %v3601 = vpop.permute.xlu0 %3600
          %3604 = vset.pattern.permute.xlu0 0
          %3605 = vperm.xlu0 %3604, %v3587
          %v3606 = vpop.permute.xlu0 %3605
          %3609 = vset.pattern.permute.xlu0 0
          %3610 = vperm.xlu0 %3609, %v3588
          %v3611 = vpop.permute.xlu0 %3610
          %3614 = vset.pattern.permute.xlu0 0
          %3615 = vperm.xlu0 %3614, %v3589
          %v3616 = vpop.permute.xlu0 %3615
          %3619 = vset.pattern.permute.xlu0 0
          %3620 = vperm.xlu0 %3619, %v3590
          %v3621 = vpop.permute.xlu0 %3620
          %3624 = vset.pattern.permute.xlu0 0
          %3625 = vperm.xlu0 %3624, %v3591
          %v3626 = vpop.permute.xlu0 %3625
          %3629 = vset.pattern.permute.xlu0 0
          %3630 = vperm.xlu0 %3629, %v3592
          %v3631 = vpop.permute.xlu0 %3630
          %3634 = vset.pattern.permute.xlu0 0
          %3635 = vperm.xlu0 %3634, %v3593
          %v3636 = vpop.permute.xlu0 %3635
          %3639 = vset.pattern.permute.xlu0 0
          %3640 = vperm.xlu0 %3639, %v3594
          %v3641 = vpop.permute.xlu0 %3640
          %3644 = vset.pattern.permute.xlu0 0
          %3645 = vperm.xlu0 %3644, %v3595
          %v3646 = vpop.permute.xlu0 %3645
          %3649 = vset.pattern.permute.xlu0 0
          %3650 = vperm.xlu0 %3649, %v3596
          %v3651 = vpop.permute.xlu0 %3650
          %3654 = vset.pattern.permute.xlu0 0
          %3655 = vperm.xlu0 %3654, %v3597
          %v3656 = vpop.permute.xlu0 %3655
          %v3718 = vunpack.c.l.b16 %v3526
          %v3719 = vunpack.c.h.b16 %v3526
          %v3720 = vunpack.c.l.b16 %v3527
          %v3721 = vunpack.c.h.b16 %v3527
          %v3722 = vunpack.c.l.b16 %v3528
          %v3723 = vunpack.c.h.b16 %v3528
          %v3724 = vunpack.c.l.b16 %v3529
          %v3725 = vunpack.c.h.b16 %v3529
          %v3726 = vunpack.c.l.b16 %v3530
          %v3727 = vunpack.c.l.b16 %v3531
          %v3728 = vunpack.c.h.b16 %v3531
          %v3729 = vunpack.c.l.b16 %v3532
          %v3730 = vunpack.c.h.b16 %v3532
          %v3731 = vunpack.c.l.b16 %v3533
          %v3732 = vunpack.c.h.b16 %v3533
          %v3733 = vunpack.c.l.b16 %v3534
          %v3734 = vunpack.c.h.b16 %v3534
          %v3735 = vunpack.c.l.b16 %v3535
          %v3736 = vunpack.c.l.b16 %v3536
          %v3737 = vunpack.c.h.b16 %v3536
          %v3738 = vunpack.c.l.b16 %v3537
          %v3739 = vunpack.c.h.b16 %v3537
          %v3740 = vunpack.c.l.b16 %v3538
          %v3741 = vunpack.c.h.b16 %v3538
          %v3742 = vunpack.c.l.b16 %v3539
          %v3743 = vunpack.c.h.b16 %v3539
          %v3744 = vunpack.c.l.b16 %v3540
          %v3745 = vunpack.c.l.b16 %v3541
          %v3746 = vunpack.c.h.b16 %v3541
          %v3747 = vunpack.c.l.b16 %v3542
          %v3748 = vunpack.c.h.b16 %v3542
          %v3749 = vunpack.c.l.b16 %v3543
          %v3750 = vunpack.c.h.b16 %v3543
          %v3751 = vunpack.c.l.b16 %v3544
          %v3752 = vunpack.c.h.b16 %v3544
          %v3753 = vunpack.c.l.b16 %v3545
          %v3754 = vunpack.c.l.b16 %v3546
          %v3755 = vunpack.c.h.b16 %v3546
          %v3756 = vunpack.c.l.b16 %v3547
          %v3757 = vunpack.c.h.b16 %v3547
          %v3758 = vunpack.c.l.b16 %v3548
          %v3759 = vunpack.c.h.b16 %v3548
          %v3760 = vunpack.c.l.b16 %v3549
          %v3761 = vunpack.c.h.b16 %v3549
          %v3762 = vunpack.c.l.b16 %v3550
          %v3763 = vunpack.c.l.b16 %v3551
          %v3764 = vunpack.c.h.b16 %v3551
          %v3765 = vunpack.c.l.b16 %v3552
          %v3766 = vunpack.c.h.b16 %v3552
          %v3767 = vunpack.c.l.b16 %v3553
          %v3768 = vunpack.c.h.b16 %v3553
          %v3769 = vunpack.c.l.b16 %v3554
          %v3770 = vunpack.c.h.b16 %v3554
          %v3771 = vunpack.c.l.b16 %v3555
          %v3772 = vunpack.c.l.b16 %v3556
          %v3773 = vunpack.c.h.b16 %v3556
          %v3774 = vunpack.c.l.b16 %v3557
          %v3775 = vunpack.c.h.b16 %v3557
          %v3776 = vunpack.c.l.b16 %v3558
          %v3777 = vunpack.c.h.b16 %v3558
          %v3778 = vunpack.c.l.b16 %v3559
          %v3779 = vunpack.c.h.b16 %v3559
          %v3780 = vunpack.c.l.b16 %v3560
          %v3781 = vunpack.c.l.b16 %v3561
          %v3782 = vunpack.c.h.b16 %v3561
          %v3783 = vunpack.c.l.b16 %v3562
          %v3784 = vunpack.c.h.b16 %v3562
          %v3785 = vunpack.c.l.b16 %v3563
          %v3786 = vunpack.c.h.b16 %v3563
          %v3787 = vunpack.c.l.b16 %v3564
          %v3788 = vunpack.c.h.b16 %v3564
          %v3789 = vunpack.c.l.b16 %v3565
          %v3790 = vunpack.c.l.b16 %v3566
          %v3791 = vunpack.c.h.b16 %v3566
          %v3792 = vunpack.c.l.b16 %v3567
          %v3793 = vunpack.c.h.b16 %v3567
          %v3794 = vunpack.c.l.b16 %v3568
          %v3795 = vunpack.c.h.b16 %v3568
          %v3796 = vunpack.c.l.b16 %v3569
          %v3797 = vunpack.c.h.b16 %v3569
          %v3798 = vunpack.c.l.b16 %v3570
          %v3799 = vunpack.c.l.b16 %v3571
          %v3800 = vunpack.c.h.b16 %v3571
          %v3801 = vunpack.c.l.b16 %v3572
          %v3802 = vunpack.c.h.b16 %v3572
          %v3803 = vunpack.c.l.b16 %v3573
          %v3804 = vunpack.c.h.b16 %v3573
          %v3805 = vunpack.c.l.b16 %v3574
          %v3806 = vunpack.c.h.b16 %v3574
          %v3807 = vunpack.c.l.b16 %v3575
          %v3808 = vunpack.c.l.b16 %v3576
          %v3809 = vunpack.c.h.b16 %v3576
          %v3810 = vunpack.c.l.b16 %v3577
          %v3811 = vunpack.c.h.b16 %v3577
          %v3812 = vunpack.c.l.b16 %v3578
          %v3813 = vunpack.c.h.b16 %v3578
          %v3814 = vunpack.c.l.b16 %v3579
          %v3815 = vunpack.c.h.b16 %v3579
          %v3816 = vunpack.c.l.b16 %v3580
          %v3817 = vunpack.c.l.b16 %v3581
          %v3818 = vunpack.c.h.b16 %v3581
          %v3819 = vunpack.c.l.b16 %v3582
          %v3820 = vunpack.c.h.b16 %v3582
          %v3821 = vunpack.c.l.b16 %v3583
          %v3822 = vunpack.c.h.b16 %v3583
          %v3823 = vunpack.c.l.b16 %v3584
          %v3824 = vunpack.c.h.b16 %v3584
          %v3825 = vunpack.c.l.b16 %v3585
          %v3826 = vpack.c.b16 %v3727, %v3718
          %v3827 = vpack.c.b16 %v3728, %v3719
          %v3828 = vpack.c.b16 %v3729, %v3720
          %v3829 = vpack.c.b16 %v3730, %v3721
          %v3830 = vpack.c.b16 %v3731, %v3722
          %v3831 = vpack.c.b16 %v3732, %v3723
          %v3832 = vpack.c.b16 %v3733, %v3724
          %v3833 = vpack.c.b16 %v3734, %v3725
          %v3834 = vpack.c.b16 %v3735, %v3726
          %v3835 = vpack.c.b16 %v3745, %v3736
          %v3836 = vpack.c.b16 %v3746, %v3737
          %v3837 = vpack.c.b16 %v3747, %v3738
          %v3838 = vpack.c.b16 %v3748, %v3739
          %v3839 = vpack.c.b16 %v3749, %v3740
          %v3840 = vpack.c.b16 %v3750, %v3741
          %v3841 = vpack.c.b16 %v3751, %v3742
          %v3842 = vpack.c.b16 %v3752, %v3743
          %v3843 = vpack.c.b16 %v3753, %v3744
          %v3844 = vpack.c.b16 %v3763, %v3754
          %v3845 = vpack.c.b16 %v3764, %v3755
          %v3846 = vpack.c.b16 %v3765, %v3756
          %v3847 = vpack.c.b16 %v3766, %v3757
          %v3848 = vpack.c.b16 %v3767, %v3758
          %v3849 = vpack.c.b16 %v3768, %v3759
          %v3850 = vpack.c.b16 %v3769, %v3760
          %v3851 = vpack.c.b16 %v3770, %v3761
          %v3852 = vpack.c.b16 %v3771, %v3762
          %v3853 = vpack.c.b16 %v3781, %v3772
          %v3854 = vpack.c.b16 %v3782, %v3773
          %v3855 = vpack.c.b16 %v3783, %v3774
          %v3856 = vpack.c.b16 %v3784, %v3775
          %v3857 = vpack.c.b16 %v3785, %v3776
          %v3858 = vpack.c.b16 %v3786, %v3777
          %v3859 = vpack.c.b16 %v3787, %v3778
          %v3860 = vpack.c.b16 %v3788, %v3779
          %v3861 = vpack.c.b16 %v3789, %v3780
          %v3862 = vpack.c.b16 %v3799, %v3790
          %v3863 = vpack.c.b16 %v3800, %v3791
          %v3864 = vpack.c.b16 %v3801, %v3792
          %v3865 = vpack.c.b16 %v3802, %v3793
          %v3866 = vpack.c.b16 %v3803, %v3794
          %v3867 = vpack.c.b16 %v3804, %v3795
          %v3868 = vpack.c.b16 %v3805, %v3796
          %v3869 = vpack.c.b16 %v3806, %v3797
          %v3870 = vpack.c.b16 %v3807, %v3798
          %v3871 = vpack.c.b16 %v3817, %v3808
          %v3872 = vpack.c.b16 %v3818, %v3809
          %v3873 = vpack.c.b16 %v3819, %v3810
          %v3874 = vpack.c.b16 %v3820, %v3811
          %v3875 = vpack.c.b16 %v3821, %v3812
          %v3876 = vpack.c.b16 %v3822, %v3813
          %v3877 = vpack.c.b16 %v3823, %v3814
          %v3878 = vpack.c.b16 %v3824, %v3815
          %v3879 = vpack.c.b16 %v3825, %v3816
          %3934 = vmatprep.subr.bf16.mxu0 %v3047
          %3935 = vmatpush1.bf16.msra.mxu0 %v3046
          %3936 = vmatprep.subr.bf16.mxu0 %v3049
          %3937 = vmatpush1.bf16.msra.mxu0 %v3048
          %3938 = vmatprep.subr.bf16.mxu0 %v3051
          %3939 = vmatpush1.bf16.msra.mxu0 %v3050
          %3940 = vmatprep.subr.bf16.mxu0 %v3053
          %3941 = vmatpush1.bf16.msra.mxu0 %v3052
          %3942 = vmatprep.subr.bf16.mxu0 %v3055
          %3943 = vmatpush1.bf16.msra.mxu0 %v3054
          %3944 = vmatprep.subr.bf16.mxu0 %v3057
          %3945 = vmatpush1.bf16.msra.mxu0 %v3056
          %3946 = vmatprep.subr.bf16.mxu0 %v3059
          %3947 = vmatpush1.bf16.msra.mxu0 %v3058
          %3948 = vmatprep.subr.bf16.mxu0 %v3061
          %3949 = vmatpush1.bf16.msra.mxu0 %v3060
          %3950 = vmatprep.subr.bf16.mxu0 %v3081
          %3951 = vmatpush1.bf16.msra.mxu0 %v3110
          %3952 = vmatprep.subr.bf16.mxu0 %v3085
          %3953 = vmatpush1.bf16.msra.mxu0 %v3111
          %3954 = vmatprep.subr.bf16.mxu0 %v3089
          %3955 = vmatpush1.bf16.msra.mxu0 %v3112
          %3956 = vmatprep.subr.bf16.mxu0 %v3093
          %3957 = vmatpush1.bf16.msra.mxu0 %v3113
          %3958 = vmatprep.subr.bf16.mxu0 %v3097
          %3959 = vmatpush1.bf16.msra.mxu0 %v3114
          %3960 = vmatprep.subr.bf16.mxu0 %v3101
          %3961 = vmatpush1.bf16.msra.mxu0 %v3115
          %3962 = vmatprep.subr.bf16.mxu0 %v3105
          %3963 = vmatpush1.bf16.msra.mxu0 %v3116
          %3964 = vmatprep.subr.bf16.mxu0 %v3109
          %3965 = vmatpush1.bf16.msra.mxu0 %v3117
          %3966 = vmatprep.mubr.bf16.mxu0 %v3827
          %3967 = vmatmul.mubr.bf16.gmra.mrb[0].mxu0 %v3826
          %v3968 = vpop.f32.mrb[0].mxu0
          %v3969 = vadd.f32 %v3601, %v3968
          %v3970 = vpop.f32.mrb[0].mxu0
          %v3971 = vadd.f32 %v3601, %v3970
          %v3972 = vpop.f32.mrb[0].mxu0
          %v3973 = vadd.f32 %v3606, %v3972
          %v3974 = vpop.f32.mrb[0].mxu0
          %v3975 = vadd.f32 %v3606, %v3974
          %3976 = vmatprep.mubr.bf16.mxu0 %v3836
          %3977 = vmatmul.mubr.bf16.gmra.mrb[0].mxu0 %v3835
          %v3978 = vpop.f32.mrb[0].mxu0
          %v3979 = vadd.f32 %v3611, %v3978
          %v3980 = vpop.f32.mrb[0].mxu0
          %v3981 = vadd.f32 %v3611, %v3980
          %v3982 = vpop.f32.mrb[0].mxu0
          %v3983 = vadd.f32 %v3616, %v3982
          %v3984 = vpop.f32.mrb[0].mxu0
          %v3985 = vadd.f32 %v3616, %v3984
          %3986 = vmatprep.mubr.bf16.mxu0 %v3845
          %3987 = vmatmul.mubr.bf16.gmra.mrb[0].mxu0 %v3844
          %v3988 = vpop.f32.mrb[0].mxu0
          %v3989 = vadd.f32 %v3621, %v3988
          %v3990 = vpop.f32.mrb[0].mxu0
          %v3991 = vadd.f32 %v3621, %v3990
          %v3992 = vpop.f32.mrb[0].mxu0
          %v3993 = vadd.f32 %v3626, %v3992
          %v3994 = vpop.f32.mrb[0].mxu0
          %v3995 = vadd.f32 %v3626, %v3994
          %3996 = vmatprep.mubr.bf16.mxu0 %v3854
          %3997 = vmatmul.mubr.bf16.gmra.mrb[0].mxu0 %v3853
          %v3998 = vpop.f32.mrb[0].mxu0
          %v3999 = vadd.f32 %v3631, %v3998
          %v4000 = vpop.f32.mrb[0].mxu0
          %v4001 = vadd.f32 %v3631, %v4000
          %v4002 = vpop.f32.mrb[0].mxu0
          %v4003 = vadd.f32 %v3636, %v4002
          %v4004 = vpop.f32.mrb[0].mxu0
          %v4005 = vadd.f32 %v3636, %v4004
          %4006 = vmatprep.mubr.bf16.mxu0 %v3863
          %4007 = vmatmul.mubr.bf16.gmra.mrb[0].mxu0 %v3862
          %v4008 = vpop.f32.mrb[0].mxu0
          %v4009 = vadd.f32 %v3641, %v4008
          %v4010 = vpop.f32.mrb[0].mxu0
          %v4011 = vadd.f32 %v3641, %v4010
          %v4012 = vpop.f32.mrb[0].mxu0
          %v4013 = vadd.f32 %v3646, %v4012
          %v4014 = vpop.f32.mrb[0].mxu0
          %v4015 = vadd.f32 %v3646, %v4014
          %4016 = vmatprep.mubr.bf16.mxu0 %v3872
          %4017 = vmatmul.mubr.bf16.gmra.mrb[0].mxu0 %v3871
          %v4018 = vpop.f32.mrb[0].mxu0
          %v4019 = vadd.f32 %v3651, %v4018
          %v4020 = vpop.f32.mrb[0].mxu0
          %v4021 = vadd.f32 %v3651, %v4020
          %v4022 = vpop.f32.mrb[0].mxu0
          %v4023 = vadd.f32 %v3656, %v4022
          %v4024 = vpop.f32.mrb[0].mxu0
          %v4025 = vadd.f32 %v3656, %v4024
          %4026 = vdwg.mxu0
          %4027 = vmatprep.subr.bf16.mxu0 %v3137
          %4028 = vmatpush1.bf16.msra.mxu0 %v3166
          %4029 = vmatprep.subr.bf16.mxu0 %v3141
          %4030 = vmatpush1.bf16.msra.mxu0 %v3167
          %4031 = vmatprep.subr.bf16.mxu0 %v3145
          %4032 = vmatpush1.bf16.msra.mxu0 %v3168
          %4033 = vmatprep.subr.bf16.mxu0 %v3149
          %4034 = vmatpush1.bf16.msra.mxu0 %v3169
          %4035 = vmatprep.subr.bf16.mxu0 %v3153
          %4036 = vmatpush1.bf16.msra.mxu0 %v3170
          %4037 = vmatprep.subr.bf16.mxu0 %v3157
          %4038 = vmatpush1.bf16.msra.mxu0 %v3171
          %4039 = vmatprep.subr.bf16.mxu0 %v3161
          %4040 = vmatpush1.bf16.msra.mxu0 %v3172
          %4041 = vmatprep.subr.bf16.mxu0 %v3165
          %4042 = vmatpush1.bf16.msra.mxu0 %v3173
          %4043 = vmatprep.subr.bf16.mxu0 %v3193
          %4044 = vmatpush1.bf16.msra.mxu0 %v3222
          %4045 = vmatprep.subr.bf16.mxu0 %v3197
          %4046 = vmatpush1.bf16.msra.mxu0 %v3223
          %4047 = vmatprep.subr.bf16.mxu0 %v3201
          %4048 = vmatpush1.bf16.msra.mxu0 %v3224
          %4049 = vmatprep.subr.bf16.mxu0 %v3205
          %4050 = vmatpush1.bf16.msra.mxu0 %v3225
          %4051 = vmatprep.subr.bf16.mxu0 %v3209
          %4052 = vmatpush1.bf16.msra.mxu0 %v3226
          %4053 = vmatprep.subr.bf16.mxu0 %v3213
          %4054 = vmatpush1.bf16.msra.mxu0 %v3227
          %4055 = vmatprep.subr.bf16.mxu0 %v3217
          %4056 = vmatpush1.bf16.msra.mxu0 %v3228
          %4057 = vmatprep.subr.bf16.mxu0 %v3221
          %4058 = vmatpush1.bf16.msra.mxu0 %v3229
          %4059 = vmatprep.mubr.bf16.mxu0 %v3829
          %4060 = vmatmul.mubr.bf16.gmra.mrb[0].mxu0 %v3828
          %v4061 = vpop.f32.mrb[0].mxu0
          %v4062 = vadd.f32 %v3969, %v4061
          %v4063 = vpop.f32.mrb[0].mxu0
          %v4064 = vadd.f32 %v3971, %v4063
          %v4065 = vpop.f32.mrb[0].mxu0
          %v4066 = vadd.f32 %v3973, %v4065
          %v4067 = vpop.f32.mrb[0].mxu0
          %v4068 = vadd.f32 %v3975, %v4067
          %4069 = vmatprep.mubr.bf16.mxu0 %v3838
          %4070 = vmatmul.mubr.bf16.gmra.mrb[0].mxu0 %v3837
          %v4071 = vpop.f32.mrb[0].mxu0
          %v4072 = vadd.f32 %v3979, %v4071
          %v4073 = vpop.f32.mrb[0].mxu0
          %v4074 = vadd.f32 %v3981, %v4073
          %v4075 = vpop.f32.mrb[0].mxu0
          %v4076 = vadd.f32 %v3983, %v4075
          %v4077 = vpop.f32.mrb[0].mxu0
          %v4078 = vadd.f32 %v3985, %v4077
          %4079 = vmatprep.mubr.bf16.mxu0 %v3847
          %4080 = vmatmul.mubr.bf16.gmra.mrb[0].mxu0 %v3846
          %v4081 = vpop.f32.mrb[0].mxu0
          %v4082 = vadd.f32 %v3989, %v4081
          %v4083 = vpop.f32.mrb[0].mxu0
          %v4084 = vadd.f32 %v3991, %v4083
          %v4085 = vpop.f32.mrb[0].mxu0
          %v4086 = vadd.f32 %v3993, %v4085
          %v4087 = vpop.f32.mrb[0].mxu0
          %v4088 = vadd.f32 %v3995, %v4087
          %4089 = vmatprep.mubr.bf16.mxu0 %v3856
          %4090 = vmatmul.mubr.bf16.gmra.mrb[0].mxu0 %v3855
          %v4091 = vpop.f32.mrb[0].mxu0
          %v4092 = vadd.f32 %v3999, %v4091
          %v4093 = vpop.f32.mrb[0].mxu0
          %v4094 = vadd.f32 %v4001, %v4093
          %v4095 = vpop.f32.mrb[0].mxu0
          %v4096 = vadd.f32 %v4003, %v4095
          %v4097 = vpop.f32.mrb[0].mxu0
          %v4098 = vadd.f32 %v4005, %v4097
          %4099 = vmatprep.mubr.bf16.mxu0 %v3865
          %4100 = vmatmul.mubr.bf16.gmra.mrb[0].mxu0 %v3864
          %v4101 = vpop.f32.mrb[0].mxu0
          %v4102 = vadd.f32 %v4009, %v4101
          %v4103 = vpop.f32.mrb[0].mxu0
          %v4104 = vadd.f32 %v4011, %v4103
          %v4105 = vpop.f32.mrb[0].mxu0
          %v4106 = vadd.f32 %v4013, %v4105
          %v4107 = vpop.f32.mrb[0].mxu0
          %v4108 = vadd.f32 %v4015, %v4107
          %4109 = vmatprep.mubr.bf16.mxu0 %v3874
          %4110 = vmatmul.mubr.bf16.gmra.mrb[0].mxu0 %v3873
          %v4111 = vpop.f32.mrb[0].mxu0
          %v4112 = vadd.f32 %v4019, %v4111
          %v4113 = vpop.f32.mrb[0].mxu0
          %v4114 = vadd.f32 %v4021, %v4113
          %v4115 = vpop.f32.mrb[0].mxu0
          %v4116 = vadd.f32 %v4023, %v4115
          %v4117 = vpop.f32.mrb[0].mxu0
          %v4118 = vadd.f32 %v4025, %v4117
          %4119 = vdwg.mxu0
          %4120 = vmatprep.subr.bf16.mxu0 %v3249
          %4121 = vmatpush1.bf16.msra.mxu0 %v3278
          %4122 = vmatprep.subr.bf16.mxu0 %v3253
          %4123 = vmatpush1.bf16.msra.mxu0 %v3279
          %4124 = vmatprep.subr.bf16.mxu0 %v3257
          %4125 = vmatpush1.bf16.msra.mxu0 %v3280
          %4126 = vmatprep.subr.bf16.mxu0 %v3261
          %4127 = vmatpush1.bf16.msra.mxu0 %v3281
          %4128 = vmatprep.subr.bf16.mxu0 %v3265
          %4129 = vmatpush1.bf16.msra.mxu0 %v3282
          %4130 = vmatprep.subr.bf16.mxu0 %v3269
          %4131 = vmatpush1.bf16.msra.mxu0 %v3283
          %4132 = vmatprep.subr.bf16.mxu0 %v3273
          %4133 = vmatpush1.bf16.msra.mxu0 %v3284
          %4134 = vmatprep.subr.bf16.mxu0 %v3277
          %4135 = vmatpush1.bf16.msra.mxu0 %v3285
          %4136 = vmatprep.subr.bf16.mxu0 %v3305
          %4137 = vmatpush1.bf16.msra.mxu0 %v3334
          %4138 = vmatprep.subr.bf16.mxu0 %v3309
          %4139 = vmatpush1.bf16.msra.mxu0 %v3335
          %4140 = vmatprep.subr.bf16.mxu0 %v3313
          %4141 = vmatpush1.bf16.msra.mxu0 %v3336
          %4142 = vmatprep.subr.bf16.mxu0 %v3317
          %4143 = vmatpush1.bf16.msra.mxu0 %v3337
          %4144 = vmatprep.subr.bf16.mxu0 %v3321
          %4145 = vmatpush1.bf16.msra.mxu0 %v3338
          %4146 = vmatprep.subr.bf16.mxu0 %v3325
          %4147 = vmatpush1.bf16.msra.mxu0 %v3339
          %4148 = vmatprep.subr.bf16.mxu0 %v3329
          %4149 = vmatpush1.bf16.msra.mxu0 %v3340
          %4150 = vmatprep.subr.bf16.mxu0 %v3333
          %4151 = vmatpush1.bf16.msra.mxu0 %v3341
          %4152 = vmatprep.mubr.bf16.mxu0 %v3831
          %4153 = vmatmul.mubr.bf16.gmra.mrb[0].mxu0 %v3830
          %v4154 = vpop.f32.mrb[0].mxu0
          %v4155 = vadd.f32 %v4062, %v4154
          %v4156 = vpop.f32.mrb[0].mxu0
          %v4157 = vadd.f32 %v4064, %v4156
          %v4158 = vpop.f32.mrb[0].mxu0
          %v4159 = vadd.f32 %v4066, %v4158
          %v4160 = vpop.f32.mrb[0].mxu0
          %v4161 = vadd.f32 %v4068, %v4160
          %4162 = vmatprep.mubr.bf16.mxu0 %v3840
          %4163 = vmatmul.mubr.bf16.gmra.mrb[0].mxu0 %v3839
          %v4164 = vpop.f32.mrb[0].mxu0
          %v4165 = vadd.f32 %v4072, %v4164
          %v4166 = vpop.f32.mrb[0].mxu0
          %v4167 = vadd.f32 %v4074, %v4166
          %v4168 = vpop.f32.mrb[0].mxu0
          %v4169 = vadd.f32 %v4076, %v4168
          %v4170 = vpop.f32.mrb[0].mxu0
          %v4171 = vadd.f32 %v4078, %v4170
          %4172 = vmatprep.mubr.bf16.mxu0 %v3849
          %4173 = vmatmul.mubr.bf16.gmra.mrb[0].mxu0 %v3848
          %v4174 = vpop.f32.mrb[0].mxu0
          %v4175 = vadd.f32 %v4082, %v4174
          %v4176 = vpop.f32.mrb[0].mxu0
          %v4177 = vadd.f32 %v4084, %v4176
          %v4178 = vpop.f32.mrb[0].mxu0
          %v4179 = vadd.f32 %v4086, %v4178
          %v4180 = vpop.f32.mrb[0].mxu0
          %v4181 = vadd.f32 %v4088, %v4180
          %4182 = vmatprep.mubr.bf16.mxu0 %v3858
          %4183 = vmatmul.mubr.bf16.gmra.mrb[0].mxu0 %v3857
          %v4184 = vpop.f32.mrb[0].mxu0
          %v4185 = vadd.f32 %v4092, %v4184
          %v4186 = vpop.f32.mrb[0].mxu0
          %v4187 = vadd.f32 %v4094, %v4186
          %v4188 = vpop.f32.mrb[0].mxu0
          %v4189 = vadd.f32 %v4096, %v4188
          %v4190 = vpop.f32.mrb[0].mxu0
          %v4191 = vadd.f32 %v4098, %v4190
          %4192 = vmatprep.mubr.bf16.mxu0 %v3867
          %4193 = vmatmul.mubr.bf16.gmra.mrb[0].mxu0 %v3866
          %v4194 = vpop.f32.mrb[0].mxu0
          %v4195 = vadd.f32 %v4102, %v4194
          %v4196 = vpop.f32.mrb[0].mxu0
          %v4197 = vadd.f32 %v4104, %v4196
          %v4198 = vpop.f32.mrb[0].mxu0
          %v4199 = vadd.f32 %v4106, %v4198
          %v4200 = vpop.f32.mrb[0].mxu0
          %v4201 = vadd.f32 %v4108, %v4200
          %4202 = vmatprep.mubr.bf16.mxu0 %v3876
          %4203 = vmatmul.mubr.bf16.gmra.mrb[0].mxu0 %v3875
          %v4204 = vpop.f32.mrb[0].mxu0
          %v4205 = vadd.f32 %v4112, %v4204
          %v4206 = vpop.f32.mrb[0].mxu0
          %v4207 = vadd.f32 %v4114, %v4206
          %v4208 = vpop.f32.mrb[0].mxu0
          %v4209 = vadd.f32 %v4116, %v4208
          %v4210 = vpop.f32.mrb[0].mxu0
          %v4211 = vadd.f32 %v4118, %v4210
          %4212 = vdwg.mxu0
          %4213 = vmatprep.subr.bf16.mxu0 %v3361
          %4214 = vmatpush1.bf16.msra.mxu0 %v3390
          %4215 = vmatprep.subr.bf16.mxu0 %v3365
          %4216 = vmatpush1.bf16.msra.mxu0 %v3391
          %4217 = vmatprep.subr.bf16.mxu0 %v3369
          %4218 = vmatpush1.bf16.msra.mxu0 %v3392
          %4219 = vmatprep.subr.bf16.mxu0 %v3373
          %4220 = vmatpush1.bf16.msra.mxu0 %v3393
          %4221 = vmatprep.subr.bf16.mxu0 %v3377
          %4222 = vmatpush1.bf16.msra.mxu0 %v3394
          %4223 = vmatprep.subr.bf16.mxu0 %v3381
          %4224 = vmatpush1.bf16.msra.mxu0 %v3395
          %4225 = vmatprep.subr.bf16.mxu0 %v3385
          %4226 = vmatpush1.bf16.msra.mxu0 %v3396
          %4227 = vmatprep.subr.bf16.mxu0 %v3389
          %4228 = vmatpush1.bf16.msra.mxu0 %v3397
          %4229 = vmatprep.subr.bf16.mxu0 %v3417
          %4230 = vmatpush1.bf16.msra.mxu0 %v3446
          %4231 = vmatprep.subr.bf16.mxu0 %v3421
          %4232 = vmatpush1.bf16.msra.mxu0 %v3447
          %4233 = vmatprep.subr.bf16.mxu0 %v3425
          %4234 = vmatpush1.bf16.msra.mxu0 %v3448
          %4235 = vmatprep.subr.bf16.mxu0 %v3429
          %4236 = vmatpush1.bf16.msra.mxu0 %v3449
          %4237 = vmatprep.subr.bf16.mxu0 %v3433
          %4238 = vmatpush1.bf16.msra.mxu0 %v3450
          %4239 = vmatprep.subr.bf16.mxu0 %v3437
          %4240 = vmatpush1.bf16.msra.mxu0 %v3451
          %4241 = vmatprep.subr.bf16.mxu0 %v3441
          %4242 = vmatpush1.bf16.msra.mxu0 %v3452
          %4243 = vmatprep.subr.bf16.mxu0 %v3445
          %4244 = vmatpush1.bf16.msra.mxu0 %v3453
          %4245 = vmatprep.mubr.bf16.mxu0 %v3833
          %4246 = vmatmul.mubr.bf16.gmra.mrb[0].mxu0 %v3832
          %v4247 = vpop.f32.mrb[0].mxu0
          %v4248 = vadd.f32 %v4155, %v4247
          %v4249 = vpop.f32.mrb[0].mxu0
          %v4250 = vadd.f32 %v4157, %v4249
          %v4251 = vpop.f32.mrb[0].mxu0
          %v4252 = vadd.f32 %v4159, %v4251
          %v4253 = vpop.f32.mrb[0].mxu0
          %v4254 = vadd.f32 %v4161, %v4253
          %4255 = vmatprep.mubr.bf16.mxu0 %v3842
          %4256 = vmatmul.mubr.bf16.gmra.mrb[0].mxu0 %v3841
          %v4257 = vpop.f32.mrb[0].mxu0
          %v4258 = vadd.f32 %v4165, %v4257
          %v4259 = vpop.f32.mrb[0].mxu0
          %v4260 = vadd.f32 %v4167, %v4259
          %v4261 = vpop.f32.mrb[0].mxu0
          %v4262 = vadd.f32 %v4169, %v4261
          %v4263 = vpop.f32.mrb[0].mxu0
          %v4264 = vadd.f32 %v4171, %v4263
          %4265 = vmatprep.mubr.bf16.mxu0 %v3851
          %4266 = vmatmul.mubr.bf16.gmra.mrb[0].mxu0 %v3850
          %v4267 = vpop.f32.mrb[0].mxu0
          %v4268 = vadd.f32 %v4175, %v4267
          %v4269 = vpop.f32.mrb[0].mxu0
          %v4270 = vadd.f32 %v4177, %v4269
          %v4271 = vpop.f32.mrb[0].mxu0
          %v4272 = vadd.f32 %v4179, %v4271
          %v4273 = vpop.f32.mrb[0].mxu0
          %v4274 = vadd.f32 %v4181, %v4273
          %4275 = vmatprep.mubr.bf16.mxu0 %v3860
          %4276 = vmatmul.mubr.bf16.gmra.mrb[0].mxu0 %v3859
          %v4277 = vpop.f32.mrb[0].mxu0
          %v4278 = vadd.f32 %v4185, %v4277
          %v4279 = vpop.f32.mrb[0].mxu0
          %v4280 = vadd.f32 %v4187, %v4279
          %v4281 = vpop.f32.mrb[0].mxu0
          %v4282 = vadd.f32 %v4189, %v4281
          %v4283 = vpop.f32.mrb[0].mxu0
          %v4284 = vadd.f32 %v4191, %v4283
          %4285 = vmatprep.mubr.bf16.mxu0 %v3869
          %4286 = vmatmul.mubr.bf16.gmra.mrb[0].mxu0 %v3868
          %v4287 = vpop.f32.mrb[0].mxu0
          %v4288 = vadd.f32 %v4195, %v4287
          %v4289 = vpop.f32.mrb[0].mxu0
          %v4290 = vadd.f32 %v4197, %v4289
          %v4291 = vpop.f32.mrb[0].mxu0
          %v4292 = vadd.f32 %v4199, %v4291
          %v4293 = vpop.f32.mrb[0].mxu0
          %v4294 = vadd.f32 %v4201, %v4293
          %4295 = vmatprep.mubr.bf16.mxu0 %v3878
          %4296 = vmatmul.mubr.bf16.gmra.mrb[0].mxu0 %v3877
          %v4297 = vpop.f32.mrb[0].mxu0
          %v4298 = vadd.f32 %v4205, %v4297
          %v4299 = vpop.f32.mrb[0].mxu0
          %v4300 = vadd.f32 %v4207, %v4299
          %v4301 = vpop.f32.mrb[0].mxu0
          %v4302 = vadd.f32 %v4209, %v4301
          %v4303 = vpop.f32.mrb[0].mxu0
          %v4304 = vadd.f32 %v4211, %v4303
          %4305 = vdwg.mxu0
          %4306 = vmatprep.subr.bf16.mxu0 %v3473
          %4307 = vmatpush1.bf16.msra.mxu0 %v3502
          %4308 = vmatprep.subr.bf16.mxu0 %v3477
          %4309 = vmatpush1.bf16.msra.mxu0 %v3503
          %4310 = vmatprep.subr.bf16.mxu0 %v3481
          %4311 = vmatpush1.bf16.msra.mxu0 %v3504
          %4312 = vmatprep.subr.bf16.mxu0 %v3485
          %4313 = vmatpush1.bf16.msra.mxu0 %v3505
          %4314 = vmatprep.subr.bf16.mxu0 %v3489
          %4315 = vmatpush1.bf16.msra.mxu0 %v3506
          %4316 = vmatprep.subr.bf16.mxu0 %v3493
          %4317 = vmatpush1.bf16.msra.mxu0 %v3507
          %4318 = vmatprep.subr.bf16.mxu0 %v3497
          %4319 = vmatpush1.bf16.msra.mxu0 %v3508
          %4320 = vmatprep.subr.bf16.mxu0 %v3501
          %4321 = vmatpush1.bf16.msra.mxu0 %v3509
          %4322 = vmatprep.subr.bf16.mxu0 0
          %4323 = vmatpush1.bf16.msra.mxu0 0
          %4324 = vmatprep.subr.bf16.mxu0 0
          %4325 = vmatpush1.bf16.msra.mxu0 0
          %4326 = vmatprep.subr.bf16.mxu0 0
          %4327 = vmatpush1.bf16.msra.mxu0 0
          %4328 = vmatprep.subr.bf16.mxu0 0
          %4329 = vmatpush1.bf16.msra.mxu0 0
          %4330 = vmatprep.subr.bf16.mxu0 0
          %4331 = vmatpush1.bf16.msra.mxu0 0
          %4332 = vmatprep.subr.bf16.mxu0 0
          %4333 = vmatpush1.bf16.msra.mxu0 0
          %4334 = vmatprep.subr.bf16.mxu0 0
          %4335 = vmatpush1.bf16.msra.mxu0 0
          %4336 = vmatprep.subr.bf16.mxu0 0
          %4337 = vmatpush1.bf16.msra.mxu0 0
          %4338 = vmatprep.mubr.bf16.mxu0 0
          %4339 = vmatmul.mubr.bf16.gmra.mrb[0].mxu0 %v3834
          %v4340 = vpop.f32.mrb[0].mxu0
          %v4341 = vadd.f32 %v4248, %v4340
          %v4342 = vpop.f32.mrb[0].mxu0
          %v4343 = vadd.f32 %v4250, %v4342
          %v4344 = vpop.f32.mrb[0].mxu0
          %v4345 = vadd.f32 %v4252, %v4344
          %v4346 = vpop.f32.mrb[0].mxu0
          %v4347 = vadd.f32 %v4254, %v4346
          %4348 = vmatprep.mubr.bf16.mxu0 0
          %4349 = vmatmul.mubr.bf16.gmra.mrb[0].mxu0 %v3843
          %v4350 = vpop.f32.mrb[0].mxu0
          %v4351 = vadd.f32 %v4258, %v4350
          %v4352 = vpop.f32.mrb[0].mxu0
          %v4353 = vadd.f32 %v4260, %v4352
          %v4354 = vpop.f32.mrb[0].mxu0
          %v4355 = vadd.f32 %v4262, %v4354
          %v4356 = vpop.f32.mrb[0].mxu0
          %v4357 = vadd.f32 %v4264, %v4356
          %4358 = vmatprep.mubr.bf16.mxu0 0
          %4359 = vmatmul.mubr.bf16.gmra.mrb[0].mxu0 %v3852
          %v4360 = vpop.f32.mrb[0].mxu0
          %v4361 = vadd.f32 %v4268, %v4360
          %v4362 = vpop.f32.mrb[0].mxu0
          %v4363 = vadd.f32 %v4270, %v4362
          %v4364 = vpop.f32.mrb[0].mxu0
          %v4365 = vadd.f32 %v4272, %v4364
          %v4366 = vpop.f32.mrb[0].mxu0
          %v4367 = vadd.f32 %v4274, %v4366
          %4368 = vmatprep.mubr.bf16.mxu0 0
          %4369 = vmatmul.mubr.bf16.gmra.mrb[0].mxu0 %v3861
          %v4370 = vpop.f32.mrb[0].mxu0
          %v4371 = vadd.f32 %v4278, %v4370
          %v4372 = vpop.f32.mrb[0].mxu0
          %v4373 = vadd.f32 %v4280, %v4372
          %v4374 = vpop.f32.mrb[0].mxu0
          %v4375 = vadd.f32 %v4282, %v4374
          %v4376 = vpop.f32.mrb[0].mxu0
          %v4377 = vadd.f32 %v4284, %v4376
          %4378 = vmatprep.mubr.bf16.mxu0 0
          %4379 = vmatmul.mubr.bf16.gmra.mrb[0].mxu0 %v3870
          %v4380 = vpop.f32.mrb[0].mxu0
          %v4381 = vadd.f32 %v4288, %v4380
          %v4382 = vpop.f32.mrb[0].mxu0
          %v4383 = vadd.f32 %v4290, %v4382
          %v4384 = vpop.f32.mrb[0].mxu0
          %v4385 = vadd.f32 %v4292, %v4384
          %v4386 = vpop.f32.mrb[0].mxu0
          %v4387 = vadd.f32 %v4294, %v4386
          %4388 = vmatprep.mubr.bf16.mxu0 0
          %4389 = vmatmul.mubr.bf16.gmra.mrb[0].mxu0 %v3879
          %v4390 = vpop.f32.mrb[0].mxu0
          %v4391 = vadd.f32 %v4298, %v4390
          %v4392 = vpop.f32.mrb[0].mxu0
          %v4393 = vadd.f32 %v4300, %v4392
          %v4394 = vpop.f32.mrb[0].mxu0
          %v4395 = vadd.f32 %v4302, %v4394
          %v4396 = vpop.f32.mrb[0].mxu0
          %v4397 = vadd.f32 %v4304, %v4396
          %4398 = vdwg.mxu0
          %vm4399 = vcmp.ge.f32.partialorder %v4341, 0.0
          %vm4400 = vcmp.ge.f32.partialorder %v4343, 0.0
          %vm4401 = vcmp.ge.f32.partialorder %v4345, 0.0
          %vm4402 = vcmp.ge.f32.partialorder %v4347, 0.0
          %vm4403 = vcmp.ge.f32.partialorder %v4351, 0.0
          %vm4404 = vcmp.ge.f32.partialorder %v4353, 0.0
          %vm4405 = vcmp.ge.f32.partialorder %v4355, 0.0
          %vm4406 = vcmp.ge.f32.partialorder %v4357, 0.0
          %vm4407 = vcmp.ge.f32.partialorder %v4361, 0.0
          %vm4408 = vcmp.ge.f32.partialorder %v4363, 0.0
          %vm4409 = vcmp.ge.f32.partialorder %v4365, 0.0
          %vm4410 = vcmp.ge.f32.partialorder %v4367, 0.0
          %vm4411 = vcmp.ge.f32.partialorder %v4371, 0.0
          %vm4412 = vcmp.ge.f32.partialorder %v4373, 0.0
          %vm4413 = vcmp.ge.f32.partialorder %v4375, 0.0
          %vm4414 = vcmp.ge.f32.partialorder %v4377, 0.0
          %vm4415 = vcmp.ge.f32.partialorder %v4381, 0.0
          %vm4416 = vcmp.ge.f32.partialorder %v4383, 0.0
          %vm4417 = vcmp.ge.f32.partialorder %v4385, 0.0
          %vm4418 = vcmp.ge.f32.partialorder %v4387, 0.0
          %vm4419 = vcmp.ge.f32.partialorder %v4391, 0.0
          %vm4420 = vcmp.ge.f32.partialorder %v4393, 0.0
          %vm4421 = vcmp.ge.f32.partialorder %v4395, 0.0
          %vm4422 = vcmp.ge.f32.partialorder %v4397, 0.0
          %v4423 = vmul.f32 %v4341, 0.01
          %v4424 = vmul.f32 %v4343, 0.01
          %v4425 = vmul.f32 %v4345, 0.01
          %v4426 = vmul.f32 %v4347, 0.01
          %v4427 = vmul.f32 %v4351, 0.01
          %v4428 = vmul.f32 %v4353, 0.01
          %v4429 = vmul.f32 %v4355, 0.01
          %v4430 = vmul.f32 %v4357, 0.01
          %v4431 = vmul.f32 %v4361, 0.01
          %v4432 = vmul.f32 %v4363, 0.01
          %v4433 = vmul.f32 %v4365, 0.01
          %v4434 = vmul.f32 %v4367, 0.01
          %v4435 = vmul.f32 %v4371, 0.01
          %v4436 = vmul.f32 %v4373, 0.01
          %v4437 = vmul.f32 %v4375, 0.01
          %v4438 = vmul.f32 %v4377, 0.01
          %v4439 = vmul.f32 %v4381, 0.01
          %v4440 = vmul.f32 %v4383, 0.01
          %v4441 = vmul.f32 %v4385, 0.01
          %v4442 = vmul.f32 %v4387, 0.01
          %v4443 = vmul.f32 %v4391, 0.01
          %v4444 = vmul.f32 %v4393, 0.01
          %v4445 = vmul.f32 %v4395, 0.01
          %v4446 = vmul.f32 %v4397, 0.01
          %v4447 = vsel %vm4399, %v4341, %v4423
          %v4448 = vsel %vm4400, %v4343, %v4424
          %v4449 = vsel %vm4401, %v4345, %v4425
          %v4450 = vsel %vm4402, %v4347, %v4426
          %v4451 = vsel %vm4403, %v4351, %v4427
          %v4452 = vsel %vm4404, %v4353, %v4428
          %v4453 = vsel %vm4405, %v4355, %v4429
          %v4454 = vsel %vm4406, %v4357, %v4430
          %v4455 = vsel %vm4407, %v4361, %v4431
          %v4456 = vsel %vm4408, %v4363, %v4432
          %v4457 = vsel %vm4409, %v4365, %v4433
          %v4458 = vsel %vm4410, %v4367, %v4434
          %v4459 = vsel %vm4411, %v4371, %v4435
          %v4460 = vsel %vm4412, %v4373, %v4436
          %v4461 = vsel %vm4413, %v4375, %v4437
          %v4462 = vsel %vm4414, %v4377, %v4438
          %v4463 = vsel %vm4415, %v4381, %v4439
          %v4464 = vsel %vm4416, %v4383, %v4440
          %v4465 = vsel %vm4417, %v4385, %v4441
          %v4466 = vsel %vm4418, %v4387, %v4442
          %v4467 = vsel %vm4419, %v4391, %v4443
          %v4468 = vsel %vm4420, %v4393, %v4444
          %v4469 = vsel %vm4421, %v4395, %v4445
          %v4470 = vsel %vm4422, %v4397, %v4446
          %v4471 = vpack.c.bf16 %v4449, %v4447
          %v4472 = vpack.c.bf16 %v4450, %v4448
          %v4473 = vpack.c.bf16 %v4453, %v4451
          %v4474 = vpack.c.bf16 %v4454, %v4452
          %v4475 = vpack.c.bf16 %v4457, %v4455
          %v4476 = vpack.c.bf16 %v4458, %v4456
          %v4477 = vpack.c.bf16 %v4461, %v4459
          %v4478 = vpack.c.bf16 %v4462, %v4460
          %v4479 = vpack.c.bf16 %v4465, %v4463
          %v4480 = vpack.c.bf16 %v4466, %v4464
          %v4481 = vpack.c.bf16 %v4469, %v4467
          %v4482 = vpack.c.bf16 %v4470, %v4468
          %4489 = vrot.lane.b32.xlu0 %v4471, 127
          %v4490 = vpop.permute.xlu0 %4489
          %4491 = vrot.lane.b32.xlu0 %v4473, 127
          %v4492 = vpop.permute.xlu0 %4491
          %4493 = vrot.lane.b32.xlu0 %v4475, 127
          %v4494 = vpop.permute.xlu0 %4493
          %4495 = vrot.lane.b32.xlu0 %v4477, 127
          %v4496 = vpop.permute.xlu0 %4495
          %4497 = vrot.lane.b32.xlu0 %v4479, 127
          %v4498 = vpop.permute.xlu0 %4497
          %4499 = vrot.lane.b32.xlu0 %v4481, 127
          %v4500 = vpop.permute.xlu0 %4499
          %4507 = vrot.lane.b32.xlu0 %v4471, 126
          %v4508 = vpop.permute.xlu0 %4507
          %4509 = vrot.lane.b32.xlu0 %v4473, 126
          %v4510 = vpop.permute.xlu0 %4509
          %4511 = vrot.lane.b32.xlu0 %v4475, 126
          %v4512 = vpop.permute.xlu0 %4511
          %4513 = vrot.lane.b32.xlu0 %v4477, 126
          %v4514 = vpop.permute.xlu0 %4513
          %4515 = vrot.lane.b32.xlu0 %v4479, 126
          %v4516 = vpop.permute.xlu0 %4515
          %4517 = vrot.lane.b32.xlu0 %v4481, 126
          %v4518 = vpop.permute.xlu0 %4517
          %4531 = vrot.lane.b32.xlu0 %v4471, 112
          %v4532 = vpop.permute.xlu0 %4531
          %4533 = vrot.lane.b32.xlu0 %v4472, 112
          %v4534 = vpop.permute.xlu0 %4533
          %4535 = vrot.lane.b32.xlu0 %v4473, 112
          %v4536 = vpop.permute.xlu0 %4535
          %4537 = vrot.lane.b32.xlu0 %v4474, 112
          %v4538 = vpop.permute.xlu0 %4537
          %4539 = vrot.lane.b32.xlu0 %v4475, 112
          %v4540 = vpop.permute.xlu0 %4539
          %4541 = vrot.lane.b32.xlu0 %v4476, 112
          %v4542 = vpop.permute.xlu0 %4541
          %4543 = vrot.lane.b32.xlu0 %v4477, 112
          %v4544 = vpop.permute.xlu0 %4543
          %4545 = vrot.lane.b32.xlu0 %v4478, 112
          %v4546 = vpop.permute.xlu0 %4545
          %4547 = vrot.lane.b32.xlu0 %v4479, 112
          %v4548 = vpop.permute.xlu0 %4547
          %4549 = vrot.lane.b32.xlu0 %v4480, 112
          %v4550 = vpop.permute.xlu0 %4549
          %4551 = vrot.lane.b32.xlu0 %v4481, 112
          %v4552 = vpop.permute.xlu0 %4551
          %4553 = vrot.lane.b32.xlu0 %v4482, 112
          %v4554 = vpop.permute.xlu0 %4553
          %v4555 = vsel %vm558, %v4532, %v4534
          %v4556 = vsel %vm558, %v4536, %v4538
          %v4557 = vsel %vm558, %v4540, %v4542
          %v4558 = vsel %vm558, %v4544, %v4546
          %v4559 = vsel %vm558, %v4548, %v4550
          %v4560 = vsel %vm558, %v4552, %v4554
          %4567 = vrot.lane.b32.xlu0 %v4471, 111
          %v4568 = vpop.permute.xlu0 %4567
          %4569 = vrot.lane.b32.xlu0 %v4472, 111
          %v4570 = vpop.permute.xlu0 %4569
          %4571 = vrot.lane.b32.xlu0 %v4473, 111
          %v4572 = vpop.permute.xlu0 %4571
          %4573 = vrot.lane.b32.xlu0 %v4474, 111
          %v4574 = vpop.permute.xlu0 %4573
          %4575 = vrot.lane.b32.xlu0 %v4475, 111
          %v4576 = vpop.permute.xlu0 %4575
          %4577 = vrot.lane.b32.xlu0 %v4476, 111
          %v4578 = vpop.permute.xlu0 %4577
          %4579 = vrot.lane.b32.xlu0 %v4477, 111
          %v4580 = vpop.permute.xlu0 %4579
          %4581 = vrot.lane.b32.xlu0 %v4478, 111
          %v4582 = vpop.permute.xlu0 %4581
          %4583 = vrot.lane.b32.xlu0 %v4479, 111
          %v4584 = vpop.permute.xlu0 %4583
          %4585 = vrot.lane.b32.xlu0 %v4480, 111
          %v4586 = vpop.permute.xlu0 %4585
          %4587 = vrot.lane.b32.xlu0 %v4481, 111
          %v4588 = vpop.permute.xlu0 %4587
          %4589 = vrot.lane.b32.xlu0 %v4482, 111
          %v4590 = vpop.permute.xlu0 %4589
          %v4591 = vsel %vm582, %v4568, %v4570
          %v4592 = vsel %vm582, %v4572, %v4574
          %v4593 = vsel %vm582, %v4576, %v4578
          %v4594 = vsel %vm582, %v4580, %v4582
          %v4595 = vsel %vm582, %v4584, %v4586
          %v4596 = vsel %vm582, %v4588, %v4590
          %4603 = vrot.lane.b32.xlu0 %v4471, 110
          %v4604 = vpop.permute.xlu0 %4603
          %4605 = vrot.lane.b32.xlu0 %v4472, 110
          %v4606 = vpop.permute.xlu0 %4605
          %4607 = vrot.lane.b32.xlu0 %v4473, 110
          %v4608 = vpop.permute.xlu0 %4607
          %4609 = vrot.lane.b32.xlu0 %v4474, 110
          %v4610 = vpop.permute.xlu0 %4609
          %4611 = vrot.lane.b32.xlu0 %v4475, 110
          %v4612 = vpop.permute.xlu0 %4611
          %4613 = vrot.lane.b32.xlu0 %v4476, 110
          %v4614 = vpop.permute.xlu0 %4613
          %4615 = vrot.lane.b32.xlu0 %v4477, 110
          %v4616 = vpop.permute.xlu0 %4615
          %4617 = vrot.lane.b32.xlu0 %v4478, 110
          %v4618 = vpop.permute.xlu0 %4617
          %4619 = vrot.lane.b32.xlu0 %v4479, 110
          %v4620 = vpop.permute.xlu0 %4619
          %4621 = vrot.lane.b32.xlu0 %v4480, 110
          %v4622 = vpop.permute.xlu0 %4621
          %4623 = vrot.lane.b32.xlu0 %v4481, 110
          %v4624 = vpop.permute.xlu0 %4623
          %4625 = vrot.lane.b32.xlu0 %v4482, 110
          %v4626 = vpop.permute.xlu0 %4625
          %v4627 = vsel %vm611, %v4604, %v4606
          %v4628 = vsel %vm611, %v4608, %v4610
          %v4629 = vsel %vm611, %v4612, %v4614
          %v4630 = vsel %vm611, %v4616, %v4618
          %v4631 = vsel %vm611, %v4620, %v4622
          %v4632 = vsel %vm611, %v4624, %v4626
          %4639 = vrot.lane.b32.xlu0 %v4471, 96
          %v4640 = vpop.permute.xlu0 %4639
          %4641 = vrot.lane.b32.xlu0 %v4472, 96
          %v4642 = vpop.permute.xlu0 %4641
          %4643 = vrot.lane.b32.xlu0 %v4473, 96
          %v4644 = vpop.permute.xlu0 %4643
          %4645 = vrot.lane.b32.xlu0 %v4474, 96
          %v4646 = vpop.permute.xlu0 %4645
          %4647 = vrot.lane.b32.xlu0 %v4475, 96
          %v4648 = vpop.permute.xlu0 %4647
          %4649 = vrot.lane.b32.xlu0 %v4476, 96
          %v4650 = vpop.permute.xlu0 %4649
          %4651 = vrot.lane.b32.xlu0 %v4477, 96
          %v4652 = vpop.permute.xlu0 %4651
          %4653 = vrot.lane.b32.xlu0 %v4478, 96
          %v4654 = vpop.permute.xlu0 %4653
          %4655 = vrot.lane.b32.xlu0 %v4479, 96
          %v4656 = vpop.permute.xlu0 %4655
          %4657 = vrot.lane.b32.xlu0 %v4480, 96
          %v4658 = vpop.permute.xlu0 %4657
          %4659 = vrot.lane.b32.xlu0 %v4481, 96
          %v4660 = vpop.permute.xlu0 %4659
          %4661 = vrot.lane.b32.xlu0 %v4482, 96
          %v4662 = vpop.permute.xlu0 %4661
          %v4663 = vsel %vm640, %v4640, %v4642
          %v4664 = vsel %vm640, %v4644, %v4646
          %v4665 = vsel %vm640, %v4648, %v4650
          %v4666 = vsel %vm640, %v4652, %v4654
          %v4667 = vsel %vm640, %v4656, %v4658
          %v4668 = vsel %vm640, %v4660, %v4662
          %4675 = vrot.lane.b32.xlu0 %v4471, 95
          %v4676 = vpop.permute.xlu0 %4675
          %4677 = vrot.lane.b32.xlu0 %v4472, 95
          %v4678 = vpop.permute.xlu0 %4677
          %4679 = vrot.lane.b32.xlu0 %v4473, 95
          %v4680 = vpop.permute.xlu0 %4679
          %4681 = vrot.lane.b32.xlu0 %v4474, 95
          %v4682 = vpop.permute.xlu0 %4681
          %4683 = vrot.lane.b32.xlu0 %v4475, 95
          %v4684 = vpop.permute.xlu0 %4683
          %4685 = vrot.lane.b32.xlu0 %v4476, 95
          %v4686 = vpop.permute.xlu0 %4685
          %4687 = vrot.lane.b32.xlu0 %v4477, 95
          %v4688 = vpop.permute.xlu0 %4687
          %4689 = vrot.lane.b32.xlu0 %v4478, 95
          %v4690 = vpop.permute.xlu0 %4689
          %4691 = vrot.lane.b32.xlu0 %v4479, 95
          %v4692 = vpop.permute.xlu0 %4691
          %4693 = vrot.lane.b32.xlu0 %v4480, 95
          %v4694 = vpop.permute.xlu0 %4693
          %4695 = vrot.lane.b32.xlu0 %v4481, 95
          %v4696 = vpop.permute.xlu0 %4695
          %4697 = vrot.lane.b32.xlu0 %v4482, 95
          %v4698 = vpop.permute.xlu0 %4697
          %v4699 = vsel %vm669, %v4676, %v4678
          %v4700 = vsel %vm669, %v4680, %v4682
          %v4701 = vsel %vm669, %v4684, %v4686
          %v4702 = vsel %vm669, %v4688, %v4690
          %v4703 = vsel %vm669, %v4692, %v4694
          %v4704 = vsel %vm669, %v4696, %v4698
          %4711 = vrot.lane.b32.xlu0 %v4471, 94
          %v4712 = vpop.permute.xlu0 %4711
          %4713 = vrot.lane.b32.xlu0 %v4472, 94
          %v4714 = vpop.permute.xlu0 %4713
          %4715 = vrot.lane.b32.xlu0 %v4473, 94
          %v4716 = vpop.permute.xlu0 %4715
          %4717 = vrot.lane.b32.xlu0 %v4474, 94
          %v4718 = vpop.permute.xlu0 %4717
          %4719 = vrot.lane.b32.xlu0 %v4475, 94
          %v4720 = vpop.permute.xlu0 %4719
          %4721 = vrot.lane.b32.xlu0 %v4476, 94
          %v4722 = vpop.permute.xlu0 %4721
          %4723 = vrot.lane.b32.xlu0 %v4477, 94
          %v4724 = vpop.permute.xlu0 %4723
          %4725 = vrot.lane.b32.xlu0 %v4478, 94
          %v4726 = vpop.permute.xlu0 %4725
          %4727 = vrot.lane.b32.xlu0 %v4479, 94
          %v4728 = vpop.permute.xlu0 %4727
          %4729 = vrot.lane.b32.xlu0 %v4480, 94
          %v4730 = vpop.permute.xlu0 %4729
          %4731 = vrot.lane.b32.xlu0 %v4481, 94
          %v4732 = vpop.permute.xlu0 %4731
          %4733 = vrot.lane.b32.xlu0 %v4482, 94
          %v4734 = vpop.permute.xlu0 %4733
          %v4735 = vsel %vm689, %v4712, %v4714
          %v4736 = vsel %vm689, %v4716, %v4718
          %v4737 = vsel %vm689, %v4720, %v4722
          %v4738 = vsel %vm689, %v4724, %v4726
          %v4739 = vsel %vm689, %v4728, %v4730
          %v4740 = vsel %vm689, %v4732, %v4734
          %v4747 = vld [vmem:[%s7] sm:$0xff]
          %v4748 = vld [vmem:[%s7 + $0x8] sm:$0xff]
          %v4749 = vld [vmem:[%s7 + $0x10] sm:$0xff]
          %v4750 = vld [vmem:[%s7 + $0x18] sm:$0xf]
          %v4751 = vld [vmem:[%s7 + $0x1c] sm:$0xff]
          %v4752 = vld [vmem:[%s7 + $0x24] sm:$0xff]
          %v4753 = vld [vmem:[%s7 + $0x2c] sm:$0xff]
          %v4754 = vld [vmem:[%s7 + $0x34] sm:$0xf]
          %v4755 = vld [vmem:[%s7 + $0x38] sm:$0xff]
          %v4756 = vld [vmem:[%s7 + $0x40] sm:$0xff]
          %v4757 = vld [vmem:[%s7 + $0x48] sm:$0xff]
          %v4758 = vld [vmem:[%s7 + $0x50] sm:$0xf]
          %v4759 = vld [vmem:[%s7 + $0x54] sm:$0xff]
          %v4760 = vld [vmem:[%s7 + $0x5c] sm:$0xff]
          %v4761 = vld [vmem:[%s7 + $0x64] sm:$0xff]
          %v4762 = vld [vmem:[%s7 + $0x6c] sm:$0xf]
          %v4763 = vld [vmem:[%s7 + $0x70] sm:$0xff]
          %v4764 = vld [vmem:[%s7 + $0x78] sm:$0xff]
          %v4765 = vld [vmem:[%s7 + $0x80] sm:$0xff]
          %v4766 = vld [vmem:[%s7 + $0x88] sm:$0xf]
          %v4767 = vld [vmem:[%s7 + $0x8c] sm:$0xff]
          %v4768 = vld [vmem:[%s7 + $0x94] sm:$0xff]
          %v4769 = vld [vmem:[%s7 + $0x9c] sm:$0xff]
          %v4770 = vld [vmem:[%s7 + $0xa4] sm:$0xf]
          %v4771 = vld [vmem:[%s7 + $0xa8] sm:$0xff]
          %v4772 = vld [vmem:[%s7 + $0xb0] sm:$0xff]
          %v4773 = vld [vmem:[%s7 + $0xb8] sm:$0xff]
          %v4774 = vld [vmem:[%s7 + $0xc0] sm:$0xf]
          %v4775 = vld [vmem:[%s7 + $0xc4] sm:$0xff]
          %v4776 = vld [vmem:[%s7 + $0xcc] sm:$0xff]
          %v4777 = vld [vmem:[%s7 + $0xd4] sm:$0xff]
          %v4778 = vld [vmem:[%s7 + $0xdc] sm:$0xf]
          %v4779 = vld [vmem:[%s8] sm:$0xff]
          %v4780 = vld [vmem:[%s8 + $0x8] sm:$0xff]
          %v4781 = vld [vmem:[%s8 + $0x10] sm:$0xff]
          %v4782 = vld [vmem:[%s8 + $0x18] sm:$0xff]
          %v4783 = vld [vmem:[%s8 + $0x20] sm:$0xff]
          %v4784 = vld [vmem:[%s8 + $0x28] sm:$0xff]
          %v4785 = vld [vmem:[%s8 + $0x30] sm:$0xff]
          %v4786 = vld [vmem:[%s8 + $0x38] sm:$0xff]
          %4788 = vset.pattern.permute.xlu0 0
          %4789 = vperm.xlu0 %4788, %v4779
          %v4790 = vpop.permute.xlu0 %4789
          %4793 = vset.pattern.permute.xlu0 0
          %4794 = vperm.xlu0 %4793, %v4780
          %v4795 = vpop.permute.xlu0 %4794
          %4798 = vset.pattern.permute.xlu0 0
          %4799 = vperm.xlu0 %4798, %v4781
          %v4800 = vpop.permute.xlu0 %4799
          %4803 = vset.pattern.permute.xlu0 0
          %4804 = vperm.xlu0 %4803, %v4782
          %v4805 = vpop.permute.xlu0 %4804
          %4808 = vset.pattern.permute.xlu0 0
          %4809 = vperm.xlu0 %4808, %v4783
          %v4810 = vpop.permute.xlu0 %4809
          %4813 = vset.pattern.permute.xlu0 0
          %4814 = vperm.xlu0 %4813, %v4784
          %v4815 = vpop.permute.xlu0 %4814
          %4818 = vset.pattern.permute.xlu0 0
          %4819 = vperm.xlu0 %4818, %v4785
          %v4820 = vpop.permute.xlu0 %4819
          %4823 = vset.pattern.permute.xlu0 0
          %4824 = vperm.xlu0 %4823, %v4786
          %v4825 = vpop.permute.xlu0 %4824
          %v4859 = vunpack.c.l.b16 %v4747
          %v4860 = vunpack.c.h.b16 %v4747
          %v4861 = vunpack.c.l.b16 %v4748
          %v4862 = vunpack.c.h.b16 %v4748
          %v4863 = vunpack.c.l.b16 %v4749
          %v4864 = vunpack.c.h.b16 %v4749
          %v4865 = vunpack.c.l.b16 %v4750
          %v4866 = vunpack.c.l.b16 %v4751
          %v4867 = vunpack.c.h.b16 %v4751
          %v4868 = vunpack.c.l.b16 %v4752
          %v4869 = vunpack.c.h.b16 %v4752
          %v4870 = vunpack.c.l.b16 %v4753
          %v4871 = vunpack.c.h.b16 %v4753
          %v4872 = vunpack.c.l.b16 %v4754
          %v4873 = vunpack.c.l.b16 %v4755
          %v4874 = vunpack.c.h.b16 %v4755
          %v4875 = vunpack.c.l.b16 %v4756
          %v4876 = vunpack.c.h.b16 %v4756
          %v4877 = vunpack.c.l.b16 %v4757
          %v4878 = vunpack.c.h.b16 %v4757
          %v4879 = vunpack.c.l.b16 %v4758
          %v4880 = vunpack.c.l.b16 %v4759
          %v4881 = vunpack.c.h.b16 %v4759
          %v4882 = vunpack.c.l.b16 %v4760
          %v4883 = vunpack.c.h.b16 %v4760
          %v4884 = vunpack.c.l.b16 %v4761
          %v4885 = vunpack.c.h.b16 %v4761
          %v4886 = vunpack.c.l.b16 %v4762
          %v4887 = vunpack.c.l.b16 %v4763
          %v4888 = vunpack.c.h.b16 %v4763
          %v4889 = vunpack.c.l.b16 %v4764
          %v4890 = vunpack.c.h.b16 %v4764
          %v4891 = vunpack.c.l.b16 %v4765
          %v4892 = vunpack.c.h.b16 %v4765
          %v4893 = vunpack.c.l.b16 %v4766
          %v4894 = vunpack.c.l.b16 %v4767
          %v4895 = vunpack.c.h.b16 %v4767
          %v4896 = vunpack.c.l.b16 %v4768
          %v4897 = vunpack.c.h.b16 %v4768
          %v4898 = vunpack.c.l.b16 %v4769
          %v4899 = vunpack.c.h.b16 %v4769
          %v4900 = vunpack.c.l.b16 %v4770
          %v4901 = vunpack.c.l.b16 %v4771
          %v4902 = vunpack.c.h.b16 %v4771
          %v4903 = vunpack.c.l.b16 %v4772
          %v4904 = vunpack.c.h.b16 %v4772
          %v4905 = vunpack.c.l.b16 %v4773
          %v4906 = vunpack.c.h.b16 %v4773
          %v4907 = vunpack.c.l.b16 %v4774
          %v4908 = vunpack.c.l.b16 %v4775
          %v4909 = vunpack.c.h.b16 %v4775
          %v4910 = vunpack.c.l.b16 %v4776
          %v4911 = vunpack.c.h.b16 %v4776
          %v4912 = vunpack.c.l.b16 %v4777
          %v4913 = vunpack.c.h.b16 %v4777
          %v4914 = vunpack.c.l.b16 %v4778
          %v4915 = vpack.c.b16 %v4866, %v4859
          %v4916 = vpack.c.b16 %v4867, %v4860
          %v4917 = vpack.c.b16 %v4868, %v4861
          %v4918 = vpack.c.b16 %v4869, %v4862
          %v4919 = vpack.c.b16 %v4870, %v4863
          %v4920 = vpack.c.b16 %v4871, %v4864
          %v4921 = vpack.c.b16 %v4872, %v4865
          %v4922 = vpack.c.b16 %v4880, %v4873
          %v4923 = vpack.c.b16 %v4881, %v4874
          %v4924 = vpack.c.b16 %v4882, %v4875
          %v4925 = vpack.c.b16 %v4883, %v4876
          %v4926 = vpack.c.b16 %v4884, %v4877
          %v4927 = vpack.c.b16 %v4885, %v4878
          %v4928 = vpack.c.b16 %v4886, %v4879
          %v4929 = vpack.c.b16 %v4894, %v4887
          %v4930 = vpack.c.b16 %v4895, %v4888
          %v4931 = vpack.c.b16 %v4896, %v4889
          %v4932 = vpack.c.b16 %v4897, %v4890
          %v4933 = vpack.c.b16 %v4898, %v4891
          %v4934 = vpack.c.b16 %v4899, %v4892
          %v4935 = vpack.c.b16 %v4900, %v4893
          %v4936 = vpack.c.b16 %v4908, %v4901
          %v4937 = vpack.c.b16 %v4909, %v4902
          %v4938 = vpack.c.b16 %v4910, %v4903
          %v4939 = vpack.c.b16 %v4911, %v4904
          %v4940 = vpack.c.b16 %v4912, %v4905
          %v4941 = vpack.c.b16 %v4913, %v4906
          %v4942 = vpack.c.b16 %v4914, %v4907
          %vm4967 = vcmask 785408
          %v4969 = vsel %vm4967, %v4921, 0
          %v4972 = vsel %vm4967, %v4928, 0
          %v4975 = vsel %vm4967, %v4935, 0
          %v4978 = vsel %vm4967, %v4942, 0
          %4980 = vmatprep.subr.bf16.mxu0 0
          %4981 = vmatpush1.bf16.msra.mxu0 %v4471
          %4982 = vmatprep.subr.bf16.mxu0 0
          %4983 = vmatpush1.bf16.msra.mxu0 %v4473
          %4984 = vmatprep.subr.bf16.mxu0 0
          %4985 = vmatpush1.bf16.msra.mxu0 %v4475
          %4986 = vmatprep.subr.bf16.mxu0 0
          %4987 = vmatpush1.bf16.msra.mxu0 %v4477
          %4988 = vmatprep.subr.bf16.mxu0 0
          %4989 = vmatpush1.bf16.msra.mxu0 %v4479
          %4990 = vmatprep.subr.bf16.mxu0 0
          %4991 = vmatpush1.bf16.msra.mxu0 %v4481
          %4992 = vmatprep.subr.bf16.mxu0 0
          %4993 = vmatpush1.bf16.msra.mxu0 %v4490
          %4994 = vmatprep.subr.bf16.mxu0 0
          %4995 = vmatpush1.bf16.msra.mxu0 %v4492
          %4996 = vmatprep.subr.bf16.mxu0 0
          %4997 = vmatpush1.bf16.msra.mxu0 %v4494
          %4998 = vmatprep.subr.bf16.mxu0 0
          %4999 = vmatpush1.bf16.msra.mxu0 %v4496
          %5000 = vmatprep.subr.bf16.mxu0 0
          %5001 = vmatpush1.bf16.msra.mxu0 %v4498
          %5002 = vmatprep.subr.bf16.mxu0 0
          %5003 = vmatpush1.bf16.msra.mxu0 %v4500
          %5004 = vmatprep.subr.bf16.mxu0 0
          %5005 = vmatpush1.bf16.msra.mxu0 %v4508
          %5006 = vmatprep.subr.bf16.mxu0 0
          %5007 = vmatpush1.bf16.msra.mxu0 %v4510
          %5008 = vmatprep.subr.bf16.mxu0 0
          %5009 = vmatpush1.bf16.msra.mxu0 %v4512
          %5010 = vmatprep.subr.bf16.mxu0 0
          %5011 = vmatpush1.bf16.msra.mxu0 %v4514
          %5012 = vmatprep.mubr.bf16.mxu0 %v4916
          %5013 = vmatmul.mubr.bf16.gmra.mrb[0].mxu0 %v4915
          %v5014 = vpop.f32.mrb[0].mxu0
          %v5015 = vadd.f32 %v4790, %v5014
          %v5016 = vpop.f32.mrb[0].mxu0
          %v5017 = vpop.f32.mrb[0].mxu0
          %v5018 = vadd.f32 %v4795, %v5017
          %v5019 = vpop.f32.mrb[0].mxu0
          %5020 = vmatprep.mubr.bf16.mxu0 %v4923
          %5021 = vmatmul.mubr.bf16.gmra.mrb[0].mxu0 %v4922
          %v5022 = vpop.f32.mrb[0].mxu0
          %v5023 = vadd.f32 %v4800, %v5022
          %v5024 = vpop.f32.mrb[0].mxu0
          %v5025 = vpop.f32.mrb[0].mxu0
          %v5026 = vadd.f32 %v4805, %v5025
          %v5027 = vpop.f32.mrb[0].mxu0
          %5028 = vmatprep.mubr.bf16.mxu0 %v4930
          %5029 = vmatmul.mubr.bf16.gmra.mrb[0].mxu0 %v4929
          %v5030 = vpop.f32.mrb[0].mxu0
          %v5031 = vadd.f32 %v4810, %v5030
          %v5032 = vpop.f32.mrb[0].mxu0
          %v5033 = vpop.f32.mrb[0].mxu0
          %v5034 = vadd.f32 %v4815, %v5033
          %v5035 = vpop.f32.mrb[0].mxu0
          %5036 = vmatprep.mubr.bf16.mxu0 %v4937
          %5037 = vmatmul.mubr.bf16.gmra.mrb[0].mxu0 %v4936
          %v5038 = vpop.f32.mrb[0].mxu0
          %v5039 = vadd.f32 %v4820, %v5038
          %v5040 = vpop.f32.mrb[0].mxu0
          %v5041 = vpop.f32.mrb[0].mxu0
          %v5042 = vadd.f32 %v4825, %v5041
          %v5043 = vpop.f32.mrb[0].mxu0
          %5044 = vdwg.mxu0
          %5045 = vmatprep.subr.bf16.mxu0 0
          %5046 = vmatpush1.bf16.msra.mxu0 %v4516
          %5047 = vmatprep.subr.bf16.mxu0 0
          %5048 = vmatpush1.bf16.msra.mxu0 %v4518
          %5049 = vmatprep.subr.bf16.mxu0 0
          %5050 = vmatpush1.bf16.msra.mxu0 %v4555
          %5051 = vmatprep.subr.bf16.mxu0 0
          %5052 = vmatpush1.bf16.msra.mxu0 %v4556
          %5053 = vmatprep.subr.bf16.mxu0 0
          %5054 = vmatpush1.bf16.msra.mxu0 %v4557
          %5055 = vmatprep.subr.bf16.mxu0 0
          %5056 = vmatpush1.bf16.msra.mxu0 %v4558
          %5057 = vmatprep.subr.bf16.mxu0 0
          %5058 = vmatpush1.bf16.msra.mxu0 %v4559
          %5059 = vmatprep.subr.bf16.mxu0 0
          %5060 = vmatpush1.bf16.msra.mxu0 %v4560
          %5061 = vmatprep.subr.bf16.mxu0 0
          %5062 = vmatpush1.bf16.msra.mxu0 %v4591
          %5063 = vmatprep.subr.bf16.mxu0 0
          %5064 = vmatpush1.bf16.msra.mxu0 %v4592
          %5065 = vmatprep.subr.bf16.mxu0 0
          %5066 = vmatpush1.bf16.msra.mxu0 %v4593
          %5067 = vmatprep.subr.bf16.mxu0 0
          %5068 = vmatpush1.bf16.msra.mxu0 %v4594
          %5069 = vmatprep.subr.bf16.mxu0 0
          %5070 = vmatpush1.bf16.msra.mxu0 %v4595
          %5071 = vmatprep.subr.bf16.mxu0 0
          %5072 = vmatpush1.bf16.msra.mxu0 %v4596
          %5073 = vmatprep.subr.bf16.mxu0 0
          %5074 = vmatpush1.bf16.msra.mxu0 %v4627
          %5075 = vmatprep.subr.bf16.mxu0 0
          %5076 = vmatpush1.bf16.msra.mxu0 %v4628
          %5077 = vmatprep.mubr.bf16.mxu0 %v4918
          %5078 = vmatmul.mubr.bf16.gmra.mrb[0].mxu0 %v4917
          %v5079 = vpop.f32.mrb[0].mxu0
          %v5080 = vadd.f32 %v5015, %v5079
          %v5081 = vpop.f32.mrb[0].mxu0
          %v5082 = vpop.f32.mrb[0].mxu0
          %v5083 = vadd.f32 %v5018, %v5082
          %v5084 = vpop.f32.mrb[0].mxu0
          %5085 = vmatprep.mubr.bf16.mxu0 %v4925
          %5086 = vmatmul.mubr.bf16.gmra.mrb[0].mxu0 %v4924
          %v5087 = vpop.f32.mrb[0].mxu0
          %v5088 = vadd.f32 %v5023, %v5087
          %v5089 = vpop.f32.mrb[0].mxu0
          %v5090 = vpop.f32.mrb[0].mxu0
          %v5091 = vadd.f32 %v5026, %v5090
          %v5092 = vpop.f32.mrb[0].mxu0
          %5093 = vmatprep.mubr.bf16.mxu0 %v4932
          %5094 = vmatmul.mubr.bf16.gmra.mrb[0].mxu0 %v4931
          %v5095 = vpop.f32.mrb[0].mxu0
          %v5096 = vadd.f32 %v5031, %v5095
          %v5097 = vpop.f32.mrb[0].mxu0
          %v5098 = vpop.f32.mrb[0].mxu0
          %v5099 = vadd.f32 %v5034, %v5098
          %v5100 = vpop.f32.mrb[0].mxu0
          %5101 = vmatprep.mubr.bf16.mxu0 %v4939
          %5102 = vmatmul.mubr.bf16.gmra.mrb[0].mxu0 %v4938
          %v5103 = vpop.f32.mrb[0].mxu0
          %v5104 = vadd.f32 %v5039, %v5103
          %v5105 = vpop.f32.mrb[0].mxu0
          %v5106 = vpop.f32.mrb[0].mxu0
          %v5107 = vadd.f32 %v5042, %v5106
          %v5108 = vpop.f32.mrb[0].mxu0
          %5109 = vdwg.mxu0
          %5110 = vmatprep.subr.bf16.mxu0 0
          %5111 = vmatpush1.bf16.msra.mxu0 %v4629
          %5112 = vmatprep.subr.bf16.mxu0 0
          %5113 = vmatpush1.bf16.msra.mxu0 %v4630
          %5114 = vmatprep.subr.bf16.mxu0 0
          %5115 = vmatpush1.bf16.msra.mxu0 %v4631
          %5116 = vmatprep.subr.bf16.mxu0 0
          %5117 = vmatpush1.bf16.msra.mxu0 %v4632
          %5118 = vmatprep.subr.bf16.mxu0 0
          %5119 = vmatpush1.bf16.msra.mxu0 %v4663
          %5120 = vmatprep.subr.bf16.mxu0 0
          %5121 = vmatpush1.bf16.msra.mxu0 %v4664
          %5122 = vmatprep.subr.bf16.mxu0 0
          %5123 = vmatpush1.bf16.msra.mxu0 %v4665
          %5124 = vmatprep.subr.bf16.mxu0 0
          %5125 = vmatpush1.bf16.msra.mxu0 %v4666
          %5126 = vmatprep.subr.bf16.mxu0 0
          %5127 = vmatpush1.bf16.msra.mxu0 %v4667
          %5128 = vmatprep.subr.bf16.mxu0 0
          %5129 = vmatpush1.bf16.msra.mxu0 %v4668
          %5130 = vmatprep.subr.bf16.mxu0 0
          %5131 = vmatpush1.bf16.msra.mxu0 %v4699
          %5132 = vmatprep.subr.bf16.mxu0 0
          %5133 = vmatpush1.bf16.msra.mxu0 %v4700
          %5134 = vmatprep.subr.bf16.mxu0 0
          %5135 = vmatpush1.bf16.msra.mxu0 %v4701
          %5136 = vmatprep.subr.bf16.mxu0 0
          %5137 = vmatpush1.bf16.msra.mxu0 %v4702
          %5138 = vmatprep.subr.bf16.mxu0 0
          %5139 = vmatpush1.bf16.msra.mxu0 %v4703
          %5140 = vmatprep.subr.bf16.mxu0 0
          %5141 = vmatpush1.bf16.msra.mxu0 %v4704
          %5142 = vmatprep.mubr.bf16.mxu0 %v4920
          %5143 = vmatmul.mubr.bf16.gmra.mrb[0].mxu0 %v4919
          %v5144 = vpop.f32.mrb[0].mxu0
          %v5145 = vadd.f32 %v5080, %v5144
          %v5146 = vpop.f32.mrb[0].mxu0
          %v5147 = vpop.f32.mrb[0].mxu0
          %v5148 = vadd.f32 %v5083, %v5147
          %v5149 = vpop.f32.mrb[0].mxu0
          %5150 = vmatprep.mubr.bf16.mxu0 %v4927
          %5151 = vmatmul.mubr.bf16.gmra.mrb[0].mxu0 %v4926
          %v5152 = vpop.f32.mrb[0].mxu0
          %v5153 = vadd.f32 %v5088, %v5152
          %v5154 = vpop.f32.mrb[0].mxu0
          %v5155 = vpop.f32.mrb[0].mxu0
          %v5156 = vadd.f32 %v5091, %v5155
          %v5157 = vpop.f32.mrb[0].mxu0
          %5158 = vmatprep.mubr.bf16.mxu0 %v4934
          %5159 = vmatmul.mubr.bf16.gmra.mrb[0].mxu0 %v4933
          %v5160 = vpop.f32.mrb[0].mxu0
          %v5161 = vadd.f32 %v5096, %v5160
          %v5162 = vpop.f32.mrb[0].mxu0
          %v5163 = vpop.f32.mrb[0].mxu0
          %v5164 = vadd.f32 %v5099, %v5163
          %v5165 = vpop.f32.mrb[0].mxu0
          %5166 = vmatprep.mubr.bf16.mxu0 %v4941
          %5167 = vmatmul.mubr.bf16.gmra.mrb[0].mxu0 %v4940
          %v5168 = vpop.f32.mrb[0].mxu0
          %v5169 = vadd.f32 %v5104, %v5168
          %v5170 = vpop.f32.mrb[0].mxu0
          %v5171 = vpop.f32.mrb[0].mxu0
          %v5172 = vadd.f32 %v5107, %v5171
          %v5173 = vpop.f32.mrb[0].mxu0
          %5174 = vdwg.mxu0
          %5175 = vmatprep.subr.bf16.mxu0 0
          %5176 = vmatpush1.bf16.msra.mxu0 %v4735
          %5177 = vmatprep.subr.bf16.mxu0 0
          %5178 = vmatpush1.bf16.msra.mxu0 %v4736
          %5179 = vmatprep.subr.bf16.mxu0 0
          %5180 = vmatpush1.bf16.msra.mxu0 %v4737
          %5181 = vmatprep.subr.bf16.mxu0 0
          %5182 = vmatpush1.bf16.msra.mxu0 %v4738
          %5183 = vmatprep.subr.bf16.mxu0 0
          %5184 = vmatpush1.bf16.msra.mxu0 %v4739
          %5185 = vmatprep.subr.bf16.mxu0 0
          %5186 = vmatpush1.bf16.msra.mxu0 %v4740
          %5187 = vmatprep.subr.bf16.mxu0 0
          %5188 = vmatpush1.bf16.msra.mxu0 0
          %5189 = vmatprep.subr.bf16.mxu0 0
          %5190 = vmatpush1.bf16.msra.mxu0 0
          %5191 = vmatprep.subr.bf16.mxu0 0
          %5192 = vmatpush1.bf16.msra.mxu0 0
          %5193 = vmatprep.subr.bf16.mxu0 0
          %5194 = vmatpush1.bf16.msra.mxu0 0
          %5195 = vmatprep.subr.bf16.mxu0 0
          %5196 = vmatpush1.bf16.msra.mxu0 0
          %5197 = vmatprep.subr.bf16.mxu0 0
          %5198 = vmatpush1.bf16.msra.mxu0 0
          %5199 = vmatprep.subr.bf16.mxu0 0
          %5200 = vmatpush1.bf16.msra.mxu0 0
          %5201 = vmatprep.subr.bf16.mxu0 0
          %5202 = vmatpush1.bf16.msra.mxu0 0
          %5203 = vmatprep.subr.bf16.mxu0 0
          %5204 = vmatpush1.bf16.msra.mxu0 0
          %5205 = vmatprep.subr.bf16.mxu0 0
          %5206 = vmatpush1.bf16.msra.mxu0 0
          %5207 = vmatprep.mubr.bf16.mxu0 0
          %5208 = vmatmul.mubr.bf16.gmra.mrb[0].mxu0 %v4969
          %v5209 = vpop.f32.mrb[0].mxu0
          %v5210 = vadd.f32 %v5145, %v5209
          %v5211 = vpop.f32.mrb[0].mxu0
          %v5212 = vpop.f32.mrb[0].mxu0
          %v5213 = vadd.f32 %v5148, %v5212
          %v5214 = vpop.f32.mrb[0].mxu0
          %5215 = vmatprep.mubr.bf16.mxu0 0
          %5216 = vmatmul.mubr.bf16.gmra.mrb[0].mxu0 %v4972
          %v5217 = vpop.f32.mrb[0].mxu0
          %v5218 = vadd.f32 %v5153, %v5217
          %v5219 = vpop.f32.mrb[0].mxu0
          %v5220 = vpop.f32.mrb[0].mxu0
          %v5221 = vadd.f32 %v5156, %v5220
          %v5222 = vpop.f32.mrb[0].mxu0
          %5223 = vmatprep.mubr.bf16.mxu0 0
          %5224 = vmatmul.mubr.bf16.gmra.mrb[0].mxu0 %v4975
          %v5225 = vpop.f32.mrb[0].mxu0
          %v5226 = vadd.f32 %v5161, %v5225
          %v5227 = vpop.f32.mrb[0].mxu0
          %v5228 = vpop.f32.mrb[0].mxu0
          %v5229 = vadd.f32 %v5164, %v5228
          %v5230 = vpop.f32.mrb[0].mxu0
          %5231 = vmatprep.mubr.bf16.mxu0 0
          %5232 = vmatmul.mubr.bf16.gmra.mrb[0].mxu0 %v4978
          %v5233 = vpop.f32.mrb[0].mxu0
          %v5234 = vadd.f32 %v5169, %v5233
          %v5235 = vpop.f32.mrb[0].mxu0
          %v5236 = vpop.f32.mrb[0].mxu0
          %v5237 = vadd.f32 %v5172, %v5236
          %v5238 = vpop.f32.mrb[0].mxu0
          %5239 = vdwg.mxu0
          %vm5240 = vcmp.ge.f32.partialorder %v5210, 0.0
          %vm5241 = vcmp.ge.f32.partialorder %v5213, 0.0
          %vm5242 = vcmp.ge.f32.partialorder %v5218, 0.0
          %vm5243 = vcmp.ge.f32.partialorder %v5221, 0.0
          %vm5244 = vcmp.ge.f32.partialorder %v5226, 0.0
          %vm5245 = vcmp.ge.f32.partialorder %v5229, 0.0
          %vm5246 = vcmp.ge.f32.partialorder %v5234, 0.0
          %vm5247 = vcmp.ge.f32.partialorder %v5237, 0.0
          %v5248 = vmul.f32 %v5210, 0.01
          %v5249 = vmul.f32 %v5213, 0.01
          %v5250 = vmul.f32 %v5218, 0.01
          %v5251 = vmul.f32 %v5221, 0.01
          %v5252 = vmul.f32 %v5226, 0.01
          %v5253 = vmul.f32 %v5229, 0.01
          %v5254 = vmul.f32 %v5234, 0.01
          %v5255 = vmul.f32 %v5237, 0.01
          %v5256 = vsel %vm5240, %v5210, %v5248
          %v5257 = vsel %vm5241, %v5213, %v5249
          %v5258 = vsel %vm5242, %v5218, %v5250
          %v5259 = vsel %vm5243, %v5221, %v5251
          %v5260 = vsel %vm5244, %v5226, %v5252
          %v5261 = vsel %vm5245, %v5229, %v5253
          %v5262 = vsel %vm5246, %v5234, %v5254
          %v5263 = vsel %vm5247, %v5237, %v5255
          %v5264 = vpack.c.bf16 %v5257, %v5256
          %v5265 = vpack.c.bf16 %v5259, %v5258
          %v5266 = vpack.c.bf16 %v5261, %v5260
          %v5267 = vpack.c.bf16 %v5263, %v5262
          %5272 = vrot.lane.b32.xlu0 %v5264, 127
          %v5273 = vpop.permute.xlu0 %5272
          %5274 = vrot.lane.b32.xlu0 %v5265, 127
          %v5275 = vpop.permute.xlu0 %5274
          %5276 = vrot.lane.b32.xlu0 %v5266, 127
          %v5277 = vpop.permute.xlu0 %5276
          %5278 = vrot.lane.b32.xlu0 %v5267, 127
          %v5279 = vpop.permute.xlu0 %5278
          %5284 = vrot.lane.b32.xlu0 %v5264, 126
          %v5285 = vpop.permute.xlu0 %5284
          %5286 = vrot.lane.b32.xlu0 %v5265, 126
          %v5287 = vpop.permute.xlu0 %5286
          %5288 = vrot.lane.b32.xlu0 %v5266, 126
          %v5289 = vpop.permute.xlu0 %5288
          %5290 = vrot.lane.b32.xlu0 %v5267, 126
          %v5291 = vpop.permute.xlu0 %5290
          %5296 = vrot.lane.b32.xlu0 %v5264, 112
          %v5297 = vpop.permute.xlu0 %5296
          %5298 = vrot.lane.b32.xlu0 %v5265, 112
          %v5299 = vpop.permute.xlu0 %5298
          %5300 = vrot.lane.b32.xlu0 %v5266, 112
          %v5301 = vpop.permute.xlu0 %5300
          %5302 = vrot.lane.b32.xlu0 %v5267, 112
          %v5303 = vpop.permute.xlu0 %5302
          %5308 = vrot.lane.b32.xlu0 %v5264, 111
          %v5309 = vpop.permute.xlu0 %5308
          %5310 = vrot.lane.b32.xlu0 %v5265, 111
          %v5311 = vpop.permute.xlu0 %5310
          %5312 = vrot.lane.b32.xlu0 %v5266, 111
          %v5313 = vpop.permute.xlu0 %5312
          %5314 = vrot.lane.b32.xlu0 %v5267, 111
          %v5315 = vpop.permute.xlu0 %5314
          %5320 = vrot.lane.b32.xlu0 %v5264, 110
          %v5321 = vpop.permute.xlu0 %5320
          %5322 = vrot.lane.b32.xlu0 %v5265, 110
          %v5323 = vpop.permute.xlu0 %5322
          %5324 = vrot.lane.b32.xlu0 %v5266, 110
          %v5325 = vpop.permute.xlu0 %5324
          %5326 = vrot.lane.b32.xlu0 %v5267, 110
          %v5327 = vpop.permute.xlu0 %5326
          %5332 = vrot.lane.b32.xlu0 %v5264, 96
          %v5333 = vpop.permute.xlu0 %5332
          %5334 = vrot.lane.b32.xlu0 %v5265, 96
          %v5335 = vpop.permute.xlu0 %5334
          %5336 = vrot.lane.b32.xlu0 %v5266, 96
          %v5337 = vpop.permute.xlu0 %5336
          %5338 = vrot.lane.b32.xlu0 %v5267, 96
          %v5339 = vpop.permute.xlu0 %5338
          %5344 = vrot.lane.b32.xlu0 %v5264, 95
          %v5345 = vpop.permute.xlu0 %5344
          %5346 = vrot.lane.b32.xlu0 %v5265, 95
          %v5347 = vpop.permute.xlu0 %5346
          %5348 = vrot.lane.b32.xlu0 %v5266, 95
          %v5349 = vpop.permute.xlu0 %5348
          %5350 = vrot.lane.b32.xlu0 %v5267, 95
          %v5351 = vpop.permute.xlu0 %5350
          %5356 = vrot.lane.b32.xlu0 %v5264, 94
          %v5357 = vpop.permute.xlu0 %5356
          %5358 = vrot.lane.b32.xlu0 %v5265, 94
          %v5359 = vpop.permute.xlu0 %5358
          %5360 = vrot.lane.b32.xlu0 %v5266, 94
          %v5361 = vpop.permute.xlu0 %5360
          %5362 = vrot.lane.b32.xlu0 %v5267, 94
          %v5363 = vpop.permute.xlu0 %5362
          %v5368 = vld [vmem:[%s9] sm:$0xff]
          %v5369 = vld [vmem:[%s9 + $0x8] sm:$0x3]
          %v5370 = vld [vmem:[%s10] sm:$0x7]
          %5372 = vset.pattern.permute.xlu0 0
          %5373 = vperm.xlu0 %5372, %v5370
          %v5374 = vpop.permute.xlu0 %5373
          %v5378 = vcombine.high %v5368, %v5368
          %v5380 = vunpack.c.l.s4 1983009808
          %v5381 = vunpack.c.0.s8 %v5380
          %v5382 = vlaneseq
          %v5383 = vshrl.u32 %v5382, 7
          %v5384 = vsub.s32 %v5381, %v5383
          %v5385 = vrot.slane %v5368, %v5384
          %v5387 = vunpack.c.l.s4 1983009808
          %v5388 = vunpack.c.0.s8 %v5387
          %v5389 = vlaneseq
          %v5390 = vshrl.u32 %v5389, 7
          %v5391 = vsub.s32 %v5388, %v5390
          %v5392 = vrot.slane %v5378, %v5391
          %v5393 = vcombine.high %v5385, %v5385
          %v5394 = vcombine.high %v5392, %v5392
          %v5396 = vunpack.c.l.s4 1983009808
          %v5397 = vunpack.c.0.s8 %v5396
          %v5398 = vlaneseq
          %v5399 = vshrl.u32 %v5398, 7
          %v5400 = vsub.s32 %v5397, %v5399
          %v5401 = vrot.slane %v5369, %v5400
          %vm5406 = vcmask 523264
          %v5408 = vsel %vm5406, %v5401, 0
          %5410 = vmatprep.subr.bf16.mxu0 0
          %5411 = vmatpush1.bf16.msra.mxu0 %v5264
          %5412 = vmatprep.subr.bf16.mxu0 0
          %5413 = vmatpush1.bf16.msra.mxu0 %v5265
          %5414 = vmatprep.subr.bf16.mxu0 0
          %5415 = vmatpush1.bf16.msra.mxu0 %v5266
          %5416 = vmatprep.subr.bf16.mxu0 0
          %5417 = vmatpush1.bf16.msra.mxu0 %v5267
          %5418 = vmatprep.subr.bf16.mxu0 0
          %5419 = vmatpush1.bf16.msra.mxu0 %v5273
          %5420 = vmatprep.subr.bf16.mxu0 0
          %5421 = vmatpush1.bf16.msra.mxu0 %v5275
          %5422 = vmatprep.subr.bf16.mxu0 0
          %5423 = vmatpush1.bf16.msra.mxu0 %v5277
          %5424 = vmatprep.subr.bf16.mxu0 0
          %5425 = vmatpush1.bf16.msra.mxu0 %v5279
          %5426 = vmatprep.subr.bf16.mxu0 0
          %5427 = vmatpush1.bf16.msra.mxu0 %v5285
          %5428 = vmatprep.subr.bf16.mxu0 0
          %5429 = vmatpush1.bf16.msra.mxu0 %v5287
          %5430 = vmatprep.subr.bf16.mxu0 0
          %5431 = vmatpush1.bf16.msra.mxu0 %v5289
          %5432 = vmatprep.subr.bf16.mxu0 0
          %5433 = vmatpush1.bf16.msra.mxu0 %v5291
          %5434 = vmatprep.subr.bf16.mxu0 0
          %5435 = vmatpush1.bf16.msra.mxu0 %v5297
          %5436 = vmatprep.subr.bf16.mxu0 0
          %5437 = vmatpush1.bf16.msra.mxu0 %v5299
          %5438 = vmatprep.subr.bf16.mxu0 0
          %5439 = vmatpush1.bf16.msra.mxu0 %v5301
          %5440 = vmatprep.subr.bf16.mxu0 0
          %5441 = vmatpush1.bf16.msra.mxu0 %v5303
          %5442 = vmatprep.mubr.bf16.mxu0 %v5393
          %5443 = vmatmul.mubr.bf16.gmra.mrb[0].mxu0 %v5385
          %v5444 = vpop.f32.mrb[0].mxu0
          %v5445 = vadd.f32 %v5374, %v5444
          %v5446 = vpop.f32.mrb[0].mxu0
          %v5447 = vpop.f32.mrb[0].mxu0
          %v5448 = vpop.f32.mrb[0].mxu0
          %5449 = vdwg.mxu0
          %5450 = vmatprep.subr.bf16.mxu0 0
          %5451 = vmatpush1.bf16.msra.mxu0 %v5309
          %5452 = vmatprep.subr.bf16.mxu0 0
          %5453 = vmatpush1.bf16.msra.mxu0 %v5311
          %5454 = vmatprep.subr.bf16.mxu0 0
          %5455 = vmatpush1.bf16.msra.mxu0 %v5313
          %5456 = vmatprep.subr.bf16.mxu0 0
          %5457 = vmatpush1.bf16.msra.mxu0 %v5315
          %5458 = vmatprep.subr.bf16.mxu0 0
          %5459 = vmatpush1.bf16.msra.mxu0 %v5321
          %5460 = vmatprep.subr.bf16.mxu0 0
          %5461 = vmatpush1.bf16.msra.mxu0 %v5323
          %5462 = vmatprep.subr.bf16.mxu0 0
          %5463 = vmatpush1.bf16.msra.mxu0 %v5325
          %5464 = vmatprep.subr.bf16.mxu0 0
          %5465 = vmatpush1.bf16.msra.mxu0 %v5327
          %5466 = vmatprep.subr.bf16.mxu0 0
          %5467 = vmatpush1.bf16.msra.mxu0 %v5333
          %5468 = vmatprep.subr.bf16.mxu0 0
          %5469 = vmatpush1.bf16.msra.mxu0 %v5335
          %5470 = vmatprep.subr.bf16.mxu0 0
          %5471 = vmatpush1.bf16.msra.mxu0 %v5337
          %5472 = vmatprep.subr.bf16.mxu0 0
          %5473 = vmatpush1.bf16.msra.mxu0 %v5339
          %5474 = vmatprep.subr.bf16.mxu0 0
          %5475 = vmatpush1.bf16.msra.mxu0 %v5345
          %5476 = vmatprep.subr.bf16.mxu0 0
          %5477 = vmatpush1.bf16.msra.mxu0 %v5347
          %5478 = vmatprep.subr.bf16.mxu0 0
          %5479 = vmatpush1.bf16.msra.mxu0 %v5349
          %5480 = vmatprep.subr.bf16.mxu0 0
          %5481 = vmatpush1.bf16.msra.mxu0 %v5351
          %5482 = vmatprep.mubr.bf16.mxu0 %v5394
          %5483 = vmatmul.mubr.bf16.gmra.mrb[0].mxu0 %v5392
          %v5484 = vpop.f32.mrb[0].mxu0
          %v5485 = vadd.f32 %v5445, %v5484
          %v5486 = vpop.f32.mrb[0].mxu0
          %v5487 = vpop.f32.mrb[0].mxu0
          %v5488 = vpop.f32.mrb[0].mxu0
          %5489 = vdwg.mxu0
          %5490 = vmatprep.subr.bf16.mxu0 0
          %5491 = vmatpush1.bf16.msra.mxu0 %v5357
          %5492 = vmatprep.subr.bf16.mxu0 0
          %5493 = vmatpush1.bf16.msra.mxu0 %v5359
          %5494 = vmatprep.subr.bf16.mxu0 0
          %5495 = vmatpush1.bf16.msra.mxu0 %v5361
          %5496 = vmatprep.subr.bf16.mxu0 0
          %5497 = vmatpush1.bf16.msra.mxu0 %v5363
          %5498 = vmatprep.subr.bf16.mxu0 0
          %5499 = vmatpush1.bf16.msra.mxu0 0
          %5500 = vmatprep.subr.bf16.mxu0 0
          %5501 = vmatpush1.bf16.msra.mxu0 0
          %5502 = vmatprep.subr.bf16.mxu0 0
          %5503 = vmatpush1.bf16.msra.mxu0 0
          %5504 = vmatprep.subr.bf16.mxu0 0
          %5505 = vmatpush1.bf16.msra.mxu0 0
          %5506 = vmatprep.subr.bf16.mxu0 0
          %5507 = vmatpush1.bf16.msra.mxu0 0
          %5508 = vmatprep.subr.bf16.mxu0 0
          %5509 = vmatpush1.bf16.msra.mxu0 0
          %5510 = vmatprep.subr.bf16.mxu0 0
          %5511 = vmatpush1.bf16.msra.mxu0 0
          %5512 = vmatprep.subr.bf16.mxu0 0
          %5513 = vmatpush1.bf16.msra.mxu0 0
          %5514 = vmatprep.subr.bf16.mxu0 0
          %5515 = vmatpush1.bf16.msra.mxu0 0
          %5516 = vmatprep.subr.bf16.mxu0 0
          %5517 = vmatpush1.bf16.msra.mxu0 0
          %5518 = vmatprep.subr.bf16.mxu0 0
          %5519 = vmatpush1.bf16.msra.mxu0 0
          %5520 = vmatprep.subr.bf16.mxu0 0
          %5521 = vmatpush1.bf16.msra.mxu0 0
          %5522 = vmatprep.mubr.bf16.mxu0 0
          %5523 = vmatmul.mubr.bf16.gmra.mrb[0].mxu0 %v5408
          %v5524 = vpop.f32.mrb[0].mxu0
          %v5525 = vadd.f32 %v5485, %v5524
          %v5526 = vpop.f32.mrb[0].mxu0
          %v5527 = vpop.f32.mrb[0].mxu0
          %v5528 = vpop.f32.mrb[0].mxu0
          %5529 = vdwg.mxu0
          %v5531 = vrot.slane %v5525, 5
          %5532 = vrot.lane.b32.xlu0 %v5531, 112
          %v5533 = vpop.permute.xlu0 %5532
          %v5535 = vrot.slane %v5525, 2
          %5536 = vrot.lane.b32.xlu0 %v5535, 96
          %v5537 = vpop.permute.xlu0 %5536
          %v5539 = vrot.slane %v5525, 7
          %5540 = vrot.lane.b32.xlu0 %v5539, 80
          %v5541 = vpop.permute.xlu0 %5540
          %v5543 = vrot.slane %v5525, 4
          %5544 = vrot.lane.b32.xlu0 %v5543, 64
          %v5545 = vpop.permute.xlu0 %5544
          %v5547 = vrot.slane %v5525, 1
          %5548 = vrot.lane.b32.xlu0 %v5547, 48
          %v5549 = vpop.permute.xlu0 %5548
          %v5551 = vsel %vm715, %v5525, %v5533
          %v5552 = vsel %vm742, %v5551, %v5537
          %v5553 = vsel %vm697, %v5537, %v5541
          %v5554 = vsel %vm724, %v5553, %v5545
          %v5555 = vsel %vm751, %v5554, %v5549
          %v5556 = vpack.c.bf16 %v5555, %v5552
          %v5557 = vpack.c.bf16 %v5549, %v5549
          %v5558 = vld [vmem:[%s11] sm:$0x77]
          %v5559 = vld [vmem:[%s11 + $0x8] sm:$0x77]
          %v5560 = vld [vmem:[%s11 + $0x10] sm:$0x7]
          %v5564 = vunpack.c.l.b16 %v5558
          %v5565 = vunpack.c.h.b16 %v5558
          %v5566 = vunpack.c.l.b16 %v5559
          %v5567 = vunpack.c.h.b16 %v5559
          %v5568 = vunpack.c.l.b16 %v5560
          %v5569 = vpack.c.b16 %v5564, %v5564
          %v5570 = vpack.c.b16 %v5565, %v5565
          %v5571 = vpack.c.b16 %v5566, %v5566
          %v5572 = vpack.c.b16 %v5567, %v5567
          %v5573 = vpack.c.b16 %v5568, %v5568
          %vm5574 = vcmask 48128
          %v5576 = vsel %vm5574, %v5556, 0
          %v5579 = vsel %vm5574, %v5557, 0
          %v5582 = vsel %vm715, %v5569, 0
          %v5585 = vsel %vm715, %v5570, 0
          %v5588 = vsel %vm715, %v5571, 0
          %v5591 = vsel %vm715, %v5572, 0
          %v5594 = vsel %vm715, %v5573, 0
          %5596 = vmatprep.subr.bf16.mxu0 %v5585
          %5597 = vmatpush1.bf16.msra.mxu0 %v5582
          %5598 = vmatprep.subr.bf16.mxu0 0
          %5599 = vmatpush1.bf16.msra.mxu0 0
          %5600 = vmatprep.subr.bf16.mxu0 0
          %5601 = vmatpush1.bf16.msra.mxu0 0
          %5602 = vmatprep.subr.bf16.mxu0 0
          %5603 = vmatpush1.bf16.msra.mxu0 0
          %5604 = vmatprep.subr.bf16.mxu0 0
          %5605 = vmatpush1.bf16.msra.mxu0 0
          %5606 = vmatprep.subr.bf16.mxu0 0
          %5607 = vmatpush1.bf16.msra.mxu0 0
          %5608 = vmatprep.subr.bf16.mxu0 0
          %5609 = vmatpush1.bf16.msra.mxu0 0
          %5610 = vmatprep.subr.bf16.mxu0 0
          %5611 = vmatpush1.bf16.msra.mxu0 0
          %5612 = vmatprep.subr.bf16.mxu0 0
          %5613 = vmatpush1.bf16.msra.mxu0 0
          %5614 = vmatprep.subr.bf16.mxu0 0
          %5615 = vmatpush1.bf16.msra.mxu0 0
          %5616 = vmatprep.subr.bf16.mxu0 0
          %5617 = vmatpush1.bf16.msra.mxu0 0
          %5618 = vmatprep.subr.bf16.mxu0 0
          %5619 = vmatpush1.bf16.msra.mxu0 0
          %5620 = vmatprep.subr.bf16.mxu0 0
          %5621 = vmatpush1.bf16.msra.mxu0 0
          %5622 = vmatprep.subr.bf16.mxu0 0
          %5623 = vmatpush1.bf16.msra.mxu0 0
          %5624 = vmatprep.subr.bf16.mxu0 0
          %5625 = vmatpush1.bf16.msra.mxu0 0
          %5626 = vmatprep.subr.bf16.mxu0 0
          %5627 = vmatpush1.bf16.msra.mxu0 0
          %5628 = vmatprep.mubr.bf16.mxu0 0
          %5629 = vmatmul.mubr.bf16.gmra.mrb[0].mxu0 %v5576
          %v5630 = vpop.f32.mrb[0].mxu0
          %v5631 = vadd.f32 0.0, %v5630
          %v5632 = vpop.f32.mrb[0].mxu0
          %v5633 = vadd.f32 0.0, %v5632
          %v5634 = vpop.f32.mrb[0].mxu0
          %v5635 = vadd.f32 0.0, %v5634
          %v5636 = vpop.f32.mrb[0].mxu0
          %v5637 = vadd.f32 0.0, %v5636
          %5638 = vmatprep.mubr.bf16.mxu0 0
          %5639 = vmatmul.mubr.bf16.gmra.mrb[0].mxu0 %v5579
          %v5640 = vpop.f32.mrb[0].mxu0
          %v5641 = vadd.f32 0.0, %v5640
          %v5642 = vpop.f32.mrb[0].mxu0
          %v5643 = vadd.f32 0.0, %v5642
          %v5644 = vpop.f32.mrb[0].mxu0
          %v5645 = vpop.f32.mrb[0].mxu0
          %5646 = vdwg.mxu0
          %5647 = vmatprep.subr.bf16.mxu0 %v5591
          %5648 = vmatpush1.bf16.msra.mxu0 %v5588
          %5649 = vmatprep.subr.bf16.mxu0 0
          %5650 = vmatpush1.bf16.msra.mxu0 0
          %5651 = vmatprep.subr.bf16.mxu0 0
          %5652 = vmatpush1.bf16.msra.mxu0 0
          %5653 = vmatprep.subr.bf16.mxu0 0
          %5654 = vmatpush1.bf16.msra.mxu0 0
          %5655 = vmatprep.subr.bf16.mxu0 0
          %5656 = vmatpush1.bf16.msra.mxu0 0
          %5657 = vmatprep.subr.bf16.mxu0 0
          %5658 = vmatpush1.bf16.msra.mxu0 0
          %5659 = vmatprep.subr.bf16.mxu0 0
          %5660 = vmatpush1.bf16.msra.mxu0 0
          %5661 = vmatprep.subr.bf16.mxu0 0
          %5662 = vmatpush1.bf16.msra.mxu0 0
          %5663 = vmatprep.subr.bf16.mxu0 0
          %5664 = vmatpush1.bf16.msra.mxu0 0
          %5665 = vmatprep.subr.bf16.mxu0 0
          %5666 = vmatpush1.bf16.msra.mxu0 0
          %5667 = vmatprep.subr.bf16.mxu0 0
          %5668 = vmatpush1.bf16.msra.mxu0 0
          %5669 = vmatprep.subr.bf16.mxu0 0
          %5670 = vmatpush1.bf16.msra.mxu0 0
          %5671 = vmatprep.subr.bf16.mxu0 0
          %5672 = vmatpush1.bf16.msra.mxu0 0
          %5673 = vmatprep.subr.bf16.mxu0 0
          %5674 = vmatpush1.bf16.msra.mxu0 0
          %5675 = vmatprep.subr.bf16.mxu0 0
          %5676 = vmatpush1.bf16.msra.mxu0 0
          %5677 = vmatprep.subr.bf16.mxu0 0
          %5678 = vmatpush1.bf16.msra.mxu0 0
          %5679 = vmatprep.mubr.bf16.mxu0 0
          %5680 = vmatmul.mubr.bf16.gmra.mrb[0].mxu0 %v5576
          %v5681 = vpop.f32.mrb[0].mxu0
          %v5682 = vadd.f32 0.0, %v5681
          %v5683 = vpop.f32.mrb[0].mxu0
          %v5684 = vadd.f32 0.0, %v5683
          %v5685 = vpop.f32.mrb[0].mxu0
          %v5686 = vadd.f32 0.0, %v5685
          %v5687 = vpop.f32.mrb[0].mxu0
          %v5688 = vadd.f32 0.0, %v5687
          %5689 = vmatprep.mubr.bf16.mxu0 0
          %5690 = vmatmul.mubr.bf16.gmra.mrb[0].mxu0 %v5579
          %v5691 = vpop.f32.mrb[0].mxu0
          %v5692 = vadd.f32 0.0, %v5691
          %v5693 = vpop.f32.mrb[0].mxu0
          %v5694 = vadd.f32 0.0, %v5693
          %v5695 = vpop.f32.mrb[0].mxu0
          %v5696 = vpop.f32.mrb[0].mxu0
          %5697 = vdwg.mxu0
          %5698 = vmatprep.subr.bf16.mxu0 0
          %5699 = vmatpush1.bf16.msra.mxu0 %v5594
          %5700 = vmatprep.subr.bf16.mxu0 0
          %5701 = vmatpush1.bf16.msra.mxu0 0
          %5702 = vmatprep.subr.bf16.mxu0 0
          %5703 = vmatpush1.bf16.msra.mxu0 0
          %5704 = vmatprep.subr.bf16.mxu0 0
          %5705 = vmatpush1.bf16.msra.mxu0 0
          %5706 = vmatprep.subr.bf16.mxu0 0
          %5707 = vmatpush1.bf16.msra.mxu0 0
          %5708 = vmatprep.subr.bf16.mxu0 0
          %5709 = vmatpush1.bf16.msra.mxu0 0
          %5710 = vmatprep.subr.bf16.mxu0 0
          %5711 = vmatpush1.bf16.msra.mxu0 0
          %5712 = vmatprep.subr.bf16.mxu0 0
          %5713 = vmatpush1.bf16.msra.mxu0 0
          %5714 = vmatprep.subr.bf16.mxu0 0
          %5715 = vmatpush1.bf16.msra.mxu0 0
          %5716 = vmatprep.subr.bf16.mxu0 0
          %5717 = vmatpush1.bf16.msra.mxu0 0
          %5718 = vmatprep.subr.bf16.mxu0 0
          %5719 = vmatpush1.bf16.msra.mxu0 0
          %5720 = vmatprep.subr.bf16.mxu0 0
          %5721 = vmatpush1.bf16.msra.mxu0 0
          %5722 = vmatprep.subr.bf16.mxu0 0
          %5723 = vmatpush1.bf16.msra.mxu0 0
          %5724 = vmatprep.subr.bf16.mxu0 0
          %5725 = vmatpush1.bf16.msra.mxu0 0
          %5726 = vmatprep.subr.bf16.mxu0 0
          %5727 = vmatpush1.bf16.msra.mxu0 0
          %5728 = vmatprep.subr.bf16.mxu0 0
          %5729 = vmatpush1.bf16.msra.mxu0 0
          %5730 = vmatprep.mubr.bf16.mxu0 0
          %5731 = vmatmul.mubr.bf16.gmra.mrb[0].mxu0 %v5576
          %v5732 = vpop.f32.mrb[0].mxu0
          %v5733 = vadd.f32 0.0, %v5732
          %v5734 = vpop.f32.mrb[0].mxu0
          %v5735 = vpop.f32.mrb[0].mxu0
          %v5736 = vadd.f32 0.0, %v5735
          %v5737 = vpop.f32.mrb[0].mxu0
          %5738 = vmatprep.mubr.bf16.mxu0 0
          %5739 = vmatmul.mubr.bf16.gmra.mrb[0].mxu0 %v5579
          %v5740 = vpop.f32.mrb[0].mxu0
          %v5741 = vadd.f32 0.0, %v5740
          %v5742 = vpop.f32.mrb[0].mxu0
          %v5743 = vpop.f32.mrb[0].mxu0
          %v5744 = vpop.f32.mrb[0].mxu0
          %5745 = vdwg.mxu0
          %v5746 = vpack.c.bf16 %v5635, %v5631
          %v5747 = vpack.c.bf16 %v5637, %v5633
          %v5748 = vpack.c.bf16 %v5686, %v5682
          %v5749 = vpack.c.bf16 %v5688, %v5684
          %v5750 = vpack.c.bf16 %v5736, %v5733
          %v5751 = vpack.c.bf16 %v5641, %v5641
          %v5752 = vpack.c.bf16 %v5643, %v5643
          %v5753 = vpack.c.bf16 %v5692, %v5692
          %v5754 = vpack.c.bf16 %v5694, %v5694
          %v5755 = vpack.c.bf16 %v5741, %v5741
          %v5766 = vunpack.c.l.b16 %v5746
          %v5767 = vunpack.c.l.b16 %v5747
          %v5768 = vunpack.c.l.b16 %v5748
          %v5769 = vunpack.c.l.b16 %v5749
          %v5770 = vunpack.c.l.b16 %v5750
          %v5771 = vunpack.c.h.b16 %v5746
          %v5772 = vunpack.c.h.b16 %v5747
          %v5773 = vunpack.c.h.b16 %v5748
          %v5774 = vunpack.c.h.b16 %v5749
          %v5775 = vunpack.c.h.b16 %v5750
          %v5776 = vunpack.c.l.b16 %v5751
          %v5777 = vunpack.c.l.b16 %v5752
          %v5778 = vunpack.c.l.b16 %v5753
          %v5779 = vunpack.c.l.b16 %v5754
          %v5780 = vunpack.c.l.b16 %v5755
          %v5781 = vpack.c.b16 %v5767, %v5766
          %v5782 = vpack.c.b16 %v5769, %v5768
          %v5783 = vpack.c.b16 %v5770, %v5770
          %v5784 = vpack.c.b16 %v5772, %v5771
          %v5785 = vpack.c.b16 %v5774, %v5773
          %v5786 = vpack.c.b16 %v5775, %v5775
          %v5787 = vpack.c.b16 %v5777, %v5776
          %v5788 = vpack.c.b16 %v5779, %v5778
          %v5789 = vpack.c.b16 %v5780, %v5780
          %5799 = vst [vmem:[#allocation2] sm:$0xff] %v5781
          %5800 = vst [vmem:[#allocation2 + $0x8] sm:$0xff] %v5782
          %5801 = vst [vmem:[#allocation2 + $0x10] sm:$0xf] %v5783
          %5802 = vst [vmem:[#allocation2 + $0x14] sm:$0xff] %v5784
          %5803 = vst [vmem:[#allocation2 + $0x1c] sm:$0xff] %v5785
          %5804 = vst [vmem:[#allocation2 + $0x24] sm:$0xf] %v5786
          %5805 = vst [vmem:[#allocation2 + $0x28] sm:$0x11] %v5787
          %5806 = vst [vmem:[#allocation2 + $0x30] sm:$0x11] %v5788
          %5807 = vst [vmem:[#allocation2 + $0x38] sm:$0x1] %v5789
        $region76: #{bgnet_forward.1} parent=71 // pred_fallthru
          _
        %v5808 = vld [vmem:[%s439] sm:$0xf]
        %v5809 = vld [vmem:[%s439 + $0x4] sm:$0xf]
        %v5810 = vld [vmem:[%s439 + $0x8] sm:$0xf]
        %v5811 = vld [vmem:[%s439 + $0xc] sm:$0xf]
        %v5812 = vld [vmem:[%s439 + $0x10] sm:$0xf]
        %v5813 = vld [vmem:[%s439 + $0x14] sm:$0xf]
        %v5814 = vld [vmem:[%s439 + $0x18] sm:$0xf]
        %v5815 = vld [vmem:[%s439 + $0x1c] sm:$0xf]
        %v5816 = vld [vmem:[%s439 + $0x20] sm:$0xf]
        %v5817 = vld [vmem:[%s439 + $0x24] sm:$0xf]
        %v5818 = vld [vmem:[%s439 + $0x28] sm:$0xf]
        %v5819 = vld [vmem:[%s439 + $0x2c] sm:$0xf]
        %v5820 = vld [vmem:[%s439 + $0x30] sm:$0xf]
        %v5821 = vld [vmem:[%s439 + $0x34] sm:$0xf]
        %v5822 = vld [vmem:[%s439 + $0x38] sm:$0xf]
        %v5823 = vld [vmem:[%s439 + $0x3c] sm:$0xf]
        %v5824 = vld [vmem:[%s439 + $0x40] sm:$0xf]
        %v5825 = vld [vmem:[%s439 + $0x44] sm:$0xf]
        %v5826 = vld [vmem:[%s439 + $0x48] sm:$0xf]
        %v5827 = vld [vmem:[%s439 + $0x4c] sm:$0xf]
        %v5828 = vld [vmem:[%s439 + $0x50] sm:$0xf]
        %v5829 = vld [vmem:[%s439 + $0x54] sm:$0xf]
        %v5830 = vld [vmem:[%s439 + $0x58] sm:$0xf]
        %v5831 = vld [vmem:[%s439 + $0x5c] sm:$0xf]
        %v5832 = vld [vmem:[%s439 + $0x60] sm:$0xf]
        %v5833 = vld [vmem:[%s439 + $0x64] sm:$0xf]
        %v5834 = vld [vmem:[%s439 + $0x68] sm:$0xf]
        %v5835 = vld [vmem:[#allocation2] sm:$0xff]
        %v5836 = vld [vmem:[#allocation2 + $0x8] sm:$0xff]
        %v5837 = vld [vmem:[#allocation2 + $0x10] sm:$0xf]
        %v5838 = vld [vmem:[#allocation2 + $0x14] sm:$0xff]
        %v5839 = vld [vmem:[#allocation2 + $0x1c] sm:$0xff]
        %v5840 = vld [vmem:[#allocation2 + $0x24] sm:$0xf]
        %v5841 = vld [vmem:[#allocation2 + $0x28] sm:$0x11]
        %v5842 = vld [vmem:[#allocation2 + $0x30] sm:$0x11]
        %v5843 = vld [vmem:[#allocation2 + $0x38] sm:$0x1]
        %v5871 = vunpack.c.l.b16 %v5808
        %v5872 = vunpack.c.l.b16 %v5809
        %v5873 = vunpack.c.l.b16 %v5810
        %v5874 = vunpack.c.l.b16 %v5811
        %v5875 = vunpack.c.l.b16 %v5812
        %v5876 = vunpack.c.l.b16 %v5813
        %v5877 = vunpack.c.l.b16 %v5814
        %v5878 = vunpack.c.l.b16 %v5815
        %v5879 = vunpack.c.l.b16 %v5816
        %v5880 = vunpack.c.l.b16 %v5817
        %v5881 = vunpack.c.l.b16 %v5818
        %v5882 = vunpack.c.l.b16 %v5819
        %v5883 = vunpack.c.l.b16 %v5820
        %v5884 = vunpack.c.l.b16 %v5821
        %v5885 = vunpack.c.l.b16 %v5822
        %v5886 = vunpack.c.l.b16 %v5823
        %v5887 = vunpack.c.l.b16 %v5824
        %v5888 = vunpack.c.l.b16 %v5825
        %v5889 = vunpack.c.l.b16 %v5826
        %v5890 = vunpack.c.l.b16 %v5827
        %v5891 = vunpack.c.l.b16 %v5828
        %v5892 = vunpack.c.l.b16 %v5829
        %v5893 = vunpack.c.l.b16 %v5830
        %v5894 = vunpack.c.l.b16 %v5831
        %v5895 = vunpack.c.l.b16 %v5832
        %v5896 = vunpack.c.l.b16 %v5833
        %v5897 = vunpack.c.l.b16 %v5834
        %v5898 = vpack.c.b16 %v5872, %v5871
        %v5899 = vpack.c.b16 %v5874, %v5873
        %v5900 = vpack.c.b16 %v5876, %v5875
        %v5901 = vpack.c.b16 %v5878, %v5877
        %v5902 = vpack.c.b16 %v5880, %v5879
        %v5903 = vpack.c.b16 %v5882, %v5881
        %v5904 = vpack.c.b16 %v5884, %v5883
        %v5905 = vpack.c.b16 %v5886, %v5885
        %v5906 = vpack.c.b16 %v5888, %v5887
        %v5907 = vpack.c.b16 %v5890, %v5889
        %v5908 = vpack.c.b16 %v5892, %v5891
        %v5909 = vpack.c.b16 %v5894, %v5893
        %v5910 = vpack.c.b16 %v5896, %v5895
        %v5911 = vpack.c.b16 %v5897, %v5897
        %v5921 = vunpack.c.l.b16 %v5835
        %v5922 = vunpack.c.h.b16 %v5835
        %v5923 = vunpack.c.l.b16 %v5836
        %v5924 = vunpack.c.h.b16 %v5836
        %v5925 = vunpack.c.l.b16 %v5837
        %v5926 = vunpack.c.l.b16 %v5838
        %v5927 = vunpack.c.h.b16 %v5838
        %v5928 = vunpack.c.l.b16 %v5839
        %v5929 = vunpack.c.h.b16 %v5839
        %v5930 = vunpack.c.l.b16 %v5840
        %v5931 = vunpack.c.l.b16 %v5841
        %v5932 = vunpack.c.h.b16 %v5841
        %v5933 = vunpack.c.l.b16 %v5842
        %v5934 = vunpack.c.h.b16 %v5842
        %v5935 = vunpack.c.l.b16 %v5843
        %v5936 = vpack.c.b16 %v5926, %v5921
        %v5937 = vpack.c.b16 %v5927, %v5922
        %v5938 = vpack.c.b16 %v5928, %v5923
        %v5939 = vpack.c.b16 %v5929, %v5924
        %v5940 = vpack.c.b16 %v5930, %v5925
        %v5941 = vpack.c.b16 %v5931, %v5931
        %v5942 = vpack.c.b16 %v5932, %v5932
        %v5943 = vpack.c.b16 %v5933, %v5933
        %v5944 = vpack.c.b16 %v5934, %v5934
        %v5945 = vpack.c.b16 %v5935, %v5935
        %vm5951 = vcmask 146432
        %v5953 = vsel %vm5951, %v5898, 0
        %v5956 = vsel %vm5951, %v5899, 0
        %v5959 = vsel %vm5951, %v5900, 0
        %v5962 = vsel %vm5951, %v5901, 0
        %v5965 = vsel %vm5951, %v5902, 0
        %v5968 = vsel %vm5951, %v5903, 0
        %v5971 = vsel %vm5951, %v5904, 0
        %v5974 = vsel %vm5951, %v5905, 0
        %v5977 = vsel %vm5951, %v5906, 0
        %v5980 = vsel %vm5951, %v5907, 0
        %v5983 = vsel %vm5951, %v5908, 0
        %v5986 = vsel %vm5951, %v5909, 0
        %v5989 = vsel %vm5951, %v5910, 0
        %v5992 = vsel %vm5951, %v5911, 0
        %vm5994 = vcmask 1040384
        %v5996 = vsel %vm5994, %v5941, 0
        %v5999 = vsel %vm5994, %v5942, 0
        %v6002 = vsel %vm5994, %v5943, 0
        %v6005 = vsel %vm5994, %v5944, 0
        %v6008 = vsel %vm5994, %v5945, 0
        %6010 = vmatprep.subr.bf16.mxu0 %v5937
        %6011 = vmatpush1.bf16.msra.mxu0 %v5936
        %6012 = vmatprep.subr.bf16.mxu0 %v5999
        %6013 = vmatpush1.bf16.msra.mxu0 %v5996
        %6014 = vmatprep.subr.bf16.mxu0 0
        %6015 = vmatpush1.bf16.msra.mxu0 0
        %6016 = vmatprep.subr.bf16.mxu0 0
        %6017 = vmatpush1.bf16.msra.mxu0 0
        %6018 = vmatprep.subr.bf16.mxu0 0
        %6019 = vmatpush1.bf16.msra.mxu0 0
        %6020 = vmatprep.subr.bf16.mxu0 0
        %6021 = vmatpush1.bf16.msra.mxu0 0
        %6022 = vmatprep.subr.bf16.mxu0 0
        %6023 = vmatpush1.bf16.msra.mxu0 0
        %6024 = vmatprep.subr.bf16.mxu0 0
        %6025 = vmatpush1.bf16.msra.mxu0 0
        %6026 = vmatprep.subr.bf16.mxu0 0
        %6027 = vmatpush1.bf16.msra.mxu0 0
        %6028 = vmatprep.subr.bf16.mxu0 0
        %6029 = vmatpush1.bf16.msra.mxu0 0
        %6030 = vmatprep.subr.bf16.mxu0 0
        %6031 = vmatpush1.bf16.msra.mxu0 0
        %6032 = vmatprep.subr.bf16.mxu0 0
        %6033 = vmatpush1.bf16.msra.mxu0 0
        %6034 = vmatprep.subr.bf16.mxu0 0
        %6035 = vmatpush1.bf16.msra.mxu0 0
        %6036 = vmatprep.subr.bf16.mxu0 0
        %6037 = vmatpush1.bf16.msra.mxu0 0
        %6038 = vmatprep.subr.bf16.mxu0 0
        %6039 = vmatpush1.bf16.msra.mxu0 0
        %6040 = vmatprep.subr.bf16.mxu0 0
        %6041 = vmatpush1.bf16.msra.mxu0 0
        %6042 = vmatprep.mubr.bf16.mxu0 0
        %6043 = vmatmul.mubr.bf16.gmra.mrb[0].mxu0 %v5953
        %v6044 = vpop.f32.mrb[0].mxu0
        %v6045 = vadd.f32 0.0, %v6044
        %v6046 = vpop.f32.mrb[0].mxu0
        %v6047 = vadd.f32 0.0, %v6046
        %v6048 = vpop.f32.mrb[0].mxu0
        %v6049 = vadd.f32 0.0, %v6048
        %v6050 = vpop.f32.mrb[0].mxu0
        %v6051 = vadd.f32 0.0, %v6050
        %6052 = vmatprep.mubr.bf16.mxu0 0
        %6053 = vmatmul.mubr.bf16.gmra.mrb[0].mxu0 %v5956
        %v6054 = vpop.f32.mrb[0].mxu0
        %v6055 = vadd.f32 0.0, %v6054
        %v6056 = vpop.f32.mrb[0].mxu0
        %v6057 = vadd.f32 0.0, %v6056
        %v6058 = vpop.f32.mrb[0].mxu0
        %v6059 = vadd.f32 0.0, %v6058
        %v6060 = vpop.f32.mrb[0].mxu0
        %v6061 = vadd.f32 0.0, %v6060
        %6062 = vmatprep.mubr.bf16.mxu0 0
        %6063 = vmatmul.mubr.bf16.gmra.mrb[0].mxu0 %v5959
        %v6064 = vpop.f32.mrb[0].mxu0
        %v6065 = vadd.f32 0.0, %v6064
        %v6066 = vpop.f32.mrb[0].mxu0
        %v6067 = vadd.f32 0.0, %v6066
        %v6068 = vpop.f32.mrb[0].mxu0
        %v6069 = vadd.f32 0.0, %v6068
        %v6070 = vpop.f32.mrb[0].mxu0
        %v6071 = vadd.f32 0.0, %v6070
        %6072 = vmatprep.mubr.bf16.mxu0 0
        %6073 = vmatmul.mubr.bf16.gmra.mrb[0].mxu0 %v5962
        %v6074 = vpop.f32.mrb[0].mxu0
        %v6075 = vadd.f32 0.0, %v6074
        %v6076 = vpop.f32.mrb[0].mxu0
        %v6077 = vadd.f32 0.0, %v6076
        %v6078 = vpop.f32.mrb[0].mxu0
        %v6079 = vadd.f32 0.0, %v6078
        %v6080 = vpop.f32.mrb[0].mxu0
        %v6081 = vadd.f32 0.0, %v6080
        %6082 = vmatprep.mubr.bf16.mxu0 0
        %6083 = vmatmul.mubr.bf16.gmra.mrb[0].mxu0 %v5965
        %v6084 = vpop.f32.mrb[0].mxu0
        %v6085 = vadd.f32 0.0, %v6084
        %v6086 = vpop.f32.mrb[0].mxu0
        %v6087 = vadd.f32 0.0, %v6086
        %v6088 = vpop.f32.mrb[0].mxu0
        %v6089 = vadd.f32 0.0, %v6088
        %v6090 = vpop.f32.mrb[0].mxu0
        %v6091 = vadd.f32 0.0, %v6090
        %6092 = vmatprep.mubr.bf16.mxu0 0
        %6093 = vmatmul.mubr.bf16.gmra.mrb[0].mxu0 %v5968
        %v6094 = vpop.f32.mrb[0].mxu0
        %v6095 = vadd.f32 0.0, %v6094
        %v6096 = vpop.f32.mrb[0].mxu0
        %v6097 = vadd.f32 0.0, %v6096
        %v6098 = vpop.f32.mrb[0].mxu0
        %v6099 = vadd.f32 0.0, %v6098
        %v6100 = vpop.f32.mrb[0].mxu0
        %v6101 = vadd.f32 0.0, %v6100
        %6102 = vmatprep.mubr.bf16.mxu0 0
        %6103 = vmatmul.mubr.bf16.gmra.mrb[0].mxu0 %v5971
        %v6104 = vpop.f32.mrb[0].mxu0
        %v6105 = vadd.f32 0.0, %v6104
        %v6106 = vpop.f32.mrb[0].mxu0
        %v6107 = vadd.f32 0.0, %v6106
        %v6108 = vpop.f32.mrb[0].mxu0
        %v6109 = vadd.f32 0.0, %v6108
        %v6110 = vpop.f32.mrb[0].mxu0
        %v6111 = vadd.f32 0.0, %v6110
        %6112 = vmatprep.mubr.bf16.mxu0 0
        %6113 = vmatmul.mubr.bf16.gmra.mrb[0].mxu0 %v5974
        %v6114 = vpop.f32.mrb[0].mxu0
        %v6115 = vadd.f32 0.0, %v6114
        %v6116 = vpop.f32.mrb[0].mxu0
        %v6117 = vadd.f32 0.0, %v6116
        %v6118 = vpop.f32.mrb[0].mxu0
        %v6119 = vadd.f32 0.0, %v6118
        %v6120 = vpop.f32.mrb[0].mxu0
        %v6121 = vadd.f32 0.0, %v6120
        %6122 = vmatprep.mubr.bf16.mxu0 0
        %6123 = vmatmul.mubr.bf16.gmra.mrb[0].mxu0 %v5977
        %v6124 = vpop.f32.mrb[0].mxu0
        %v6125 = vadd.f32 0.0, %v6124
        %v6126 = vpop.f32.mrb[0].mxu0
        %v6127 = vadd.f32 0.0, %v6126
        %v6128 = vpop.f32.mrb[0].mxu0
        %v6129 = vadd.f32 0.0, %v6128
        %v6130 = vpop.f32.mrb[0].mxu0
        %v6131 = vadd.f32 0.0, %v6130
        %6132 = vmatprep.mubr.bf16.mxu0 0
        %6133 = vmatmul.mubr.bf16.gmra.mrb[0].mxu0 %v5980
        %v6134 = vpop.f32.mrb[0].mxu0
        %v6135 = vadd.f32 0.0, %v6134
        %v6136 = vpop.f32.mrb[0].mxu0
        %v6137 = vadd.f32 0.0, %v6136
        %v6138 = vpop.f32.mrb[0].mxu0
        %v6139 = vadd.f32 0.0, %v6138
        %v6140 = vpop.f32.mrb[0].mxu0
        %v6141 = vadd.f32 0.0, %v6140
        %6142 = vmatprep.mubr.bf16.mxu0 0
        %6143 = vmatmul.mubr.bf16.gmra.mrb[0].mxu0 %v5983
        %v6144 = vpop.f32.mrb[0].mxu0
        %v6145 = vadd.f32 0.0, %v6144
        %v6146 = vpop.f32.mrb[0].mxu0
        %v6147 = vadd.f32 0.0, %v6146
        %v6148 = vpop.f32.mrb[0].mxu0
        %v6149 = vadd.f32 0.0, %v6148
        %v6150 = vpop.f32.mrb[0].mxu0
        %v6151 = vadd.f32 0.0, %v6150
        %6152 = vmatprep.mubr.bf16.mxu0 0
        %6153 = vmatmul.mubr.bf16.gmra.mrb[0].mxu0 %v5986
        %v6154 = vpop.f32.mrb[0].mxu0
        %v6155 = vadd.f32 0.0, %v6154
        %v6156 = vpop.f32.mrb[0].mxu0
        %v6157 = vadd.f32 0.0, %v6156
        %v6158 = vpop.f32.mrb[0].mxu0
        %v6159 = vadd.f32 0.0, %v6158
        %v6160 = vpop.f32.mrb[0].mxu0
        %v6161 = vadd.f32 0.0, %v6160
        %6162 = vmatprep.mubr.bf16.mxu0 0
        %6163 = vmatmul.mubr.bf16.gmra.mrb[0].mxu0 %v5989
        %v6164 = vpop.f32.mrb[0].mxu0
        %v6165 = vadd.f32 0.0, %v6164
        %v6166 = vpop.f32.mrb[0].mxu0
        %v6167 = vadd.f32 0.0, %v6166
        %v6168 = vpop.f32.mrb[0].mxu0
        %v6169 = vadd.f32 0.0, %v6168
        %v6170 = vpop.f32.mrb[0].mxu0
        %v6171 = vadd.f32 0.0, %v6170
        %6172 = vmatprep.mubr.bf16.mxu0 0
        %6173 = vmatmul.mubr.bf16.gmra.mrb[0].mxu0 %v5992
        %v6174 = vpop.f32.mrb[0].mxu0
        %v6175 = vadd.f32 0.0, %v6174
        %v6176 = vpop.f32.mrb[0].mxu0
        %v6177 = vadd.f32 0.0, %v6176
        %v6178 = vpop.f32.mrb[0].mxu0
        %v6179 = vpop.f32.mrb[0].mxu0
        %6180 = vdwg.mxu0
        %6181 = vmatprep.subr.bf16.mxu0 %v5939
        %6182 = vmatpush1.bf16.msra.mxu0 %v5938
        %6183 = vmatprep.subr.bf16.mxu0 %v6005
        %6184 = vmatpush1.bf16.msra.mxu0 %v6002
        %6185 = vmatprep.subr.bf16.mxu0 0
        %6186 = vmatpush1.bf16.msra.mxu0 0
        %6187 = vmatprep.subr.bf16.mxu0 0
        %6188 = vmatpush1.bf16.msra.mxu0 0
        %6189 = vmatprep.subr.bf16.mxu0 0
        %6190 = vmatpush1.bf16.msra.mxu0 0
        %6191 = vmatprep.subr.bf16.mxu0 0
        %6192 = vmatpush1.bf16.msra.mxu0 0
        %6193 = vmatprep.subr.bf16.mxu0 0
        %6194 = vmatpush1.bf16.msra.mxu0 0
        %6195 = vmatprep.subr.bf16.mxu0 0
        %6196 = vmatpush1.bf16.msra.mxu0 0
        %6197 = vmatprep.subr.bf16.mxu0 0
        %6198 = vmatpush1.bf16.msra.mxu0 0
        %6199 = vmatprep.subr.bf16.mxu0 0
        %6200 = vmatpush1.bf16.msra.mxu0 0
        %6201 = vmatprep.subr.bf16.mxu0 0
        %6202 = vmatpush1.bf16.msra.mxu0 0
        %6203 = vmatprep.subr.bf16.mxu0 0
        %6204 = vmatpush1.bf16.msra.mxu0 0
        %6205 = vmatprep.subr.bf16.mxu0 0
        %6206 = vmatpush1.bf16.msra.mxu0 0
        %6207 = vmatprep.subr.bf16.mxu0 0
        %6208 = vmatpush1.bf16.msra.mxu0 0
        %6209 = vmatprep.subr.bf16.mxu0 0
        %6210 = vmatpush1.bf16.msra.mxu0 0
        %6211 = vmatprep.subr.bf16.mxu0 0
        %6212 = vmatpush1.bf16.msra.mxu0 0
        %6213 = vmatprep.mubr.bf16.mxu0 0
        %6214 = vmatmul.mubr.bf16.gmra.mrb[0].mxu0 %v5953
        %v6215 = vpop.f32.mrb[0].mxu0
        %v6216 = vadd.f32 0.0, %v6215
        %v6217 = vpop.f32.mrb[0].mxu0
        %v6218 = vadd.f32 0.0, %v6217
        %v6219 = vpop.f32.mrb[0].mxu0
        %v6220 = vadd.f32 0.0, %v6219
        %v6221 = vpop.f32.mrb[0].mxu0
        %v6222 = vadd.f32 0.0, %v6221
        %6223 = vmatprep.mubr.bf16.mxu0 0
        %6224 = vmatmul.mubr.bf16.gmra.mrb[0].mxu0 %v5956
        %v6225 = vpop.f32.mrb[0].mxu0
        %v6226 = vadd.f32 0.0, %v6225
        %v6227 = vpop.f32.mrb[0].mxu0
        %v6228 = vadd.f32 0.0, %v6227
        %v6229 = vpop.f32.mrb[0].mxu0
        %v6230 = vadd.f32 0.0, %v6229
        %v6231 = vpop.f32.mrb[0].mxu0
        %v6232 = vadd.f32 0.0, %v6231
        %6233 = vmatprep.mubr.bf16.mxu0 0
        %6234 = vmatmul.mubr.bf16.gmra.mrb[0].mxu0 %v5959
        %v6235 = vpop.f32.mrb[0].mxu0
        %v6236 = vadd.f32 0.0, %v6235
        %v6237 = vpop.f32.mrb[0].mxu0
        %v6238 = vadd.f32 0.0, %v6237
        %v6239 = vpop.f32.mrb[0].mxu0
        %v6240 = vadd.f32 0.0, %v6239
        %v6241 = vpop.f32.mrb[0].mxu0
        %v6242 = vadd.f32 0.0, %v6241
        %6243 = vmatprep.mubr.bf16.mxu0 0
        %6244 = vmatmul.mubr.bf16.gmra.mrb[0].mxu0 %v5962
        %v6245 = vpop.f32.mrb[0].mxu0
        %v6246 = vadd.f32 0.0, %v6245
        %v6247 = vpop.f32.mrb[0].mxu0
        %v6248 = vadd.f32 0.0, %v6247
        %v6249 = vpop.f32.mrb[0].mxu0
        %v6250 = vadd.f32 0.0, %v6249
        %v6251 = vpop.f32.mrb[0].mxu0
        %v6252 = vadd.f32 0.0, %v6251
        %6253 = vmatprep.mubr.bf16.mxu0 0
        %6254 = vmatmul.mubr.bf16.gmra.mrb[0].mxu0 %v5965
        %v6255 = vpop.f32.mrb[0].mxu0
        %v6256 = vadd.f32 0.0, %v6255
        %v6257 = vpop.f32.mrb[0].mxu0
        %v6258 = vadd.f32 0.0, %v6257
        %v6259 = vpop.f32.mrb[0].mxu0
        %v6260 = vadd.f32 0.0, %v6259
        %v6261 = vpop.f32.mrb[0].mxu0
        %v6262 = vadd.f32 0.0, %v6261
        %6263 = vmatprep.mubr.bf16.mxu0 0
        %6264 = vmatmul.mubr.bf16.gmra.mrb[0].mxu0 %v5968
        %v6265 = vpop.f32.mrb[0].mxu0
        %v6266 = vadd.f32 0.0, %v6265
        %v6267 = vpop.f32.mrb[0].mxu0
        %v6268 = vadd.f32 0.0, %v6267
        %v6269 = vpop.f32.mrb[0].mxu0
        %v6270 = vadd.f32 0.0, %v6269
        %v6271 = vpop.f32.mrb[0].mxu0
        %v6272 = vadd.f32 0.0, %v6271
        %6273 = vmatprep.mubr.bf16.mxu0 0
        %6274 = vmatmul.mubr.bf16.gmra.mrb[0].mxu0 %v5971
        %v6275 = vpop.f32.mrb[0].mxu0
        %v6276 = vadd.f32 0.0, %v6275
        %v6277 = vpop.f32.mrb[0].mxu0
        %v6278 = vadd.f32 0.0, %v6277
        %v6279 = vpop.f32.mrb[0].mxu0
        %v6280 = vadd.f32 0.0, %v6279
        %v6281 = vpop.f32.mrb[0].mxu0
        %v6282 = vadd.f32 0.0, %v6281
        %6283 = vmatprep.mubr.bf16.mxu0 0
        %6284 = vmatmul.mubr.bf16.gmra.mrb[0].mxu0 %v5974
        %v6285 = vpop.f32.mrb[0].mxu0
        %v6286 = vadd.f32 0.0, %v6285
        %v6287 = vpop.f32.mrb[0].mxu0
        %v6288 = vadd.f32 0.0, %v6287
        %v6289 = vpop.f32.mrb[0].mxu0
        %v6290 = vadd.f32 0.0, %v6289
        %v6291 = vpop.f32.mrb[0].mxu0
        %v6292 = vadd.f32 0.0, %v6291
        %6293 = vmatprep.mubr.bf16.mxu0 0
        %6294 = vmatmul.mubr.bf16.gmra.mrb[0].mxu0 %v5977
        %v6295 = vpop.f32.mrb[0].mxu0
        %v6296 = vadd.f32 0.0, %v6295
        %v6297 = vpop.f32.mrb[0].mxu0
        %v6298 = vadd.f32 0.0, %v6297
        %v6299 = vpop.f32.mrb[0].mxu0
        %v6300 = vadd.f32 0.0, %v6299
        %v6301 = vpop.f32.mrb[0].mxu0
        %v6302 = vadd.f32 0.0, %v6301
        %6303 = vmatprep.mubr.bf16.mxu0 0
        %6304 = vmatmul.mubr.bf16.gmra.mrb[0].mxu0 %v5980
        %v6305 = vpop.f32.mrb[0].mxu0
        %v6306 = vadd.f32 0.0, %v6305
        %v6307 = vpop.f32.mrb[0].mxu0
        %v6308 = vadd.f32 0.0, %v6307
        %v6309 = vpop.f32.mrb[0].mxu0
        %v6310 = vadd.f32 0.0, %v6309
        %v6311 = vpop.f32.mrb[0].mxu0
        %v6312 = vadd.f32 0.0, %v6311
        %6313 = vmatprep.mubr.bf16.mxu0 0
        %6314 = vmatmul.mubr.bf16.gmra.mrb[0].mxu0 %v5983
        %v6315 = vpop.f32.mrb[0].mxu0
        %v6316 = vadd.f32 0.0, %v6315
        %v6317 = vpop.f32.mrb[0].mxu0
        %v6318 = vadd.f32 0.0, %v6317
        %v6319 = vpop.f32.mrb[0].mxu0
        %v6320 = vadd.f32 0.0, %v6319
        %v6321 = vpop.f32.mrb[0].mxu0
        %v6322 = vadd.f32 0.0, %v6321
        %6323 = vmatprep.mubr.bf16.mxu0 0
        %6324 = vmatmul.mubr.bf16.gmra.mrb[0].mxu0 %v5986
        %v6325 = vpop.f32.mrb[0].mxu0
        %v6326 = vadd.f32 0.0, %v6325
        %v6327 = vpop.f32.mrb[0].mxu0
        %v6328 = vadd.f32 0.0, %v6327
        %v6329 = vpop.f32.mrb[0].mxu0
        %v6330 = vadd.f32 0.0, %v6329
        %v6331 = vpop.f32.mrb[0].mxu0
        %v6332 = vadd.f32 0.0, %v6331
        %6333 = vmatprep.mubr.bf16.mxu0 0
        %6334 = vmatmul.mubr.bf16.gmra.mrb[0].mxu0 %v5989
        %v6335 = vpop.f32.mrb[0].mxu0
        %v6336 = vadd.f32 0.0, %v6335
        %v6337 = vpop.f32.mrb[0].mxu0
        %v6338 = vadd.f32 0.0, %v6337
        %v6339 = vpop.f32.mrb[0].mxu0
        %v6340 = vadd.f32 0.0, %v6339
        %v6341 = vpop.f32.mrb[0].mxu0
        %v6342 = vadd.f32 0.0, %v6341
        %6343 = vmatprep.mubr.bf16.mxu0 0
        %6344 = vmatmul.mubr.bf16.gmra.mrb[0].mxu0 %v5992
        %v6345 = vpop.f32.mrb[0].mxu0
        %v6346 = vadd.f32 0.0, %v6345
        %v6347 = vpop.f32.mrb[0].mxu0
        %v6348 = vadd.f32 0.0, %v6347
        %v6349 = vpop.f32.mrb[0].mxu0
        %v6350 = vpop.f32.mrb[0].mxu0
        %6351 = vdwg.mxu0
        %6352 = vmatprep.subr.bf16.mxu0 0
        %6353 = vmatpush1.bf16.msra.mxu0 %v5940
        %6354 = vmatprep.subr.bf16.mxu0 0
        %6355 = vmatpush1.bf16.msra.mxu0 %v6008
        %6356 = vmatprep.subr.bf16.mxu0 0
        %6357 = vmatpush1.bf16.msra.mxu0 0
        %6358 = vmatprep.subr.bf16.mxu0 0
        %6359 = vmatpush1.bf16.msra.mxu0 0
        %6360 = vmatprep.subr.bf16.mxu0 0
        %6361 = vmatpush1.bf16.msra.mxu0 0
        %6362 = vmatprep.subr.bf16.mxu0 0
        %6363 = vmatpush1.bf16.msra.mxu0 0
        %6364 = vmatprep.subr.bf16.mxu0 0
        %6365 = vmatpush1.bf16.msra.mxu0 0
        %6366 = vmatprep.subr.bf16.mxu0 0
        %6367 = vmatpush1.bf16.msra.mxu0 0
        %6368 = vmatprep.subr.bf16.mxu0 0
        %6369 = vmatpush1.bf16.msra.mxu0 0
        %6370 = vmatprep.subr.bf16.mxu0 0
        %6371 = vmatpush1.bf16.msra.mxu0 0
        %6372 = vmatprep.subr.bf16.mxu0 0
        %6373 = vmatpush1.bf16.msra.mxu0 0
        %6374 = vmatprep.subr.bf16.mxu0 0
        %6375 = vmatpush1.bf16.msra.mxu0 0
        %6376 = vmatprep.subr.bf16.mxu0 0
        %6377 = vmatpush1.bf16.msra.mxu0 0
        %6378 = vmatprep.subr.bf16.mxu0 0
        %6379 = vmatpush1.bf16.msra.mxu0 0
        %6380 = vmatprep.subr.bf16.mxu0 0
        %6381 = vmatpush1.bf16.msra.mxu0 0
        %6382 = vmatprep.subr.bf16.mxu0 0
        %6383 = vmatpush1.bf16.msra.mxu0 0
        %6384 = vmatprep.mubr.bf16.mxu0 0
        %6385 = vmatmul.mubr.bf16.gmra.mrb[0].mxu0 %v5953
        %v6386 = vpop.f32.mrb[0].mxu0
        %v6387 = vadd.f32 0.0, %v6386
        %v6388 = vpop.f32.mrb[0].mxu0
        %v6389 = vpop.f32.mrb[0].mxu0
        %v6390 = vadd.f32 0.0, %v6389
        %v6391 = vpop.f32.mrb[0].mxu0
        %6392 = vmatprep.mubr.bf16.mxu0 0
        %6393 = vmatmul.mubr.bf16.gmra.mrb[0].mxu0 %v5956
        %v6394 = vpop.f32.mrb[0].mxu0
        %v6395 = vadd.f32 0.0, %v6394
        %v6396 = vpop.f32.mrb[0].mxu0
        %v6397 = vpop.f32.mrb[0].mxu0
        %v6398 = vadd.f32 0.0, %v6397
        %v6399 = vpop.f32.mrb[0].mxu0
        %6400 = vmatprep.mubr.bf16.mxu0 0
        %6401 = vmatmul.mubr.bf16.gmra.mrb[0].mxu0 %v5959
        %v6402 = vpop.f32.mrb[0].mxu0
        %v6403 = vadd.f32 0.0, %v6402
        %v6404 = vpop.f32.mrb[0].mxu0
        %v6405 = vpop.f32.mrb[0].mxu0
        %v6406 = vadd.f32 0.0, %v6405
        %v6407 = vpop.f32.mrb[0].mxu0
        %6408 = vmatprep.mubr.bf16.mxu0 0
        %6409 = vmatmul.mubr.bf16.gmra.mrb[0].mxu0 %v5962
        %v6410 = vpop.f32.mrb[0].mxu0
        %v6411 = vadd.f32 0.0, %v6410
        %v6412 = vpop.f32.mrb[0].mxu0
        %v6413 = vpop.f32.mrb[0].mxu0
        %v6414 = vadd.f32 0.0, %v6413
        %v6415 = vpop.f32.mrb[0].mxu0
        %6416 = vmatprep.mubr.bf16.mxu0 0
        %6417 = vmatmul.mubr.bf16.gmra.mrb[0].mxu0 %v5965
        %v6418 = vpop.f32.mrb[0].mxu0
        %v6419 = vadd.f32 0.0, %v6418
        %v6420 = vpop.f32.mrb[0].mxu0
        %v6421 = vpop.f32.mrb[0].mxu0
        %v6422 = vadd.f32 0.0, %v6421
        %v6423 = vpop.f32.mrb[0].mxu0
        %6424 = vmatprep.mubr.bf16.mxu0 0
        %6425 = vmatmul.mubr.bf16.gmra.mrb[0].mxu0 %v5968
        %v6426 = vpop.f32.mrb[0].mxu0
        %v6427 = vadd.f32 0.0, %v6426
        %v6428 = vpop.f32.mrb[0].mxu0
        %v6429 = vpop.f32.mrb[0].mxu0
        %v6430 = vadd.f32 0.0, %v6429
        %v6431 = vpop.f32.mrb[0].mxu0
        %6432 = vmatprep.mubr.bf16.mxu0 0
        %6433 = vmatmul.mubr.bf16.gmra.mrb[0].mxu0 %v5971
        %v6434 = vpop.f32.mrb[0].mxu0
        %v6435 = vadd.f32 0.0, %v6434
        %v6436 = vpop.f32.mrb[0].mxu0
        %v6437 = vpop.f32.mrb[0].mxu0
        %v6438 = vadd.f32 0.0, %v6437
        %v6439 = vpop.f32.mrb[0].mxu0
        %6440 = vmatprep.mubr.bf16.mxu0 0
        %6441 = vmatmul.mubr.bf16.gmra.mrb[0].mxu0 %v5974
        %v6442 = vpop.f32.mrb[0].mxu0
        %v6443 = vadd.f32 0.0, %v6442
        %v6444 = vpop.f32.mrb[0].mxu0
        %v6445 = vpop.f32.mrb[0].mxu0
        %v6446 = vadd.f32 0.0, %v6445
        %v6447 = vpop.f32.mrb[0].mxu0
        %6448 = vmatprep.mubr.bf16.mxu0 0
        %6449 = vmatmul.mubr.bf16.gmra.mrb[0].mxu0 %v5977
        %v6450 = vpop.f32.mrb[0].mxu0
        %v6451 = vadd.f32 0.0, %v6450
        %v6452 = vpop.f32.mrb[0].mxu0
        %v6453 = vpop.f32.mrb[0].mxu0
        %v6454 = vadd.f32 0.0, %v6453
        %v6455 = vpop.f32.mrb[0].mxu0
        %6456 = vmatprep.mubr.bf16.mxu0 0
        %6457 = vmatmul.mubr.bf16.gmra.mrb[0].mxu0 %v5980
        %v6458 = vpop.f32.mrb[0].mxu0
        %v6459 = vadd.f32 0.0, %v6458
        %v6460 = vpop.f32.mrb[0].mxu0
        %v6461 = vpop.f32.mrb[0].mxu0
        %v6462 = vadd.f32 0.0, %v6461
        %v6463 = vpop.f32.mrb[0].mxu0
        %6464 = vmatprep.mubr.bf16.mxu0 0
        %6465 = vmatmul.mubr.bf16.gmra.mrb[0].mxu0 %v5983
        %v6466 = vpop.f32.mrb[0].mxu0
        %v6467 = vadd.f32 0.0, %v6466
        %v6468 = vpop.f32.mrb[0].mxu0
        %v6469 = vpop.f32.mrb[0].mxu0
        %v6470 = vadd.f32 0.0, %v6469
        %v6471 = vpop.f32.mrb[0].mxu0
        %6472 = vmatprep.mubr.bf16.mxu0 0
        %6473 = vmatmul.mubr.bf16.gmra.mrb[0].mxu0 %v5986
        %v6474 = vpop.f32.mrb[0].mxu0
        %v6475 = vadd.f32 0.0, %v6474
        %v6476 = vpop.f32.mrb[0].mxu0
        %v6477 = vpop.f32.mrb[0].mxu0
        %v6478 = vadd.f32 0.0, %v6477
        %v6479 = vpop.f32.mrb[0].mxu0
        %6480 = vmatprep.mubr.bf16.mxu0 0
        %6481 = vmatmul.mubr.bf16.gmra.mrb[0].mxu0 %v5989
        %v6482 = vpop.f32.mrb[0].mxu0
        %v6483 = vadd.f32 0.0, %v6482
        %v6484 = vpop.f32.mrb[0].mxu0
        %v6485 = vpop.f32.mrb[0].mxu0
        %v6486 = vadd.f32 0.0, %v6485
        %v6487 = vpop.f32.mrb[0].mxu0
        %6488 = vmatprep.mubr.bf16.mxu0 0
        %6489 = vmatmul.mubr.bf16.gmra.mrb[0].mxu0 %v5992
        %v6490 = vpop.f32.mrb[0].mxu0
        %v6491 = vadd.f32 0.0, %v6490
        %v6492 = vpop.f32.mrb[0].mxu0
        %v6493 = vpop.f32.mrb[0].mxu0
        %v6494 = vpop.f32.mrb[0].mxu0
        %6495 = vdwg.mxu0
        %6496 = vst [vmem:[%s434] sm:$0xff] %v6045
        %6497 = vst [vmem:[%s434 + $0x8] sm:$0xff] %v6047
        %6498 = vst [vmem:[%s434 + $0x10] sm:$0xff] %v6216
        %6499 = vst [vmem:[%s434 + $0x18] sm:$0xff] %v6218
        %6500 = vst [vmem:[%s434 + $0x20] sm:$0xff] %v6387
        %6501 = vst [vmem:[%s434 + $0x28] sm:$0xff] %v6049
        %6502 = vst [vmem:[%s434 + $0x30] sm:$0xff] %v6051
        %6503 = vst [vmem:[%s434 + $0x38] sm:$0xff] %v6220
        %6504 = vst [vmem:[%s434 + $0x40] sm:$0xff] %v6222
        %6505 = vst [vmem:[%s434 + $0x48] sm:$0xff] %v6390
        %6506 = vst [vmem:[%s434 + $0x50] sm:$0xff] %v6055
        %6507 = vst [vmem:[%s434 + $0x58] sm:$0xff] %v6057
        %6508 = vst [vmem:[%s434 + $0x60] sm:$0xff] %v6226
        %6509 = vst [vmem:[%s434 + $0x68] sm:$0xff] %v6228
        %6510 = vst [vmem:[%s434 + $0x70] sm:$0xff] %v6395
        %6511 = vst [vmem:[%s434 + $0x78] sm:$0xff] %v6059
        %6512 = vst [vmem:[%s434 + $0x80] sm:$0xff] %v6061
        %6513 = vst [vmem:[%s434 + $0x88] sm:$0xff] %v6230
        %6514 = vst [vmem:[%s434 + $0x90] sm:$0xff] %v6232
        %6515 = vst [vmem:[%s434 + $0x98] sm:$0xff] %v6398
        %6516 = vst [vmem:[%s434 + $0xa0] sm:$0xff] %v6065
        %6517 = vst [vmem:[%s434 + $0xa8] sm:$0xff] %v6067
        %6518 = vst [vmem:[%s434 + $0xb0] sm:$0xff] %v6236
        %6519 = vst [vmem:[%s434 + $0xb8] sm:$0xff] %v6238
        %6520 = vst [vmem:[%s434 + $0xc0] sm:$0xff] %v6403
        %6521 = vst [vmem:[%s434 + $0xc8] sm:$0xff] %v6069
        %6522 = vst [vmem:[%s434 + $0xd0] sm:$0xff] %v6071
        %6523 = vst [vmem:[%s434 + $0xd8] sm:$0xff] %v6240
        %6524 = vst [vmem:[%s434 + $0xe0] sm:$0xff] %v6242
        %6525 = vst [vmem:[%s434 + $0xe8] sm:$0xff] %v6406
        %6526 = vst [vmem:[%s434 + $0xf0] sm:$0xff] %v6075
        %6527 = vst [vmem:[%s434 + $0xf8] sm:$0xff] %v6077
        %6528 = vst [vmem:[%s434 + $0x100] sm:$0xff] %v6246
        %6529 = vst [vmem:[%s434 + $0x108] sm:$0xff] %v6248
        %6530 = vst [vmem:[%s434 + $0x110] sm:$0xff] %v6411
        %6531 = vst [vmem:[%s434 + $0x118] sm:$0xff] %v6079
        %6532 = vst [vmem:[%s434 + $0x120] sm:$0xff] %v6081
        %6533 = vst [vmem:[%s434 + $0x128] sm:$0xff] %v6250
        %6534 = vst [vmem:[%s434 + $0x130] sm:$0xff] %v6252
        %6535 = vst [vmem:[%s434 + $0x138] sm:$0xff] %v6414
        %6536 = vst [vmem:[%s434 + $0x140] sm:$0xff] %v6085
        %6537 = vst [vmem:[%s434 + $0x148] sm:$0xff] %v6087
        %6538 = vst [vmem:[%s434 + $0x150] sm:$0xff] %v6256
        %6539 = vst [vmem:[%s434 + $0x158] sm:$0xff] %v6258
        %6540 = vst [vmem:[%s434 + $0x160] sm:$0xff] %v6419
        %6541 = vst [vmem:[%s434 + $0x168] sm:$0xff] %v6089
        %6542 = vst [vmem:[%s434 + $0x170] sm:$0xff] %v6091
        %6543 = vst [vmem:[%s434 + $0x178] sm:$0xff] %v6260
        %6544 = vst [vmem:[%s434 + $0x180] sm:$0xff] %v6262
        %6545 = vst [vmem:[%s434 + $0x188] sm:$0xff] %v6422
        %6546 = vst [vmem:[%s434 + $0x190] sm:$0xff] %v6095
        %6547 = vst [vmem:[%s434 + $0x198] sm:$0xff] %v6097
        %6548 = vst [vmem:[%s434 + $0x1a0] sm:$0xff] %v6266
        %6549 = vst [vmem:[%s434 + $0x1a8] sm:$0xff] %v6268
        %6550 = vst [vmem:[%s434 + $0x1b0] sm:$0xff] %v6427
        %6551 = vst [vmem:[%s434 + $0x1b8] sm:$0xff] %v6099
        %6552 = vst [vmem:[%s434 + $0x1c0] sm:$0xff] %v6101
        %6553 = vst [vmem:[%s434 + $0x1c8] sm:$0xff] %v6270
        %6554 = vst [vmem:[%s434 + $0x1d0] sm:$0xff] %v6272
        %6555 = vst [vmem:[%s434 + $0x1d8] sm:$0xff] %v6430
        %6556 = vst [vmem:[%s434 + $0x1e0] sm:$0xff] %v6105
        %6557 = vst [vmem:[%s434 + $0x1e8] sm:$0xff] %v6107
        %6558 = vst [vmem:[%s434 + $0x1f0] sm:$0xff] %v6276
        %6559 = vst [vmem:[%s434 + $0x1f8] sm:$0xff] %v6278
        %6560 = vst [vmem:[%s434 + $0x200] sm:$0xff] %v6435
        %6561 = vst [vmem:[%s434 + $0x208] sm:$0xff] %v6109
        %6562 = vst [vmem:[%s434 + $0x210] sm:$0xff] %v6111
        %6563 = vst [vmem:[%s434 + $0x218] sm:$0xff] %v6280
        %6564 = vst [vmem:[%s434 + $0x220] sm:$0xff] %v6282
        %6565 = vst [vmem:[%s434 + $0x228] sm:$0xff] %v6438
        %6566 = vst [vmem:[%s434 + $0x230] sm:$0xff] %v6115
        %6567 = vst [vmem:[%s434 + $0x238] sm:$0xff] %v6117
        %6568 = vst [vmem:[%s434 + $0x240] sm:$0xff] %v6286
        %6569 = vst [vmem:[%s434 + $0x248] sm:$0xff] %v6288
        %6570 = vst [vmem:[%s434 + $0x250] sm:$0xff] %v6443
        %6571 = vst [vmem:[%s434 + $0x258] sm:$0xff] %v6119
        %6572 = vst [vmem:[%s434 + $0x260] sm:$0xff] %v6121
        %6573 = vst [vmem:[%s434 + $0x268] sm:$0xff] %v6290
        %6574 = vst [vmem:[%s434 + $0x270] sm:$0xff] %v6292
        %6575 = vst [vmem:[%s434 + $0x278] sm:$0xff] %v6446
        %6576 = vst [vmem:[%s434 + $0x280] sm:$0xff] %v6125
        %6577 = vst [vmem:[%s434 + $0x288] sm:$0xff] %v6127
        %6578 = vst [vmem:[%s434 + $0x290] sm:$0xff] %v6296
        %6579 = vst [vmem:[%s434 + $0x298] sm:$0xff] %v6298
        %6580 = vst [vmem:[%s434 + $0x2a0] sm:$0xff] %v6451
        %6581 = vst [vmem:[%s434 + $0x2a8] sm:$0xff] %v6129
        %6582 = vst [vmem:[%s434 + $0x2b0] sm:$0xff] %v6131
        %6583 = vst [vmem:[%s434 + $0x2b8] sm:$0xff] %v6300
        %6584 = vst [vmem:[%s434 + $0x2c0] sm:$0xff] %v6302
        %6585 = vst [vmem:[%s434 + $0x2c8] sm:$0xff] %v6454
        %6586 = vst [vmem:[%s434 + $0x2d0] sm:$0xff] %v6135
        %6587 = vst [vmem:[%s434 + $0x2d8] sm:$0xff] %v6137
        %6588 = vst [vmem:[%s434 + $0x2e0] sm:$0xff] %v6306
        %6589 = vst [vmem:[%s434 + $0x2e8] sm:$0xff] %v6308
        %6590 = vst [vmem:[%s434 + $0x2f0] sm:$0xff] %v6459
        %6591 = vst [vmem:[%s434 + $0x2f8] sm:$0xff] %v6139
        %6592 = vst [vmem:[%s434 + $0x300] sm:$0xff] %v6141
        %6593 = vst [vmem:[%s434 + $0x308] sm:$0xff] %v6310
        %6594 = vst [vmem:[%s434 + $0x310] sm:$0xff] %v6312
        %6595 = vst [vmem:[%s434 + $0x318] sm:$0xff] %v6462
        %6596 = vst [vmem:[%s434 + $0x320] sm:$0xff] %v6145
        %6597 = vst [vmem:[%s434 + $0x328] sm:$0xff] %v6147
        %6598 = vst [vmem:[%s434 + $0x330] sm:$0xff] %v6316
        %6599 = vst [vmem:[%s434 + $0x338] sm:$0xff] %v6318
        %6600 = vst [vmem:[%s434 + $0x340] sm:$0xff] %v6467
        %6601 = vst [vmem:[%s434 + $0x348] sm:$0xff] %v6149
        %6602 = vst [vmem:[%s434 + $0x350] sm:$0xff] %v6151
        %6603 = vst [vmem:[%s434 + $0x358] sm:$0xff] %v6320
        %6604 = vst [vmem:[%s434 + $0x360] sm:$0xff] %v6322
        %6605 = vst [vmem:[%s434 + $0x368] sm:$0xff] %v6470
        %6606 = vst [vmem:[%s434 + $0x370] sm:$0xff] %v6155
        %6607 = vst [vmem:[%s434 + $0x378] sm:$0xff] %v6157
        %6608 = vst [vmem:[%s434 + $0x380] sm:$0xff] %v6326
        %6609 = vst [vmem:[%s434 + $0x388] sm:$0xff] %v6328
        %6610 = vst [vmem:[%s434 + $0x390] sm:$0xff] %v6475
        %6611 = vst [vmem:[%s434 + $0x398] sm:$0xff] %v6159
        %6612 = vst [vmem:[%s434 + $0x3a0] sm:$0xff] %v6161
        %6613 = vst [vmem:[%s434 + $0x3a8] sm:$0xff] %v6330
        %6614 = vst [vmem:[%s434 + $0x3b0] sm:$0xff] %v6332
        %6615 = vst [vmem:[%s434 + $0x3b8] sm:$0xff] %v6478
        %6616 = vst [vmem:[%s434 + $0x3c0] sm:$0xff] %v6165
        %6617 = vst [vmem:[%s434 + $0x3c8] sm:$0xff] %v6167
        %6618 = vst [vmem:[%s434 + $0x3d0] sm:$0xff] %v6336
        %6619 = vst [vmem:[%s434 + $0x3d8] sm:$0xff] %v6338
        %6620 = vst [vmem:[%s434 + $0x3e0] sm:$0xff] %v6483
        %6621 = vst [vmem:[%s434 + $0x3e8] sm:$0xff] %v6169
        %6622 = vst [vmem:[%s434 + $0x3f0] sm:$0xff] %v6171
        %6623 = vst [vmem:[%s434 + $0x3f8] sm:$0xff] %v6340
        %6624 = vst [vmem:[%s434 + $0x400] sm:$0xff] %v6342
        %6625 = vst [vmem:[%s434 + $0x408] sm:$0xff] %v6486
        %6626 = vst [vmem:[%s434 + $0x410] sm:$0xff] %v6175
        %6627 = vst [vmem:[%s434 + $0x418] sm:$0xff] %v6177
        %6628 = vst [vmem:[%s434 + $0x420] sm:$0xff] %v6346
        %6629 = vst [vmem:[%s434 + $0x428] sm:$0xff] %v6348
        %6630 = vst [vmem:[%s434 + $0x430] sm:$0xff] %v6491
        %s6631 = sand.u32 %s313, 1
        %s6632 = scalar_lea.sflag [#allocation4], %s6631
        %s6633 = sand.u32 %s313, 1
        %s6634 = smul.addr %s6633, 1080
        %s6635 = scalar_lea.vmem [#allocation3], %s6634
        // Predicated region
        $region77: #{bgnet_forward.1} parent=71 // pred_check
          %p6636 = pneg %p323
        $region78: #{bgnet_forward.1} parent=71 // pred_check_branch
          %6638 = sbr.rel (%p6636) target = $region80
        $region79: #{bgnet_forward.1} parent=71 // pred_region
          %s6639 = smul.u32 27, %s27
          %s6641 = ssub.s32 17280, 17280
          %6642 = vsyncadd %s6632, %s6641
          %s6643 = smul.addr %s6639, 5
          %s6644 = smul.addr %s6643, 128
          %s6645 = scalar_lea.hbm %s13, %s6644
          %s6646 = sshll.u32 %s6635, 4
          %s6647 = int_to_ptr.vmem [resolvable:$true] %s6646
          %6652 = dma.vmem_to_hbm [thread:$0]  %s6647, 17280, %s6645, %s6632, 640, 640, 40
        $region80: #{bgnet_forward.1} parent=71 // pred_fallthru
          _
      $region72: #{bgnet_forward.1} parent=5 // pred_fallthru
        _
      %p6653 = scmp.le.s32.totalorder 2, %s22
      // Predicated region
      $region81: #{bgnet_forward.1} parent=5 // pred_check
        %p6654 = pneg %p6653
      $region82: #{bgnet_forward.1} parent=5 // pred_check_branch
        %6656 = sbr.rel (%p6654) target = $region84
      $region83: #{bgnet_forward.1} parent=5 // pred_region
        %s6657 = ssub.s32 %s22, 2
        // Predicated region
        $region85: #{bgnet_forward.1} parent=83 // pred_check
          %p6658 = pneg %p329
        $region86: #{bgnet_forward.1} parent=83 // pred_check_branch
          %6660 = sbr.rel (%p6658) target = $region88
        $region87: #{bgnet_forward.1} parent=83 // pred_region
          %s6661 = sand.u32 %s314, 1
          %s6662 = scalar_lea.sflag [#allocation4], %s6661
          %s6663 = sand.u32 %s314, 1
          %s6664 = smul.addr %s6663, 1080
          %s6665 = scalar_lea.vmem [#allocation3], %s6664
          %6666 = dma.done %s6662, 17280
        $region88: #{bgnet_forward.1} parent=83 // pred_fallthru
          _
      $region84: #{bgnet_forward.1} parent=5 // pred_fallthru
        _
    $region6: #{bgnet_forward.1} parent=1 // loop_footer
      %s26 = sadd.s32 1, %s22
    $region7: #{bgnet_forward.1} parent=1 // loop_footer_branch
      %21 = sbr.rel target = $region3
    $region8: #{bgnet_forward.1} parent=1 // loop_exit
      _
    %6667 = vsyncpa [#allocation4], 1
    %s6668 = scalar_lea.sflag [#allocation4], 1
    %6669 = vsyncpa %s6668, 1

</llo_original>
